<compile_context>
chip_gen: v5e
topology: v5e:2x2
jax: 0.10.0
libtpu: 0.0.40
codegen_flags: <defaults>
</compile_context>

<pallas_src>
import functools

import jax
import jax.numpy as jnp
from jax.experimental import pallas as pl
from jax.experimental.pallas import tpu as pltpu

# ---------------------------------------------------------------- config ----
KERNEL_SIZES = [5, 5, 3]
CHANNELS = [1, 8, 16, 32]
LRLC_CHANNELS = 8
LRLC_KSIZE = 3
RANK = 2
N_CLASSES = 4
INPUT_HW = (16, 16)
BN_EPS = 1e-5


# ------------------------------------------------------- operand building ----
def _band_matrices(w_hwio, col_scale, width):
    """Per-dy band (Toeplitz-in-W) matrices: (k, W*Cin, W*Cout).

    M[dy][x'*Cin+ci, x*Cout+co] = w[dy, x'-x+p, ci, co] * col_scale[co]
    (zero when x'-x+p is outside [0, k)), which encodes the W-direction 'same'
    convolution (and the folded BN scale) as a plain matmul.
    """
    k, _, cin, cout = w_hwio.shape
    p = k // 2
    ws = w_hwio * col_scale[None, None, None, :]
    xp = jnp.arange(width)[:, None]          # input column x'
    xo = jnp.arange(width)[None, :]          # output column x
    dx = xp - xo + p                         # (W, W)
    valid = (dx >= 0) & (dx < k)
    dxc = jnp.clip(dx, 0, k - 1)
    g = ws[:, dxc, :, :]                     # (k, W, W, Cin, Cout)
    g = jnp.where(valid[None, :, :, None, None], g, 0.0)
    g = jnp.transpose(g, (0, 1, 3, 2, 4))    # (k, W(x'), Cin, W(x), Cout)
    return g.reshape(k, width * cin, width * cout)


def _row_shift_mats(height, k):
    """R[dy][y, j] = 1 iff j == y + dy - p  (H-direction shift w/ zero pad)."""
    p = k // 2
    y = jnp.arange(height)[:, None]
    j = jnp.arange(height)[None, :]
    return jnp.stack([(j == y + (dy - p)).astype(jnp.float32) for dy in range(k)])


def _col_pool_mats(width, cout):
    """0/1 selectors (W*C, (W/2)*C) picking even / odd x-blocks of columns."""
    j = jnp.arange(width * cout)[:, None]
    m = jnp.arange((width // 2) * cout)[None, :]
    base = (m // cout) * (2 * cout) + (m % cout)
    sel_even = (j == base).astype(jnp.float32)
    sel_odd = (j == base + cout).astype(jnp.float32)
    return sel_even, sel_odd


def _row_pool_mats(height):
    """0/1 selectors (H/2, H) picking even / odd rows."""
    yo = jnp.arange(height // 2)[:, None]
    j = jnp.arange(height)[None, :]
    return ((j == 2 * yo).astype(jnp.float32),
            (j == 2 * yo + 1).astype(jnp.float32))


def prepare_operands(params):
    """Precompute all constant matrices fed to the fused kernel (runs once)."""
    ops = []
    h, w = INPUT_HW
    for i, k in enumerate(KERNEL_SIZES):
        cout = CHANNELS[i + 1]
        s = params[f"bn{i}_gamma"] * jax.lax.rsqrt(params[f"bn{i}_var"] + BN_EPS)
        shift = params[f"bn{i}_beta"] + s * (params[f"conv{i}_b"] - params[f"bn{i}_mean"])
        band = _band_matrices(params[f"conv{i}_w"], s, w)          # (k, w*cin, w*cout)
        bias = jnp.tile(shift, w)[None, :]                          # (1, w*cout)
        rshift = _row_shift_mats(h, k)                              # (k, h, h)
        ce, codd = _col_pool_mats(w, cout)                          # (w*cout, w/2*cout)
        re, ro = _row_pool_mats(h)                                  # (h/2, h)
        ops += [band, bias, rshift, ce, codd, re, ro]
        h //= 2
        w //= 2

    # --- LRLC: rank-R 3x3 basis convs + folded (constant) combining weights ---
    cin, cout = CHANNELS[-1], LRLC_CHANNELS
    ml = jnp.concatenate(
        [_band_matrices(params["lrlc_w"][r], jnp.ones((cout,), jnp.float32), w)
         for r in range(RANK)], axis=0)                             # (R*3, w*cin, w*cout)
    rl = _row_shift_mats(h, LRLC_KSIZE)                             # (3, h, h)
    cw = jax.nn.softmax(params["cw_row"][:, None, :] + params["cw_col"][None, :, :],
                        axis=-1)                                    # (h, w, R)
    cwb = jnp.stack([jnp.repeat(cw[:, :, r], cout, axis=1) for r in range(RANK)])  # (R, h, w*cout)
    bl = jnp.tile(params["lrlc_b"], w)[None, :]                     # (1, w*cout)
    ops += [ml, rl, cwb, bl]

    # --- FC head; NCHW flatten folded into fc1 weight row permutation ---
    c_idx = jnp.arange(cout)
    y_idx = jnp.arange(h)
    x_idx = jnp.arange(w)
    # idx[y, x*cout + c] = c*(h*w) + y*w + x   (torch.flatten NCHW order)
    idx = (c_idx[None, None, :] * (h * w) + y_idx[:, None, None] * w
           + x_idx[None, :, None]).reshape(h, w * cout)
    wf1 = params["fc1_w"][idx]                                      # (h, w*cout, 64)
    bf1 = params["fc1_b"][None, :]
    wf2 = params["fc2_w"]
    bf2 = params["fc2_b"][None, :]
    ops += [wf1, bf1, wf2, bf2]
    return [o.astype(jnp.float32) for o in ops]


# ----------------------------------------------------------- Pallas kernel ---
def _conv_stage(a, m_ref, b_ref, r_ref, ce_ref, co_ref, re_ref, ro_ref):
    """conv('same') + BN + ReLU + 2x2 maxpool, all via matmuls on VMEM values."""
    k = r_ref.shape[0]
    hi = a.shape[0]
    n = m_ref.shape[2]
    acc = jnp.zeros((hi, n), jnp.float32)
    for dy in range(k):
        g = jnp.dot(a, m_ref[dy], preferred_element_type=jnp.float32)
        acc = acc + jnp.dot(r_ref[dy], g, preferred_element_type=jnp.float32)
    z = jnp.maximum(acc + b_ref[...], 0.0)
    zc = jnp.maximum(jnp.dot(z, ce_ref[...], preferred_element_type=jnp.float32),
                     jnp.dot(z, co_ref[...], preferred_element_type=jnp.float32))
    return jnp.maximum(jnp.dot(re_ref[...], zc, preferred_element_type=jnp.float32),
                       jnp.dot(ro_ref[...], zc, preferred_element_type=jnp.float32))


def _lrlc_net_kernel(x_ref,
                     m0, b0, r0, ce0, co0, re0, ro0,
                     m1, b1, r1, ce1, co1, re1, ro1,
                     m2, b2, r2, ce2, co2, re2, ro2,
                     ml, rl, cwb, bl,
                     wf1, bf1, wf2, bf2,
                     o_ref):
    a = x_ref[0]                                             # (16, 16)
    a = _conv_stage(a, m0, b0, r0, ce0, co0, re0, ro0)       # (8, 64)
    a = _conv_stage(a, m1, b1, r1, ce1, co1, re1, ro1)       # (4, 64)
    a = _conv_stage(a, m2, b2, r2, ce2, co2, re2, ro2)       # (2, 64)

    # LRLC: rank-R basis convs, combined with constant per-position weights.
    k_l = rl.shape[0]
    sh = [jnp.dot(rl[dy], a, preferred_element_type=jnp.float32) for dy in range(k_l)]
    z = jnp.zeros((a.shape[0], ml.shape[2]), jnp.float32)
    for r in range(RANK):
        zr = jnp.zeros_like(z)
        for dy in range(k_l):
            zr = zr + jnp.dot(sh[dy], ml[r * k_l + dy],
                              preferred_element_type=jnp.float32)
        z = z + cwb[r] * zr
    z = jnp.maximum(z + bl[...], 0.0)                        # (2, 16)

    # FC head; the NCHW flatten permutation is already baked into wf1's rows.
    h = bf1[...]
    for y in range(z.shape[0]):
        h = h + jnp.dot(z[y:y + 1, :], wf1[y], preferred_element_type=jnp.float32)
    h = jnp.maximum(h, 0.0)                                  # (1, 64)
    o_ref[0] = jnp.dot(h, wf2[...], preferred_element_type=jnp.float32) + bf2[...]


def _const_index_map(b, ndim):
    return (0,) * ndim


def forward_pallas(x_nchw, operands):
    """Fused forward pass; one pallas_call, grid over the batch (parallel)."""
    batch = x_nchw.shape[0]
    assert x_nchw.shape[1] == CHANNELS[0] == 1
    h, w = x_nchw.shape[2], x_nchw.shape[3]
    x2 = x_nchw.reshape(batch, h, w).astype(jnp.float32)     # (B, H, W*Cin), Cin=1

    in_specs = [pl.BlockSpec((1, h, w), lambda b: (b, 0, 0))]
    for op in operands:
        in_specs.append(
            pl.BlockSpec(op.shape, functools.partial(_const_index_map, ndim=op.ndim)))

    out = pl.pallas_call(
        _lrlc_net_kernel,
        out_shape=jax.ShapeDtypeStruct((batch, 1, N_CLASSES), jnp.float32),
        grid=(batch,),
        in_specs=in_specs,
        out_specs=pl.BlockSpec((1, 1, N_CLASSES), lambda b: (b, 0, 0)),
        compiler_params=pltpu.CompilerParams(dimension_semantics=("parallel",)),
    )(x2, *operands)
    return out.reshape(batch, N_CLASSES)


# ------------------------------------------------------ reference (no Pallas)
def forward_reference(x_nchw, params):
    """Independent pure-JAX reference (lax.conv based) for correctness checks."""
    with jax.default_matmul_precision("highest"):
        x = jnp.transpose(x_nchw.astype(jnp.float32), (0, 2, 3, 1))   # NHWC
        dn = ("NHWC", "HWIO", "NHWC")
        for i, _ in enumerate(KERNEL_SIZES):
            y = jax.lax.conv_general_dilated(x, params[f"conv{i}_w"], (1, 1), "SAME",
                                             dimension_numbers=dn)
            y = y + params[f"conv{i}_b"]
            s = params[f"bn{i}_gamma"] / jnp.sqrt(params[f"bn{i}_var"] + BN_EPS)
            y = s * (y - params[f"bn{i}_mean"]) + params[f"bn{i}_beta"]
            y = jnp.maximum(y, 0.0)
            b, hh, ww, c = y.shape
            x = y.reshape(b, hh // 2, 2, ww // 2, 2, c).max(axis=(2, 4))
        cw = jax.nn.softmax(params["cw_row"][:, None, :] + params["cw_col"][None, :, :],
                            axis=-1)                                  # (h, w, R)
        conv_r = [jax.lax.conv_general_dilated(x, params["lrlc_w"][r], (1, 1), "SAME",
                                               dimension_numbers=dn)
                  for r in range(RANK)]
        y = sum(cw[None, :, :, r][..., None] * conv_r[r] for r in range(RANK))
        y = jnp.maximum(y + params["lrlc_b"], 0.0)
        b = y.shape[0]
        y = jnp.transpose(y, (0, 3, 1, 2)).reshape(b, -1)             # NCHW flatten
        y = jnp.maximum(y @ params["fc1_w"] + params["fc1_b"], 0.0)
        y = y @ params["fc2_w"] + params["fc2_b"]
        return y


# --------------------------------------------------------------- init params -
def init_params(key):
    """Deterministic synthetic parameters matching the module's __init__ shapes."""
    params = {}
    keys = iter(jax.random.split(key, 64))
    for i, k in enumerate(KERNEL_SIZES):
        cin, cout = CHANNELS[i], CHANNELS[i + 1]
        fan_in = k * k * cin
        params[f"conv{i}_w"] = (jax.random.normal(next(keys), (k, k, cin, cout),
                                                  jnp.float32) / jnp.sqrt(fan_in))
        params[f"conv{i}_b"] = 0.1 * jax.random.normal(next(keys), (cout,), jnp.float32)
        params[f"bn{i}_gamma"] = 1.0 + 0.1 * jax.random.normal(next(keys), (cout,), jnp.float32)
        params[f"bn{i}_beta"] = 0.1 * jax.random.normal(next(keys), (cout,), jnp.float32)
        params[f"bn{i}_mean"] = 0.1 * jax.random.normal(next(keys), (cout,), jnp.float32)
        params[f"bn{i}_var"] = 1.0 + 0.1 * jnp.abs(
            jax.random.normal(next(keys), (cout,), jnp.float32))
    h, w = INPUT_HW[0] // 8, INPUT_HW[1] // 8            # after three 2x2 pools
    cin = CHANNELS[-1]
    fan_in = LRLC_KSIZE * LRLC_KSIZE * cin
    params["lrlc_w"] = (jax.random.normal(
        next(keys), (RANK, LRLC_KSIZE, LRLC_KSIZE, cin, LRLC_CHANNELS),
        jnp.float32) / jnp.sqrt(fan_in))
    params["lrlc_b"] = 0.1 * jax.random.normal(next(keys), (LRLC_CHANNELS,), jnp.float32)
    params["cw_row"] = jax.random.normal(next(keys), (h, RANK), jnp.float32)
    params["cw_col"] = jax.random.normal(next(keys), (w, RANK), jnp.float32)
    fc1_in = h * w * LRLC_CHANNELS
    params["fc1_w"] = jax.random.normal(next(keys), (fc1_in, 64), jnp.float32) / jnp.sqrt(fc1_in)
    params["fc1_b"] = 0.1 * jax.random.normal(next(keys), (64,), jnp.float32)
    params["fc2_w"] = jax.random.normal(next(keys), (64, N_CLASSES), jnp.float32) / jnp.sqrt(64.0)
    params["fc2_b"] = 0.1 * jax.random.normal(next(keys), (N_CLASSES,), jnp.float32)
    return params


# -------------------------------------------------------------------- main ---
if __name__ == "__main__":
    key = jax.random.PRNGKey(0)
    k_param, k_x = jax.random.split(key)
    params = init_params(k_param)
    x = jax.random.normal(k_x, (2, CHANNELS[0], INPUT_HW[0], INPUT_HW[1]), jnp.float32)

    operands = prepare_operands(params)                  # constants, built once
    fwd = jax.jit(functools.partial(forward_pallas, operands=operands))
    out = jax.block_until_ready(fwd(x))

    ref = forward_reference(x, params)
    assert out.shape == (2, N_CLASSES), out.shape
    assert jnp.allclose(out, ref, atol=1e-3, rtol=1e-3), (out, ref)

    print("KERNEL_OK")
</pallas_src>

<mosaic_0001>
module attributes {stable_mosaic.version = 11 : i64} {
  func.func @_lrlc_net_kernel(%arg0: i32, %arg1: memref<1x16x16xf32, #tpu.memory_space<vmem>>, %arg2: memref<5x16x128xf32, #tpu.memory_space<vmem>>, %arg3: memref<1x128xf32, #tpu.memory_space<vmem>>, %arg4: memref<5x16x16xf32, #tpu.memory_space<vmem>>, %arg5: memref<128x64xf32, #tpu.memory_space<vmem>>, %arg6: memref<128x64xf32, #tpu.memory_space<vmem>>, %arg7: memref<8x16xf32, #tpu.memory_space<vmem>>, %arg8: memref<8x16xf32, #tpu.memory_space<vmem>>, %arg9: memref<5x64x128xf32, #tpu.memory_space<vmem>>, %arg10: memref<1x128xf32, #tpu.memory_space<vmem>>, %arg11: memref<5x8x8xf32, #tpu.memory_space<vmem>>, %arg12: memref<128x64xf32, #tpu.memory_space<vmem>>, %arg13: memref<128x64xf32, #tpu.memory_space<vmem>>, %arg14: memref<4x8xf32, #tpu.memory_space<vmem>>, %arg15: memref<4x8xf32, #tpu.memory_space<vmem>>, %arg16: memref<3x64x128xf32, #tpu.memory_space<vmem>>, %arg17: memref<1x128xf32, #tpu.memory_space<vmem>>, %arg18: memref<3x4x4xf32, #tpu.memory_space<vmem>>, %arg19: memref<128x64xf32, #tpu.memory_space<vmem>>, %arg20: memref<128x64xf32, #tpu.memory_space<vmem>>, %arg21: memref<2x4xf32, #tpu.memory_space<vmem>>, %arg22: memref<2x4xf32, #tpu.memory_space<vmem>>, %arg23: memref<6x64x16xf32, #tpu.memory_space<vmem>>, %arg24: memref<3x2x2xf32, #tpu.memory_space<vmem>>, %arg25: memref<2x2x16xf32, #tpu.memory_space<vmem>>, %arg26: memref<1x16xf32, #tpu.memory_space<vmem>>, %arg27: memref<2x16x64xf32, #tpu.memory_space<vmem>>, %arg28: memref<1x64xf32, #tpu.memory_space<vmem>>, %arg29: memref<64x4xf32, #tpu.memory_space<vmem>>, %arg30: memref<1x4xf32, #tpu.memory_space<vmem>>, %arg31: memref<1x1x4xf32, #tpu.memory_space<vmem>>) attributes {dimension_semantics = [#tpu.dimension_semantics<parallel>], iteration_bounds = array<i64: 2>, scalar_prefetch = 0 : i64, scratch_operands = 0 : i64, tpu.core_type = #tpu.core_type<tc>, window_params = [{transform_indices = @transform_0, window_bounds = array<i64: 1, 16, 16>}, {pipeline_mode = #tpu.pipeline_mode<synchronous>, transform_indices = @transform_1, window_bounds = array<i64: 5, 16, 128>}, {pipeline_mode = #tpu.pipeline_mode<synchronous>, transform_indices = @transform_2, window_bounds = array<i64: 1, 128>}, {pipeline_mode = #tpu.pipeline_mode<synchronous>, transform_indices = @transform_3, window_bounds = array<i64: 5, 16, 16>}, {pipeline_mode = #tpu.pipeline_mode<synchronous>, transform_indices = @transform_4, window_bounds = array<i64: 128, 64>}, {pipeline_mode = #tpu.pipeline_mode<synchronous>, transform_indices = @transform_5, window_bounds = array<i64: 128, 64>}, {pipeline_mode = #tpu.pipeline_mode<synchronous>, transform_indices = @transform_6, window_bounds = array<i64: 8, 16>}, {pipeline_mode = #tpu.pipeline_mode<synchronous>, transform_indices = @transform_7, window_bounds = array<i64: 8, 16>}, {pipeline_mode = #tpu.pipeline_mode<synchronous>, transform_indices = @transform_8, window_bounds = array<i64: 5, 64, 128>}, {pipeline_mode = #tpu.pipeline_mode<synchronous>, transform_indices = @transform_9, window_bounds = array<i64: 1, 128>}, {pipeline_mode = #tpu.pipeline_mode<synchronous>, transform_indices = @transform_10, window_bounds = array<i64: 5, 8, 8>}, {pipeline_mode = #tpu.pipeline_mode<synchronous>, transform_indices = @transform_11, window_bounds = array<i64: 128, 64>}, {pipeline_mode = #tpu.pipeline_mode<synchronous>, transform_indices = @transform_12, window_bounds = array<i64: 128, 64>}, {pipeline_mode = #tpu.pipeline_mode<synchronous>, transform_indices = @transform_13, window_bounds = array<i64: 4, 8>}, {pipeline_mode = #tpu.pipeline_mode<synchronous>, transform_indices = @transform_14, window_bounds = array<i64: 4, 8>}, {pipeline_mode = #tpu.pipeline_mode<synchronous>, transform_indices = @transform_15, window_bounds = array<i64: 3, 64, 128>}, {pipeline_mode = #tpu.pipeline_mode<synchronous>, transform_indices = @transform_16, window_bounds = array<i64: 1, 128>}, {pipeline_mode = #tpu.pipeline_mode<synchronous>, transform_indices = @transform_17, window_bounds = array<i64: 3, 4, 4>}, {pipeline_mode = #tpu.pipeline_mode<synchronous>, transform_indices = @transform_18, window_bounds = array<i64: 128, 64>}, {pipeline_mode = #tpu.pipeline_mode<synchronous>, transform_indices = @transform_19, window_bounds = array<i64: 128, 64>}, {pipeline_mode = #tpu.pipeline_mode<synchronous>, transform_indices = @transform_20, window_bounds = array<i64: 2, 4>}, {pipeline_mode = #tpu.pipeline_mode<synchronous>, transform_indices = @transform_21, window_bounds = array<i64: 2, 4>}, {pipeline_mode = #tpu.pipeline_mode<synchronous>, transform_indices = @transform_22, window_bounds = array<i64: 6, 64, 16>}, {pipeline_mode = #tpu.pipeline_mode<synchronous>, transform_indices = @transform_23, window_bounds = array<i64: 3, 2, 2>}, {pipeline_mode = #tpu.pipeline_mode<synchronous>, transform_indices = @transform_24, window_bounds = array<i64: 2, 2, 16>}, {pipeline_mode = #tpu.pipeline_mode<synchronous>, transform_indices = @transform_25, window_bounds = array<i64: 1, 16>}, {pipeline_mode = #tpu.pipeline_mode<synchronous>, transform_indices = @transform_26, window_bounds = array<i64: 2, 16, 64>}, {pipeline_mode = #tpu.pipeline_mode<synchronous>, transform_indices = @transform_27, window_bounds = array<i64: 1, 64>}, {pipeline_mode = #tpu.pipeline_mode<synchronous>, transform_indices = @transform_28, window_bounds = array<i64: 64, 4>}, {pipeline_mode = #tpu.pipeline_mode<synchronous>, transform_indices = @transform_29, window_bounds = array<i64: 1, 4>}, {transform_indices = @transform_30, window_bounds = array<i64: 1, 1, 4>}]} {
    %c0 = arith.constant 0 : index
    %c0_0 = arith.constant 0 : index
    %c0_1 = arith.constant 0 : index
    %0 = vector.load %arg1[%c0, %c0_0, %c0_1] : memref<1x16x16xf32, #tpu.memory_space<vmem>>, vector<1x16x16xf32>
    %1 = vector.shape_cast %0 : vector<1x16x16xf32> to vector<16x16xf32>
    %cst = arith.constant 0.000000e+00 : f32
    %2 = vector.broadcast %cst : f32 to vector<16x128xf32>
    %c0_2 = arith.constant 0 : index
    %c0_3 = arith.constant 0 : index
    %c0_4 = arith.constant 0 : index
    %3 = vector.load %arg2[%c0_2, %c0_3, %c0_4] : memref<5x16x128xf32, #tpu.memory_space<vmem>>, vector<1x16x128xf32>
    %4 = vector.shape_cast %3 : vector<1x16x128xf32> to vector<16x128xf32>
    %cst_5 = arith.constant dense<0.000000e+00> : vector<16x128xf32>
    %5 = tpu.matmul %1, %4, %cst_5 {dimension_numbers = #tpu.dot_dimension_numbers<[1], [0], [0], [1], [0, 0, 1, 1], [], []>} : vector<16x16xf32>, vector<16x128xf32>, vector<16x128xf32> -> vector<16x128xf32>
    %c0_6 = arith.constant 0 : index
    %c0_7 = arith.constant 0 : index
    %c0_8 = arith.constant 0 : index
    %6 = vector.load %arg4[%c0_6, %c0_7, %c0_8] : memref<5x16x16xf32, #tpu.memory_space<vmem>>, vector<1x16x16xf32>
    %7 = vector.shape_cast %6 : vector<1x16x16xf32> to vector<16x16xf32>
    %cst_9 = arith.constant dense<0.000000e+00> : vector<16x128xf32>
    %8 = tpu.matmul %7, %5, %cst_9 {dimension_numbers = #tpu.dot_dimension_numbers<[1], [0], [0], [1], [0, 0, 1, 1], [], []>} : vector<16x16xf32>, vector<16x128xf32>, vector<16x128xf32> -> vector<16x128xf32>
    %9 = arith.addf %2, %8 : vector<16x128xf32>
    %c1 = arith.constant 1 : index
    %c0_10 = arith.constant 0 : index
    %c0_11 = arith.constant 0 : index
    %10 = vector.load %arg2[%c1, %c0_10, %c0_11] : memref<5x16x128xf32, #tpu.memory_space<vmem>>, vector<1x16x128xf32>
    %11 = vector.shape_cast %10 : vector<1x16x128xf32> to vector<16x128xf32>
    %cst_12 = arith.constant dense<0.000000e+00> : vector<16x128xf32>
    %12 = tpu.matmul %1, %11, %cst_12 {dimension_numbers = #tpu.dot_dimension_numbers<[1], [0], [0], [1], [0, 0, 1, 1], [], []>} : vector<16x16xf32>, vector<16x128xf32>, vector<16x128xf32> -> vector<16x128xf32>
    %c1_13 = arith.constant 1 : index
    %c0_14 = arith.constant 0 : index
    %c0_15 = arith.constant 0 : index
    %13 = vector.load %arg4[%c1_13, %c0_14, %c0_15] : memref<5x16x16xf32, #tpu.memory_space<vmem>>, vector<1x16x16xf32>
    %14 = vector.shape_cast %13 : vector<1x16x16xf32> to vector<16x16xf32>
    %cst_16 = arith.constant dense<0.000000e+00> : vector<16x128xf32>
    %15 = tpu.matmul %14, %12, %cst_16 {dimension_numbers = #tpu.dot_dimension_numbers<[1], [0], [0], [1], [0, 0, 1, 1], [], []>} : vector<16x16xf32>, vector<16x128xf32>, vector<16x128xf32> -> vector<16x128xf32>
    %16 = arith.addf %9, %15 : vector<16x128xf32>
    %c2 = arith.constant 2 : index
    %c0_17 = arith.constant 0 : index
    %c0_18 = arith.constant 0 : index
    %17 = vector.load %arg2[%c2, %c0_17, %c0_18] : memref<5x16x128xf32, #tpu.memory_space<vmem>>, vector<1x16x128xf32>
    %18 = vector.shape_cast %17 : vector<1x16x128xf32> to vector<16x128xf32>
    %cst_19 = arith.constant dense<0.000000e+00> : vector<16x128xf32>
    %19 = tpu.matmul %1, %18, %cst_19 {dimension_numbers = #tpu.dot_dimension_numbers<[1], [0], [0], [1], [0, 0, 1, 1], [], []>} : vector<16x16xf32>, vector<16x128xf32>, vector<16x128xf32> -> vector<16x128xf32>
    %c2_20 = arith.constant 2 : index
    %c0_21 = arith.constant 0 : index
    %c0_22 = arith.constant 0 : index
    %20 = vector.load %arg4[%c2_20, %c0_21, %c0_22] : memref<5x16x16xf32, #tpu.memory_space<vmem>>, vector<1x16x16xf32>
    %21 = vector.shape_cast %20 : vector<1x16x16xf32> to vector<16x16xf32>
    %cst_23 = arith.constant dense<0.000000e+00> : vector<16x128xf32>
    %22 = tpu.matmul %21, %19, %cst_23 {dimension_numbers = #tpu.dot_dimension_numbers<[1], [0], [0], [1], [0, 0, 1, 1], [], []>} : vector<16x16xf32>, vector<16x128xf32>, vector<16x128xf32> -> vector<16x128xf32>
    %23 = arith.addf %16, %22 : vector<16x128xf32>
    %c3 = arith.constant 3 : index
    %c0_24 = arith.constant 0 : index
    %c0_25 = arith.constant 0 : index
    %24 = vector.load %arg2[%c3, %c0_24, %c0_25] : memref<5x16x128xf32, #tpu.memory_space<vmem>>, vector<1x16x128xf32>
    %25 = vector.shape_cast %24 : vector<1x16x128xf32> to vector<16x128xf32>
    %cst_26 = arith.constant dense<0.000000e+00> : vector<16x128xf32>
    %26 = tpu.matmul %1, %25, %cst_26 {dimension_numbers = #tpu.dot_dimension_numbers<[1], [0], [0], [1], [0, 0, 1, 1], [], []>} : vector<16x16xf32>, vector<16x128xf32>, vector<16x128xf32> -> vector<16x128xf32>
    %c3_27 = arith.constant 3 : index
    %c0_28 = arith.constant 0 : index
    %c0_29 = arith.constant 0 : index
    %27 = vector.load %arg4[%c3_27, %c0_28, %c0_29] : memref<5x16x16xf32, #tpu.memory_space<vmem>>, vector<1x16x16xf32>
    %28 = vector.shape_cast %27 : vector<1x16x16xf32> to vector<16x16xf32>
    %cst_30 = arith.constant dense<0.000000e+00> : vector<16x128xf32>
    %29 = tpu.matmul %28, %26, %cst_30 {dimension_numbers = #tpu.dot_dimension_numbers<[1], [0], [0], [1], [0, 0, 1, 1], [], []>} : vector<16x16xf32>, vector<16x128xf32>, vector<16x128xf32> -> vector<16x128xf32>
    %30 = arith.addf %23, %29 : vector<16x128xf32>
    %c4 = arith.constant 4 : index
    %c0_31 = arith.constant 0 : index
    %c0_32 = arith.constant 0 : index
    %31 = vector.load %arg2[%c4, %c0_31, %c0_32] : memref<5x16x128xf32, #tpu.memory_space<vmem>>, vector<1x16x128xf32>
    %32 = vector.shape_cast %31 : vector<1x16x128xf32> to vector<16x128xf32>
    %cst_33 = arith.constant dense<0.000000e+00> : vector<16x128xf32>
    %33 = tpu.matmul %1, %32, %cst_33 {dimension_numbers = #tpu.dot_dimension_numbers<[1], [0], [0], [1], [0, 0, 1, 1], [], []>} : vector<16x16xf32>, vector<16x128xf32>, vector<16x128xf32> -> vector<16x128xf32>
    %c4_34 = arith.constant 4 : index
    %c0_35 = arith.constant 0 : index
    %c0_36 = arith.constant 0 : index
    %34 = vector.load %arg4[%c4_34, %c0_35, %c0_36] : memref<5x16x16xf32, #tpu.memory_space<vmem>>, vector<1x16x16xf32>
    %35 = vector.shape_cast %34 : vector<1x16x16xf32> to vector<16x16xf32>
    %cst_37 = arith.constant dense<0.000000e+00> : vector<16x128xf32>
    %36 = tpu.matmul %35, %33, %cst_37 {dimension_numbers = #tpu.dot_dimension_numbers<[1], [0], [0], [1], [0, 0, 1, 1], [], []>} : vector<16x16xf32>, vector<16x128xf32>, vector<16x128xf32> -> vector<16x128xf32>
    %37 = arith.addf %30, %36 : vector<16x128xf32>
    %c0_38 = arith.constant 0 : index
    %c0_39 = arith.constant 0 : index
    %38 = vector.load %arg3[%c0_38, %c0_39] : memref<1x128xf32, #tpu.memory_space<vmem>>, vector<1x128xf32>
    %39 = vector.broadcast %38 : vector<1x128xf32> to vector<16x128xf32>
    %40 = arith.addf %37, %39 : vector<16x128xf32>
    %cst_40 = arith.constant 0.000000e+00 : f32
    %41 = vector.broadcast %cst_40 : f32 to vector<16x128xf32>
    %42 = arith.maximumf %40, %41 : vector<16x128xf32>
    %c0_41 = arith.constant 0 : index
    %c0_42 = arith.constant 0 : index
    %43 = vector.load %arg5[%c0_41, %c0_42] : memref<128x64xf32, #tpu.memory_space<vmem>>, vector<128x64xf32>
    %cst_43 = arith.constant dense<0.000000e+00> : vector<16x64xf32>
    %44 = tpu.matmul %42, %43, %cst_43 {dimension_numbers = #tpu.dot_dimension_numbers<[1], [0], [0], [1], [0, 0, 1, 1], [], []>} : vector<16x128xf32>, vector<128x64xf32>, vector<16x64xf32> -> vector<16x64xf32>
    %c0_44 = arith.constant 0 : index
    %c0_45 = arith.constant 0 : index
    %45 = vector.load %arg6[%c0_44, %c0_45] : memref<128x64xf32, #tpu.memory_space<vmem>>, vector<128x64xf32>
    %cst_46 = arith.constant dense<0.000000e+00> : vector<16x64xf32>
    %46 = tpu.matmul %42, %45, %cst_46 {dimension_numbers = #tpu.dot_dimension_numbers<[1], [0], [0], [1], [0, 0, 1, 1], [], []>} : vector<16x128xf32>, vector<128x64xf32>, vector<16x64xf32> -> vector<16x64xf32>
    %47 = arith.maximumf %44, %46 : vector<16x64xf32>
    %c0_47 = arith.constant 0 : index
    %c0_48 = arith.constant 0 : index
    %48 = vector.load %arg7[%c0_47, %c0_48] : memref<8x16xf32, #tpu.memory_space<vmem>>, vector<8x16xf32>
    %cst_49 = arith.constant dense<0.000000e+00> : vector<8x64xf32>
    %49 = tpu.matmul %48, %47, %cst_49 {dimension_numbers = #tpu.dot_dimension_numbers<[1], [0], [0], [1], [0, 0, 1, 1], [], []>} : vector<8x16xf32>, vector<16x64xf32>, vector<8x64xf32> -> vector<8x64xf32>
    %c0_50 = arith.constant 0 : index
    %c0_51 = arith.constant 0 : index
    %50 = vector.load %arg8[%c0_50, %c0_51] : memref<8x16xf32, #tpu.memory_space<vmem>>, vector<8x16xf32>
    %cst_52 = arith.constant dense<0.000000e+00> : vector<8x64xf32>
    %51 = tpu.matmul %50, %47, %cst_52 {dimension_numbers = #tpu.dot_dimension_numbers<[1], [0], [0], [1], [0, 0, 1, 1], [], []>} : vector<8x16xf32>, vector<16x64xf32>, vector<8x64xf32> -> vector<8x64xf32>
    %52 = arith.maximumf %49, %51 : vector<8x64xf32>
    %cst_53 = arith.constant 0.000000e+00 : f32
    %53 = vector.broadcast %cst_53 : f32 to vector<8x128xf32>
    %c0_54 = arith.constant 0 : index
    %c0_55 = arith.constant 0 : index
    %c0_56 = arith.constant 0 : index
    %54 = vector.load %arg9[%c0_54, %c0_55, %c0_56] : memref<5x64x128xf32, #tpu.memory_space<vmem>>, vector<1x64x128xf32>
    %55 = vector.shape_cast %54 : vector<1x64x128xf32> to vector<64x128xf32>
    %cst_57 = arith.constant dense<0.000000e+00> : vector<8x128xf32>
    %56 = tpu.matmul %52, %55, %cst_57 {dimension_numbers = #tpu.dot_dimension_numbers<[1], [0], [0], [1], [0, 0, 1, 1], [], []>} : vector<8x64xf32>, vector<64x128xf32>, vector<8x128xf32> -> vector<8x128xf32>
    %c0_58 = arith.constant 0 : index
    %c0_59 = arith.constant 0 : index
    %c0_60 = arith.constant 0 : index
    %57 = vector.load %arg11[%c0_58, %c0_59, %c0_60] : memref<5x8x8xf32, #tpu.memory_space<vmem>>, vector<1x8x8xf32>
    %58 = vector.shape_cast %57 : vector<1x8x8xf32> to vector<8x8xf32>
    %cst_61 = arith.constant dense<0.000000e+00> : vector<8x128xf32>
    %59 = tpu.matmul %58, %56, %cst_61 {dimension_numbers = #tpu.dot_dimension_numbers<[1], [0], [0], [1], [0, 0, 1, 1], [], []>} : vector<8x8xf32>, vector<8x128xf32>, vector<8x128xf32> -> vector<8x128xf32>
    %60 = arith.addf %53, %59 : vector<8x128xf32>
    %c1_62 = arith.constant 1 : index
    %c0_63 = arith.constant 0 : index
    %c0_64 = arith.constant 0 : index
    %61 = vector.load %arg9[%c1_62, %c0_63, %c0_64] : memref<5x64x128xf32, #tpu.memory_space<vmem>>, vector<1x64x128xf32>
    %62 = vector.shape_cast %61 : vector<1x64x128xf32> to vector<64x128xf32>
    %cst_65 = arith.constant dense<0.000000e+00> : vector<8x128xf32>
    %63 = tpu.matmul %52, %62, %cst_65 {dimension_numbers = #tpu.dot_dimension_numbers<[1], [0], [0], [1], [0, 0, 1, 1], [], []>} : vector<8x64xf32>, vector<64x128xf32>, vector<8x128xf32> -> vector<8x128xf32>
    %c1_66 = arith.constant 1 : index
    %c0_67 = arith.constant 0 : index
    %c0_68 = arith.constant 0 : index
    %64 = vector.load %arg11[%c1_66, %c0_67, %c0_68] : memref<5x8x8xf32, #tpu.memory_space<vmem>>, vector<1x8x8xf32>
    %65 = vector.shape_cast %64 : vector<1x8x8xf32> to vector<8x8xf32>
    %cst_69 = arith.constant dense<0.000000e+00> : vector<8x128xf32>
    %66 = tpu.matmul %65, %63, %cst_69 {dimension_numbers = #tpu.dot_dimension_numbers<[1], [0], [0], [1], [0, 0, 1, 1], [], []>} : vector<8x8xf32>, vector<8x128xf32>, vector<8x128xf32> -> vector<8x128xf32>
    %67 = arith.addf %60, %66 : vector<8x128xf32>
    %c2_70 = arith.constant 2 : index
    %c0_71 = arith.constant 0 : index
    %c0_72 = arith.constant 0 : index
    %68 = vector.load %arg9[%c2_70, %c0_71, %c0_72] : memref<5x64x128xf32, #tpu.memory_space<vmem>>, vector<1x64x128xf32>
    %69 = vector.shape_cast %68 : vector<1x64x128xf32> to vector<64x128xf32>
    %cst_73 = arith.constant dense<0.000000e+00> : vector<8x128xf32>
    %70 = tpu.matmul %52, %69, %cst_73 {dimension_numbers = #tpu.dot_dimension_numbers<[1], [0], [0], [1], [0, 0, 1, 1], [], []>} : vector<8x64xf32>, vector<64x128xf32>, vector<8x128xf32> -> vector<8x128xf32>
    %c2_74 = arith.constant 2 : index
    %c0_75 = arith.constant 0 : index
    %c0_76 = arith.constant 0 : index
    %71 = vector.load %arg11[%c2_74, %c0_75, %c0_76] : memref<5x8x8xf32, #tpu.memory_space<vmem>>, vector<1x8x8xf32>
    %72 = vector.shape_cast %71 : vector<1x8x8xf32> to vector<8x8xf32>
    %cst_77 = arith.constant dense<0.000000e+00> : vector<8x128xf32>
    %73 = tpu.matmul %72, %70, %cst_77 {dimension_numbers = #tpu.dot_dimension_numbers<[1], [0], [0], [1], [0, 0, 1, 1], [], []>} : vector<8x8xf32>, vector<8x128xf32>, vector<8x128xf32> -> vector<8x128xf32>
    %74 = arith.addf %67, %73 : vector<8x128xf32>
    %c3_78 = arith.constant 3 : index
    %c0_79 = arith.constant 0 : index
    %c0_80 = arith.constant 0 : index
    %75 = vector.load %arg9[%c3_78, %c0_79, %c0_80] : memref<5x64x128xf32, #tpu.memory_space<vmem>>, vector<1x64x128xf32>
    %76 = vector.shape_cast %75 : vector<1x64x128xf32> to vector<64x128xf32>
    %cst_81 = arith.constant dense<0.000000e+00> : vector<8x128xf32>
    %77 = tpu.matmul %52, %76, %cst_81 {dimension_numbers = #tpu.dot_dimension_numbers<[1], [0], [0], [1], [0, 0, 1, 1], [], []>} : vector<8x64xf32>, vector<64x128xf32>, vector<8x128xf32> -> vector<8x128xf32>
    %c3_82 = arith.constant 3 : index
    %c0_83 = arith.constant 0 : index
    %c0_84 = arith.constant 0 : index
    %78 = vector.load %arg11[%c3_82, %c0_83, %c0_84] : memref<5x8x8xf32, #tpu.memory_space<vmem>>, vector<1x8x8xf32>
    %79 = vector.shape_cast %78 : vector<1x8x8xf32> to vector<8x8xf32>
    %cst_85 = arith.constant dense<0.000000e+00> : vector<8x128xf32>
    %80 = tpu.matmul %79, %77, %cst_85 {dimension_numbers = #tpu.dot_dimension_numbers<[1], [0], [0], [1], [0, 0, 1, 1], [], []>} : vector<8x8xf32>, vector<8x128xf32>, vector<8x128xf32> -> vector<8x128xf32>
    %81 = arith.addf %74, %80 : vector<8x128xf32>
    %c4_86 = arith.constant 4 : index
    %c0_87 = arith.constant 0 : index
    %c0_88 = arith.constant 0 : index
    %82 = vector.load %arg9[%c4_86, %c0_87, %c0_88] : memref<5x64x128xf32, #tpu.memory_space<vmem>>, vector<1x64x128xf32>
    %83 = vector.shape_cast %82 : vector<1x64x128xf32> to vector<64x128xf32>
    %cst_89 = arith.constant dense<0.000000e+00> : vector<8x128xf32>
    %84 = tpu.matmul %52, %83, %cst_89 {dimension_numbers = #tpu.dot_dimension_numbers<[1], [0], [0], [1], [0, 0, 1, 1], [], []>} : vector<8x64xf32>, vector<64x128xf32>, vector<8x128xf32> -> vector<8x128xf32>
    %c4_90 = arith.constant 4 : index
    %c0_91 = arith.constant 0 : index
    %c0_92 = arith.constant 0 : index
    %85 = vector.load %arg11[%c4_90, %c0_91, %c0_92] : memref<5x8x8xf32, #tpu.memory_space<vmem>>, vector<1x8x8xf32>
    %86 = vector.shape_cast %85 : vector<1x8x8xf32> to vector<8x8xf32>
    %cst_93 = arith.constant dense<0.000000e+00> : vector<8x128xf32>
    %87 = tpu.matmul %86, %84, %cst_93 {dimension_numbers = #tpu.dot_dimension_numbers<[1], [0], [0], [1], [0, 0, 1, 1], [], []>} : vector<8x8xf32>, vector<8x128xf32>, vector<8x128xf32> -> vector<8x128xf32>
    %88 = arith.addf %81, %87 : vector<8x128xf32>
    %c0_94 = arith.constant 0 : index
    %c0_95 = arith.constant 0 : index
    %89 = vector.load %arg10[%c0_94, %c0_95] : memref<1x128xf32, #tpu.memory_space<vmem>>, vector<1x128xf32>
    %90 = vector.broadcast %89 : vector<1x128xf32> to vector<8x128xf32>
    %91 = arith.addf %88, %90 : vector<8x128xf32>
    %cst_96 = arith.constant 0.000000e+00 : f32
    %92 = vector.broadcast %cst_96 : f32 to vector<8x128xf32>
    %93 = arith.maximumf %91, %92 : vector<8x128xf32>
    %c0_97 = arith.constant 0 : index
    %c0_98 = arith.constant 0 : index
    %94 = vector.load %arg12[%c0_97, %c0_98] : memref<128x64xf32, #tpu.memory_space<vmem>>, vector<128x64xf32>
    %cst_99 = arith.constant dense<0.000000e+00> : vector<8x64xf32>
    %95 = tpu.matmul %93, %94, %cst_99 {dimension_numbers = #tpu.dot_dimension_numbers<[1], [0], [0], [1], [0, 0, 1, 1], [], []>} : vector<8x128xf32>, vector<128x64xf32>, vector<8x64xf32> -> vector<8x64xf32>
    %c0_100 = arith.constant 0 : index
    %c0_101 = arith.constant 0 : index
    %96 = vector.load %arg13[%c0_100, %c0_101] : memref<128x64xf32, #tpu.memory_space<vmem>>, vector<128x64xf32>
    %cst_102 = arith.constant dense<0.000000e+00> : vector<8x64xf32>
    %97 = tpu.matmul %93, %96, %cst_102 {dimension_numbers = #tpu.dot_dimension_numbers<[1], [0], [0], [1], [0, 0, 1, 1], [], []>} : vector<8x128xf32>, vector<128x64xf32>, vector<8x64xf32> -> vector<8x64xf32>
    %98 = arith.maximumf %95, %97 : vector<8x64xf32>
    %c0_103 = arith.constant 0 : index
    %c0_104 = arith.constant 0 : index
    %99 = vector.load %arg14[%c0_103, %c0_104] : memref<4x8xf32, #tpu.memory_space<vmem>>, vector<4x8xf32>
    %cst_105 = arith.constant dense<0.000000e+00> : vector<4x64xf32>
    %100 = tpu.matmul %99, %98, %cst_105 {dimension_numbers = #tpu.dot_dimension_numbers<[1], [0], [0], [1], [0, 0, 1, 1], [], []>} : vector<4x8xf32>, vector<8x64xf32>, vector<4x64xf32> -> vector<4x64xf32>
    %c0_106 = arith.constant 0 : index
    %c0_107 = arith.constant 0 : index
    %101 = vector.load %arg15[%c0_106, %c0_107] : memref<4x8xf32, #tpu.memory_space<vmem>>, vector<4x8xf32>
    %cst_108 = arith.constant dense<0.000000e+00> : vector<4x64xf32>
    %102 = tpu.matmul %101, %98, %cst_108 {dimension_numbers = #tpu.dot_dimension_numbers<[1], [0], [0], [1], [0, 0, 1, 1], [], []>} : vector<4x8xf32>, vector<8x64xf32>, vector<4x64xf32> -> vector<4x64xf32>
    %103 = arith.maximumf %100, %102 : vector<4x64xf32>
    %cst_109 = arith.constant 0.000000e+00 : f32
    %104 = vector.broadcast %cst_109 : f32 to vector<4x128xf32>
    %c0_110 = arith.constant 0 : index
    %c0_111 = arith.constant 0 : index
    %c0_112 = arith.constant 0 : index
    %105 = vector.load %arg16[%c0_110, %c0_111, %c0_112] : memref<3x64x128xf32, #tpu.memory_space<vmem>>, vector<1x64x128xf32>
    %106 = vector.shape_cast %105 : vector<1x64x128xf32> to vector<64x128xf32>
    %cst_113 = arith.constant dense<0.000000e+00> : vector<4x128xf32>
    %107 = tpu.matmul %103, %106, %cst_113 {dimension_numbers = #tpu.dot_dimension_numbers<[1], [0], [0], [1], [0, 0, 1, 1], [], []>} : vector<4x64xf32>, vector<64x128xf32>, vector<4x128xf32> -> vector<4x128xf32>
    %c0_114 = arith.constant 0 : index
    %c0_115 = arith.constant 0 : index
    %c0_116 = arith.constant 0 : index
    %108 = vector.load %arg18[%c0_114, %c0_115, %c0_116] : memref<3x4x4xf32, #tpu.memory_space<vmem>>, vector<1x4x4xf32>
    %109 = vector.shape_cast %108 : vector<1x4x4xf32> to vector<4x4xf32>
    %cst_117 = arith.constant dense<0.000000e+00> : vector<4x128xf32>
    %110 = tpu.matmul %109, %107, %cst_117 {dimension_numbers = #tpu.dot_dimension_numbers<[1], [0], [0], [1], [0, 0, 1, 1], [], []>} : vector<4x4xf32>, vector<4x128xf32>, vector<4x128xf32> -> vector<4x128xf32>
    %111 = arith.addf %104, %110 : vector<4x128xf32>
    %c1_118 = arith.constant 1 : index
    %c0_119 = arith.constant 0 : index
    %c0_120 = arith.constant 0 : index
    %112 = vector.load %arg16[%c1_118, %c0_119, %c0_120] : memref<3x64x128xf32, #tpu.memory_space<vmem>>, vector<1x64x128xf32>
    %113 = vector.shape_cast %112 : vector<1x64x128xf32> to vector<64x128xf32>
    %cst_121 = arith.constant dense<0.000000e+00> : vector<4x128xf32>
    %114 = tpu.matmul %103, %113, %cst_121 {dimension_numbers = #tpu.dot_dimension_numbers<[1], [0], [0], [1], [0, 0, 1, 1], [], []>} : vector<4x64xf32>, vector<64x128xf32>, vector<4x128xf32> -> vector<4x128xf32>
    %c1_122 = arith.constant 1 : index
    %c0_123 = arith.constant 0 : index
    %c0_124 = arith.constant 0 : index
    %115 = vector.load %arg18[%c1_122, %c0_123, %c0_124] : memref<3x4x4xf32, #tpu.memory_space<vmem>>, vector<1x4x4xf32>
    %116 = vector.shape_cast %115 : vector<1x4x4xf32> to vector<4x4xf32>
    %cst_125 = arith.constant dense<0.000000e+00> : vector<4x128xf32>
    %117 = tpu.matmul %116, %114, %cst_125 {dimension_numbers = #tpu.dot_dimension_numbers<[1], [0], [0], [1], [0, 0, 1, 1], [], []>} : vector<4x4xf32>, vector<4x128xf32>, vector<4x128xf32> -> vector<4x128xf32>
    %118 = arith.addf %111, %117 : vector<4x128xf32>
    %c2_126 = arith.constant 2 : index
    %c0_127 = arith.constant 0 : index
    %c0_128 = arith.constant 0 : index
    %119 = vector.load %arg16[%c2_126, %c0_127, %c0_128] : memref<3x64x128xf32, #tpu.memory_space<vmem>>, vector<1x64x128xf32>
    %120 = vector.shape_cast %119 : vector<1x64x128xf32> to vector<64x128xf32>
    %cst_129 = arith.constant dense<0.000000e+00> : vector<4x128xf32>
    %121 = tpu.matmul %103, %120, %cst_129 {dimension_numbers = #tpu.dot_dimension_numbers<[1], [0], [0], [1], [0, 0, 1, 1], [], []>} : vector<4x64xf32>, vector<64x128xf32>, vector<4x128xf32> -> vector<4x128xf32>
    %c2_130 = arith.constant 2 : index
    %c0_131 = arith.constant 0 : index
    %c0_132 = arith.constant 0 : index
    %122 = vector.load %arg18[%c2_130, %c0_131, %c0_132] : memref<3x4x4xf32, #tpu.memory_space<vmem>>, vector<1x4x4xf32>
    %123 = vector.shape_cast %122 : vector<1x4x4xf32> to vector<4x4xf32>
    %cst_133 = arith.constant dense<0.000000e+00> : vector<4x128xf32>
    %124 = tpu.matmul %123, %121, %cst_133 {dimension_numbers = #tpu.dot_dimension_numbers<[1], [0], [0], [1], [0, 0, 1, 1], [], []>} : vector<4x4xf32>, vector<4x128xf32>, vector<4x128xf32> -> vector<4x128xf32>
    %125 = arith.addf %118, %124 : vector<4x128xf32>
    %c0_134 = arith.constant 0 : index
    %c0_135 = arith.constant 0 : index
    %126 = vector.load %arg17[%c0_134, %c0_135] : memref<1x128xf32, #tpu.memory_space<vmem>>, vector<1x128xf32>
    %127 = vector.broadcast %126 : vector<1x128xf32> to vector<4x128xf32>
    %128 = arith.addf %125, %127 : vector<4x128xf32>
    %cst_136 = arith.constant 0.000000e+00 : f32
    %129 = vector.broadcast %cst_136 : f32 to vector<4x128xf32>
    %130 = arith.maximumf %128, %129 : vector<4x128xf32>
    %c0_137 = arith.constant 0 : index
    %c0_138 = arith.constant 0 : index
    %131 = vector.load %arg19[%c0_137, %c0_138] : memref<128x64xf32, #tpu.memory_space<vmem>>, vector<128x64xf32>
    %cst_139 = arith.constant dense<0.000000e+00> : vector<4x64xf32>
    %132 = tpu.matmul %130, %131, %cst_139 {dimension_numbers = #tpu.dot_dimension_numbers<[1], [0], [0], [1], [0, 0, 1, 1], [], []>} : vector<4x128xf32>, vector<128x64xf32>, vector<4x64xf32> -> vector<4x64xf32>
    %c0_140 = arith.constant 0 : index
    %c0_141 = arith.constant 0 : index
    %133 = vector.load %arg20[%c0_140, %c0_141] : memref<128x64xf32, #tpu.memory_space<vmem>>, vector<128x64xf32>
    %cst_142 = arith.constant dense<0.000000e+00> : vector<4x64xf32>
    %134 = tpu.matmul %130, %133, %cst_142 {dimension_numbers = #tpu.dot_dimension_numbers<[1], [0], [0], [1], [0, 0, 1, 1], [], []>} : vector<4x128xf32>, vector<128x64xf32>, vector<4x64xf32> -> vector<4x64xf32>
    %135 = arith.maximumf %132, %134 : vector<4x64xf32>
    %c0_143 = arith.constant 0 : index
    %c0_144 = arith.constant 0 : index
    %136 = vector.load %arg21[%c0_143, %c0_144] : memref<2x4xf32, #tpu.memory_space<vmem>>, vector<2x4xf32>
    %cst_145 = arith.constant dense<0.000000e+00> : vector<2x64xf32>
    %137 = tpu.matmul %136, %135, %cst_145 {dimension_numbers = #tpu.dot_dimension_numbers<[1], [0], [0], [1], [0, 0, 1, 1], [], []>} : vector<2x4xf32>, vector<4x64xf32>, vector<2x64xf32> -> vector<2x64xf32>
    %c0_146 = arith.constant 0 : index
    %c0_147 = arith.constant 0 : index
    %138 = vector.load %arg22[%c0_146, %c0_147] : memref<2x4xf32, #tpu.memory_space<vmem>>, vector<2x4xf32>
    %cst_148 = arith.constant dense<0.000000e+00> : vector<2x64xf32>
    %139 = tpu.matmul %138, %135, %cst_148 {dimension_numbers = #tpu.dot_dimension_numbers<[1], [0], [0], [1], [0, 0, 1, 1], [], []>} : vector<2x4xf32>, vector<4x64xf32>, vector<2x64xf32> -> vector<2x64xf32>
    %140 = arith.maximumf %137, %139 : vector<2x64xf32>
    %c0_149 = arith.constant 0 : index
    %c0_150 = arith.constant 0 : index
    %c0_151 = arith.constant 0 : index
    %141 = vector.load %arg24[%c0_149, %c0_150, %c0_151] : memref<3x2x2xf32, #tpu.memory_space<vmem>>, vector<1x2x2xf32>
    %142 = vector.shape_cast %141 : vector<1x2x2xf32> to vector<2x2xf32>
    %cst_152 = arith.constant dense<0.000000e+00> : vector<2x64xf32>
    %143 = tpu.matmul %142, %140, %cst_152 {dimension_numbers = #tpu.dot_dimension_numbers<[1], [0], [0], [1], [0, 0, 1, 1], [], []>} : vector<2x2xf32>, vector<2x64xf32>, vector<2x64xf32> -> vector<2x64xf32>
    %c1_153 = arith.constant 1 : index
    %c0_154 = arith.constant 0 : index
    %c0_155 = arith.constant 0 : index
    %144 = vector.load %arg24[%c1_153, %c0_154, %c0_155] : memref<3x2x2xf32, #tpu.memory_space<vmem>>, vector<1x2x2xf32>
    %145 = vector.shape_cast %144 : vector<1x2x2xf32> to vector<2x2xf32>
    %cst_156 = arith.constant dense<0.000000e+00> : vector<2x64xf32>
    %146 = tpu.matmul %145, %140, %cst_156 {dimension_numbers = #tpu.dot_dimension_numbers<[1], [0], [0], [1], [0, 0, 1, 1], [], []>} : vector<2x2xf32>, vector<2x64xf32>, vector<2x64xf32> -> vector<2x64xf32>
    %c2_157 = arith.constant 2 : index
    %c0_158 = arith.constant 0 : index
    %c0_159 = arith.constant 0 : index
    %147 = vector.load %arg24[%c2_157, %c0_158, %c0_159] : memref<3x2x2xf32, #tpu.memory_space<vmem>>, vector<1x2x2xf32>
    %148 = vector.shape_cast %147 : vector<1x2x2xf32> to vector<2x2xf32>
    %cst_160 = arith.constant dense<0.000000e+00> : vector<2x64xf32>
    %149 = tpu.matmul %148, %140, %cst_160 {dimension_numbers = #tpu.dot_dimension_numbers<[1], [0], [0], [1], [0, 0, 1, 1], [], []>} : vector<2x2xf32>, vector<2x64xf32>, vector<2x64xf32> -> vector<2x64xf32>
    %cst_161 = arith.constant 0.000000e+00 : f32
    %150 = vector.broadcast %cst_161 : f32 to vector<2x16xf32>
    %cst_162 = arith.constant 0.000000e+00 : f32
    %151 = vector.broadcast %cst_162 : f32 to vector<2x16xf32>
    %c0_163 = arith.constant 0 : index
    %c0_164 = arith.constant 0 : index
    %c0_165 = arith.constant 0 : index
    %152 = vector.load %arg23[%c0_163, %c0_164, %c0_165] : memref<6x64x16xf32, #tpu.memory_space<vmem>>, vector<1x64x16xf32>
    %153 = vector.shape_cast %152 : vector<1x64x16xf32> to vector<64x16xf32>
    %cst_166 = arith.constant dense<0.000000e+00> : vector<2x16xf32>
    %154 = tpu.matmul %143, %153, %cst_166 {dimension_numbers = #tpu.dot_dimension_numbers<[1], [0], [0], [1], [0, 0, 1, 1], [], []>} : vector<2x64xf32>, vector<64x16xf32>, vector<2x16xf32> -> vector<2x16xf32>
    %155 = arith.addf %151, %154 : vector<2x16xf32>
    %c1_167 = arith.constant 1 : index
    %c0_168 = arith.constant 0 : index
    %c0_169 = arith.constant 0 : index
    %156 = vector.load %arg23[%c1_167, %c0_168, %c0_169] : memref<6x64x16xf32, #tpu.memory_space<vmem>>, vector<1x64x16xf32>
    %157 = vector.shape_cast %156 : vector<1x64x16xf32> to vector<64x16xf32>
    %cst_170 = arith.constant dense<0.000000e+00> : vector<2x16xf32>
    %158 = tpu.matmul %146, %157, %cst_170 {dimension_numbers = #tpu.dot_dimension_numbers<[1], [0], [0], [1], [0, 0, 1, 1], [], []>} : vector<2x64xf32>, vector<64x16xf32>, vector<2x16xf32> -> vector<2x16xf32>
    %159 = arith.addf %155, %158 : vector<2x16xf32>
    %c2_171 = arith.constant 2 : index
    %c0_172 = arith.constant 0 : index
    %c0_173 = arith.constant 0 : index
    %160 = vector.load %arg23[%c2_171, %c0_172, %c0_173] : memref<6x64x16xf32, #tpu.memory_space<vmem>>, vector<1x64x16xf32>
    %161 = vector.shape_cast %160 : vector<1x64x16xf32> to vector<64x16xf32>
    %cst_174 = arith.constant dense<0.000000e+00> : vector<2x16xf32>
    %162 = tpu.matmul %149, %161, %cst_174 {dimension_numbers = #tpu.dot_dimension_numbers<[1], [0], [0], [1], [0, 0, 1, 1], [], []>} : vector<2x64xf32>, vector<64x16xf32>, vector<2x16xf32> -> vector<2x16xf32>
    %163 = arith.addf %159, %162 : vector<2x16xf32>
    %c0_175 = arith.constant 0 : index
    %c0_176 = arith.constant 0 : index
    %c0_177 = arith.constant 0 : index
    %164 = vector.load %arg25[%c0_175, %c0_176, %c0_177] : memref<2x2x16xf32, #tpu.memory_space<vmem>>, vector<1x2x16xf32>
    %165 = vector.shape_cast %164 : vector<1x2x16xf32> to vector<2x16xf32>
    %166 = arith.mulf %165, %163 : vector<2x16xf32>
    %167 = arith.addf %150, %166 : vector<2x16xf32>
    %cst_178 = arith.constant 0.000000e+00 : f32
    %168 = vector.broadcast %cst_178 : f32 to vector<2x16xf32>
    %c3_179 = arith.constant 3 : index
    %c0_180 = arith.constant 0 : index
    %c0_181 = arith.constant 0 : index
    %169 = vector.load %arg23[%c3_179, %c0_180, %c0_181] : memref<6x64x16xf32, #tpu.memory_space<vmem>>, vector<1x64x16xf32>
    %170 = vector.shape_cast %169 : vector<1x64x16xf32> to vector<64x16xf32>
    %cst_182 = arith.constant dense<0.000000e+00> : vector<2x16xf32>
    %171 = tpu.matmul %143, %170, %cst_182 {dimension_numbers = #tpu.dot_dimension_numbers<[1], [0], [0], [1], [0, 0, 1, 1], [], []>} : vector<2x64xf32>, vector<64x16xf32>, vector<2x16xf32> -> vector<2x16xf32>
    %172 = arith.addf %168, %171 : vector<2x16xf32>
    %c4_183 = arith.constant 4 : index
    %c0_184 = arith.constant 0 : index
    %c0_185 = arith.constant 0 : index
    %173 = vector.load %arg23[%c4_183, %c0_184, %c0_185] : memref<6x64x16xf32, #tpu.memory_space<vmem>>, vector<1x64x16xf32>
    %174 = vector.shape_cast %173 : vector<1x64x16xf32> to vector<64x16xf32>
    %cst_186 = arith.constant dense<0.000000e+00> : vector<2x16xf32>
    %175 = tpu.matmul %146, %174, %cst_186 {dimension_numbers = #tpu.dot_dimension_numbers<[1], [0], [0], [1], [0, 0, 1, 1], [], []>} : vector<2x64xf32>, vector<64x16xf32>, vector<2x16xf32> -> vector<2x16xf32>
    %176 = arith.addf %172, %175 : vector<2x16xf32>
    %c5 = arith.constant 5 : index
    %c0_187 = arith.constant 0 : index
    %c0_188 = arith.constant 0 : index
    %177 = vector.load %arg23[%c5, %c0_187, %c0_188] : memref<6x64x16xf32, #tpu.memory_space<vmem>>, vector<1x64x16xf32>
    %178 = vector.shape_cast %177 : vector<1x64x16xf32> to vector<64x16xf32>
    %cst_189 = arith.constant dense<0.000000e+00> : vector<2x16xf32>
    %179 = tpu.matmul %149, %178, %cst_189 {dimension_numbers = #tpu.dot_dimension_numbers<[1], [0], [0], [1], [0, 0, 1, 1], [], []>} : vector<2x64xf32>, vector<64x16xf32>, vector<2x16xf32> -> vector<2x16xf32>
    %180 = arith.addf %176, %179 : vector<2x16xf32>
    %c1_190 = arith.constant 1 : index
    %c0_191 = arith.constant 0 : index
    %c0_192 = arith.constant 0 : index
    %181 = vector.load %arg25[%c1_190, %c0_191, %c0_192] : memref<2x2x16xf32, #tpu.memory_space<vmem>>, vector<1x2x16xf32>
    %182 = vector.shape_cast %181 : vector<1x2x16xf32> to vector<2x16xf32>
    %183 = arith.mulf %182, %180 : vector<2x16xf32>
    %184 = arith.addf %167, %183 : vector<2x16xf32>
    %c0_193 = arith.constant 0 : index
    %c0_194 = arith.constant 0 : index
    %185 = vector.load %arg26[%c0_193, %c0_194] : memref<1x16xf32, #tpu.memory_space<vmem>>, vector<1x16xf32>
    %186 = vector.broadcast %185 : vector<1x16xf32> to vector<2x16xf32>
    %187 = arith.addf %184, %186 : vector<2x16xf32>
    %cst_195 = arith.constant 0.000000e+00 : f32
    %188 = vector.broadcast %cst_195 : f32 to vector<2x16xf32>
    %189 = arith.maximumf %187, %188 : vector<2x16xf32>
    %c0_196 = arith.constant 0 : index
    %c0_197 = arith.constant 0 : index
    %190 = vector.load %arg28[%c0_196, %c0_197] : memref<1x64xf32, #tpu.memory_space<vmem>>, vector<1x64xf32>
    %191 = vector.extract_strided_slice %189 {offsets = [0, 0], sizes = [1, 16], strides = [1, 1]} : vector<2x16xf32> to vector<1x16xf32>
    %c0_198 = arith.constant 0 : index
    %c0_199 = arith.constant 0 : index
    %c0_200 = arith.constant 0 : index
    %192 = vector.load %arg27[%c0_198, %c0_199, %c0_200] : memref<2x16x64xf32, #tpu.memory_space<vmem>>, vector<1x16x64xf32>
    %193 = vector.shape_cast %192 : vector<1x16x64xf32> to vector<16x64xf32>
    %cst_201 = arith.constant dense<0.000000e+00> : vector<1x64xf32>
    %194 = tpu.matmul %191, %193, %cst_201 {dimension_numbers = #tpu.dot_dimension_numbers<[1], [0], [0], [1], [0, 0, 1, 1], [], []>} : vector<1x16xf32>, vector<16x64xf32>, vector<1x64xf32> -> vector<1x64xf32>
    %195 = arith.addf %190, %194 : vector<1x64xf32>
    %196 = vector.extract_strided_slice %189 {offsets = [1, 0], sizes = [1, 16], strides = [1, 1]} : vector<2x16xf32> to vector<1x16xf32>
    %c1_202 = arith.constant 1 : index
    %c0_203 = arith.constant 0 : index
    %c0_204 = arith.constant 0 : index
    %197 = vector.load %arg27[%c1_202, %c0_203, %c0_204] : memref<2x16x64xf32, #tpu.memory_space<vmem>>, vector<1x16x64xf32>
    %198 = vector.shape_cast %197 : vector<1x16x64xf32> to vector<16x64xf32>
    %cst_205 = arith.constant dense<0.000000e+00> : vector<1x64xf32>
    %199 = tpu.matmul %196, %198, %cst_205 {dimension_numbers = #tpu.dot_dimension_numbers<[1], [0], [0], [1], [0, 0, 1, 1], [], []>} : vector<1x16xf32>, vector<16x64xf32>, vector<1x64xf32> -> vector<1x64xf32>
    %200 = arith.addf %195, %199 : vector<1x64xf32>
    %cst_206 = arith.constant 0.000000e+00 : f32
    %201 = vector.broadcast %cst_206 : f32 to vector<1x64xf32>
    %202 = arith.maximumf %200, %201 : vector<1x64xf32>
    %c0_207 = arith.constant 0 : index
    %c0_208 = arith.constant 0 : index
    %203 = vector.load %arg29[%c0_207, %c0_208] : memref<64x4xf32, #tpu.memory_space<vmem>>, vector<64x4xf32>
    %cst_209 = arith.constant dense<0.000000e+00> : vector<1x4xf32>
    %204 = tpu.matmul %202, %203, %cst_209 {dimension_numbers = #tpu.dot_dimension_numbers<[1], [0], [0], [1], [0, 0, 1, 1], [], []>} : vector<1x64xf32>, vector<64x4xf32>, vector<1x4xf32> -> vector<1x4xf32>
    %c0_210 = arith.constant 0 : index
    %c0_211 = arith.constant 0 : index
    %205 = vector.load %arg30[%c0_210, %c0_211] : memref<1x4xf32, #tpu.memory_space<vmem>>, vector<1x4xf32>
    %206 = arith.addf %204, %205 : vector<1x4xf32>
    %c0_212 = arith.constant 0 : index
    %c0_213 = arith.constant 0 : index
    %c0_214 = arith.constant 0 : index
    %207 = vector.load %arg31[%c0_212, %c0_213, %c0_214] : memref<1x1x4xf32, #tpu.memory_space<vmem>>, vector<1x1x4xf32>
    %208 = vector.shape_cast %207 : vector<1x1x4xf32> to vector<1x4xf32>
    %209 = vector.shape_cast %206 : vector<1x4xf32> to vector<1x1x4xf32>
    tpu.vector_store %arg31[%c0_212, %c0_213, %c0_214], %209 {strides = array<i32>} : memref<1x1x4xf32, #tpu.memory_space<vmem>>, vector<1x1x4xf32>,
    return
  }
  func.func @transform_0(%arg0: i32) -> (i32, i32, i32) {
    %c0_i32 = arith.constant 0 : i32
    %c0_i32_0 = arith.constant 0 : i32
    %c0_i32_1 = arith.constant 0 : i32
    return %arg0, %c0_i32, %c0_i32_0 : i32, i32, i32
  }
  func.func @transform_1(%arg0: i32) -> (i32, i32, i32) {
    %c0_i32 = arith.constant 0 : i32
    %c0_i32_0 = arith.constant 0 : i32
    %c0_i32_1 = arith.constant 0 : i32
    %c0_i32_2 = arith.constant 0 : i32
    return %c0_i32, %c0_i32_0, %c0_i32_1 : i32, i32, i32
  }
  func.func @transform_2(%arg0: i32) -> (i32, i32) {
    %c0_i32 = arith.constant 0 : i32
    %c0_i32_0 = arith.constant 0 : i32
    %c0_i32_1 = arith.constant 0 : i32
    return %c0_i32, %c0_i32_0 : i32, i32
  }
  func.func @transform_3(%arg0: i32) -> (i32, i32, i32) {
    %c0_i32 = arith.constant 0 : i32
    %c0_i32_0 = arith.constant 0 : i32
    %c0_i32_1 = arith.constant 0 : i32
    %c0_i32_2 = arith.constant 0 : i32
    return %c0_i32, %c0_i32_0, %c0_i32_1 : i32, i32, i32
  }
  func.func @transform_4(%arg0: i32) -> (i32, i32) {
    %c0_i32 = arith.constant 0 : i32
    %c0_i32_0 = arith.constant 0 : i32
    %c0_i32_1 = arith.constant 0 : i32
    return %c0_i32, %c0_i32_0 : i32, i32
  }
  func.func @transform_5(%arg0: i32) -> (i32, i32) {
    %c0_i32 = arith.constant 0 : i32
    %c0_i32_0 = arith.constant 0 : i32
    %c0_i32_1 = arith.constant 0 : i32
    return %c0_i32, %c0_i32_0 : i32, i32
  }
  func.func @transform_6(%arg0: i32) -> (i32, i32) {
    %c0_i32 = arith.constant 0 : i32
    %c0_i32_0 = arith.constant 0 : i32
    %c0_i32_1 = arith.constant 0 : i32
    return %c0_i32, %c0_i32_0 : i32, i32
  }
  func.func @transform_7(%arg0: i32) -> (i32, i32) {
    %c0_i32 = arith.constant 0 : i32
    %c0_i32_0 = arith.constant 0 : i32
    %c0_i32_1 = arith.constant 0 : i32
    return %c0_i32, %c0_i32_0 : i32, i32
  }
  func.func @transform_8(%arg0: i32) -> (i32, i32, i32) {
    %c0_i32 = arith.constant 0 : i32
    %c0_i32_0 = arith.constant 0 : i32
    %c0_i32_1 = arith.constant 0 : i32
    %c0_i32_2 = arith.constant 0 : i32
    return %c0_i32, %c0_i32_0, %c0_i32_1 : i32, i32, i32
  }
  func.func @transform_9(%arg0: i32) -> (i32, i32) {
    %c0_i32 = arith.constant 0 : i32
    %c0_i32_0 = arith.constant 0 : i32
    %c0_i32_1 = arith.constant 0 : i32
    return %c0_i32, %c0_i32_0 : i32, i32
  }
  func.func @transform_10(%arg0: i32) -> (i32, i32, i32) {
    %c0_i32 = arith.constant 0 : i32
    %c0_i32_0 = arith.constant 0 : i32
    %c0_i32_1 = arith.constant 0 : i32
    %c0_i32_2 = arith.constant 0 : i32
    return %c0_i32, %c0_i32_0, %c0_i32_1 : i32, i32, i32
  }
  func.func @transform_11(%arg0: i32) -> (i32, i32) {
    %c0_i32 = arith.constant 0 : i32
    %c0_i32_0 = arith.constant 0 : i32
    %c0_i32_1 = arith.constant 0 : i32
    return %c0_i32, %c0_i32_0 : i32, i32
  }
  func.func @transform_12(%arg0: i32) -> (i32, i32) {
    %c0_i32 = arith.constant 0 : i32
    %c0_i32_0 = arith.constant 0 : i32
    %c0_i32_1 = arith.constant 0 : i32
    return %c0_i32, %c0_i32_0 : i32, i32
  }
  func.func @transform_13(%arg0: i32) -> (i32, i32) {
    %c0_i32 = arith.constant 0 : i32
    %c0_i32_0 = arith.constant 0 : i32
    %c0_i32_1 = arith.constant 0 : i32
    return %c0_i32, %c0_i32_0 : i32, i32
  }
  func.func @transform_14(%arg0: i32) -> (i32, i32) {
    %c0_i32 = arith.constant 0 : i32
    %c0_i32_0 = arith.constant 0 : i32
    %c0_i32_1 = arith.constant 0 : i32
    return %c0_i32, %c0_i32_0 : i32, i32
  }
  func.func @transform_15(%arg0: i32) -> (i32, i32, i32) {
    %c0_i32 = arith.constant 0 : i32
    %c0_i32_0 = arith.constant 0 : i32
    %c0_i32_1 = arith.constant 0 : i32
    %c0_i32_2 = arith.constant 0 : i32
    return %c0_i32, %c0_i32_0, %c0_i32_1 : i32, i32, i32
  }
  func.func @transform_16(%arg0: i32) -> (i32, i32) {
    %c0_i32 = arith.constant 0 : i32
    %c0_i32_0 = arith.constant 0 : i32
    %c0_i32_1 = arith.constant 0 : i32
    return %c0_i32, %c0_i32_0 : i32, i32
  }
  func.func @transform_17(%arg0: i32) -> (i32, i32, i32) {
    %c0_i32 = arith.constant 0 : i32
    %c0_i32_0 = arith.constant 0 : i32
    %c0_i32_1 = arith.constant 0 : i32
    %c0_i32_2 = arith.constant 0 : i32
    return %c0_i32, %c0_i32_0, %c0_i32_1 : i32, i32, i32
  }
  func.func @transform_18(%arg0: i32) -> (i32, i32) {
    %c0_i32 = arith.constant 0 : i32
    %c0_i32_0 = arith.constant 0 : i32
    %c0_i32_1 = arith.constant 0 : i32
    return %c0_i32, %c0_i32_0 : i32, i32
  }
  func.func @transform_19(%arg0: i32) -> (i32, i32) {
    %c0_i32 = arith.constant 0 : i32
    %c0_i32_0 = arith.constant 0 : i32
    %c0_i32_1 = arith.constant 0 : i32
    return %c0_i32, %c0_i32_0 : i32, i32
  }
  func.func @transform_20(%arg0: i32) -> (i32, i32) {
    %c0_i32 = arith.constant 0 : i32
    %c0_i32_0 = arith.constant 0 : i32
    %c0_i32_1 = arith.constant 0 : i32
    return %c0_i32, %c0_i32_0 : i32, i32
  }
  func.func @transform_21(%arg0: i32) -> (i32, i32) {
    %c0_i32 = arith.constant 0 : i32
    %c0_i32_0 = arith.constant 0 : i32
    %c0_i32_1 = arith.constant 0 : i32
    return %c0_i32, %c0_i32_0 : i32, i32
  }
  func.func @transform_22(%arg0: i32) -> (i32, i32, i32) {
    %c0_i32 = arith.constant 0 : i32
    %c0_i32_0 = arith.constant 0 : i32
    %c0_i32_1 = arith.constant 0 : i32
    %c0_i32_2 = arith.constant 0 : i32
    return %c0_i32, %c0_i32_0, %c0_i32_1 : i32, i32, i32
  }
  func.func @transform_23(%arg0: i32) -> (i32, i32, i32) {
    %c0_i32 = arith.constant 0 : i32
    %c0_i32_0 = arith.constant 0 : i32
    %c0_i32_1 = arith.constant 0 : i32
    %c0_i32_2 = arith.constant 0 : i32
    return %c0_i32, %c0_i32_0, %c0_i32_1 : i32, i32, i32
  }
  func.func @transform_24(%arg0: i32) -> (i32, i32, i32) {
    %c0_i32 = arith.constant 0 : i32
    %c0_i32_0 = arith.constant 0 : i32
    %c0_i32_1 = arith.constant 0 : i32
    %c0_i32_2 = arith.constant 0 : i32
    return %c0_i32, %c0_i32_0, %c0_i32_1 : i32, i32, i32
  }
  func.func @transform_25(%arg0: i32) -> (i32, i32) {
    %c0_i32 = arith.constant 0 : i32
    %c0_i32_0 = arith.constant 0 : i32
    %c0_i32_1 = arith.constant 0 : i32
    return %c0_i32, %c0_i32_0 : i32, i32
  }
  func.func @transform_26(%arg0: i32) -> (i32, i32, i32) {
    %c0_i32 = arith.constant 0 : i32
    %c0_i32_0 = arith.constant 0 : i32
    %c0_i32_1 = arith.constant 0 : i32
    %c0_i32_2 = arith.constant 0 : i32
    return %c0_i32, %c0_i32_0, %c0_i32_1 : i32, i32, i32
  }
  func.func @transform_27(%arg0: i32) -> (i32, i32) {
    %c0_i32 = arith.constant 0 : i32
    %c0_i32_0 = arith.constant 0 : i32
    %c0_i32_1 = arith.constant 0 : i32
    return %c0_i32, %c0_i32_0 : i32, i32
  }
  func.func @transform_28(%arg0: i32) -> (i32, i32) {
    %c0_i32 = arith.constant 0 : i32
    %c0_i32_0 = arith.constant 0 : i32
    %c0_i32_1 = arith.constant 0 : i32
    return %c0_i32, %c0_i32_0 : i32, i32
  }
  func.func @transform_29(%arg0: i32) -> (i32, i32) {
    %c0_i32 = arith.constant 0 : i32
    %c0_i32_0 = arith.constant 0 : i32
    %c0_i32_1 = arith.constant 0 : i32
    return %c0_i32, %c0_i32_0 : i32, i32
  }
  func.func @transform_30(%arg0: i32) -> (i32, i32, i32) {
    %c0_i32 = arith.constant 0 : i32
    %c0_i32_0 = arith.constant 0 : i32
    %c0_i32_1 = arith.constant 0 : i32
    return %arg0, %c0_i32, %c0_i32_0 : i32, i32, i32
  }
}

</mosaic_0001>

<llo_original>
// kernel: forward_pallas.1
$region0: #{forward_pallas.1}
  #allocation0 [shape = 'u32[]', space=smem, size = 0x4, offset = 0x4, fixed_abs, tag = 'smem constant byte address 0x4 - core index']
  #allocation1 [shape = 'u32[72,128]{1,0:T(1,128)}', space=vmem, size = 0x9000, scoped, tag = 'internal scratch']
  %s0 = inlined_call_operand.smem [shape: u32[31], index: -1, kind: input, shape index: {}]
  %s1 = sld [smem:[%s0]]
  %s2 = scalar_lea.smem %s0, 1
  %s3 = sld [smem:[%s2]]
  %s4 = scalar_lea.smem %s0, 2
  %s5 = sld [smem:[%s4]]
  %s6 = scalar_lea.smem %s0, 3
  %s7 = sld [smem:[%s6]]
  %s8 = scalar_lea.smem %s0, 4
  %s9 = sld [smem:[%s8]]
  %s10 = scalar_lea.smem %s0, 5
  %s11 = sld [smem:[%s10]]
  %s12 = scalar_lea.smem %s0, 6
  %s13 = sld [smem:[%s12]]
  %s14 = scalar_lea.smem %s0, 7
  %s15 = sld [smem:[%s14]]
  %s16 = scalar_lea.smem %s0, 8
  %s17 = sld [smem:[%s16]]
  %s18 = scalar_lea.smem %s0, 9
  %s19 = sld [smem:[%s18]]
  %s20 = scalar_lea.smem %s0, 10
  %s21 = sld [smem:[%s20]]
  %s22 = scalar_lea.smem %s0, 11
  %s23 = sld [smem:[%s22]]
  %s24 = scalar_lea.smem %s0, 12
  %s25 = sld [smem:[%s24]]
  %s26 = scalar_lea.smem %s0, 13
  %s27 = sld [smem:[%s26]]
  %s28 = scalar_lea.smem %s0, 14
  %s29 = sld [smem:[%s28]]
  %s30 = scalar_lea.smem %s0, 15
  %s31 = sld [smem:[%s30]]
  %s32 = scalar_lea.smem %s0, 16
  %s33 = sld [smem:[%s32]]
  %s34 = scalar_lea.smem %s0, 17
  %s35 = sld [smem:[%s34]]
  %s36 = scalar_lea.smem %s0, 18
  %s37 = sld [smem:[%s36]]
  %s38 = scalar_lea.smem %s0, 19
  %s39 = sld [smem:[%s38]]
  %s40 = scalar_lea.smem %s0, 20
  %s41 = sld [smem:[%s40]]
  %s42 = scalar_lea.smem %s0, 21
  %s43 = sld [smem:[%s42]]
  %s44 = scalar_lea.smem %s0, 22
  %s45 = sld [smem:[%s44]]
  %s46 = scalar_lea.smem %s0, 23
  %s47 = sld [smem:[%s46]]
  %s48 = scalar_lea.smem %s0, 24
  %s49 = sld [smem:[%s48]]
  %s50 = scalar_lea.smem %s0, 25
  %s51 = sld [smem:[%s50]]
  %s52 = scalar_lea.smem %s0, 26
  %s53 = sld [smem:[%s52]]
  %s54 = scalar_lea.smem %s0, 27
  %s55 = sld [smem:[%s54]]
  %s56 = scalar_lea.smem %s0, 28
  %s57 = sld [smem:[%s56]]
  %s58 = scalar_lea.smem %s0, 29
  %s59 = sld [smem:[%s58]]
  %s60 = scalar_lea.smem %s0, 30
  %s61 = sld [smem:[%s60]]
  %s62 = sld [smem:[#allocation0]]
  $region253: #{forward_pallas.1} parent=0
    _
  %s64 = ssub.s32 1, %s62
  %s65 = scalar_select 0, %s64, %s62
  $region1: #{forward_pallas.1} parent=0
    #allocation2 [shape = 'u8[16384]{0}', space=vmem, size = 0x4000, scoped, tag = 'input window, operand 0']
    #allocation3 [shape = 's32[2]{0}', space=sflag, size = 0x8, scoped, tag = 'scoped memory for forward_pallas.1']
    #allocation4 [shape = 's32[2]{0}', space=sflag, size = 0x8, scoped, tag = 'scoped memory for forward_pallas.1']
    #allocation5 [shape = 'u8[40960]{0}', space=vmem, size = 0xa000, scoped, tag = 'input window, operand 1, single buffered']
    #allocation6 [shape = 's32[1]{0}', space=sflag, size = 0x4, scoped, tag = 'scoped memory for forward_pallas.1']
    #allocation7 [shape = 'u8[512]{0}', space=vmem, size = 0x400, scoped, tag = 'input window, operand 2, single buffered']
    #allocation8 [shape = 'u8[40960]{0}', space=vmem, size = 0xa000, scoped, tag = 'input window, operand 3, single buffered']
    #allocation9 [shape = 's32[1]{0}', space=sflag, size = 0x4, scoped, tag = 'scoped memory for forward_pallas.1']
    #allocation10 [shape = 'u8[65536]{0}', space=vmem, size = 0x10000, scoped, tag = 'input window, operand 4, single buffered']
    #allocation11 [shape = 'u8[65536]{0}', space=vmem, size = 0x10000, scoped, tag = 'input window, operand 5, single buffered']
    #allocation12 [shape = 's32[1]{0}', space=sflag, size = 0x4, scoped, tag = 'scoped memory for forward_pallas.1']
    #allocation13 [shape = 'u8[4096]{0}', space=vmem, size = 0x1000, scoped, tag = 'input window, operand 6, single buffered']
    #allocation14 [shape = 'u8[4096]{0}', space=vmem, size = 0x1000, scoped, tag = 'input window, operand 7, single buffered']
    #allocation15 [shape = 's32[1]{0}', space=sflag, size = 0x4, scoped, tag = 'scoped memory for forward_pallas.1']
    #allocation16 [shape = 'u8[163840]{0}', space=vmem, size = 0x28000, scoped, tag = 'input window, operand 8, single buffered']
    #allocation17 [shape = 'u8[512]{0}', space=vmem, size = 0x400, scoped, tag = 'input window, operand 9, single buffered']
    #allocation18 [shape = 's32[1]{0}', space=sflag, size = 0x4, scoped, tag = 'scoped memory for forward_pallas.1']
    #allocation19 [shape = 'u8[20480]{0}', space=vmem, size = 0x5000, scoped, tag = 'input window, operand 10, single buffered']
    #allocation20 [shape = 'u8[65536]{0}', space=vmem, size = 0x10000, scoped, tag = 'input window, operand 11, single buffered']
    #allocation21 [shape = 's32[1]{0}', space=sflag, size = 0x4, scoped, tag = 'scoped memory for forward_pallas.1']
    #allocation22 [shape = 'u8[65536]{0}', space=vmem, size = 0x10000, scoped, tag = 'input window, operand 12, single buffered']
    #allocation23 [shape = 'u8[2048]{0}', space=vmem, size = 0x800, scoped, tag = 'input window, operand 13, single buffered']
    #allocation24 [shape = 's32[1]{0}', space=sflag, size = 0x4, scoped, tag = 'scoped memory for forward_pallas.1']
    #allocation25 [shape = 'u8[2048]{0}', space=vmem, size = 0x800, scoped, tag = 'input window, operand 14, single buffered']
    #allocation26 [shape = 'u8[98304]{0}', space=vmem, size = 0x18000, scoped, tag = 'input window, operand 15, single buffered']
    #allocation27 [shape = 's32[1]{0}', space=sflag, size = 0x4, scoped, tag = 'scoped memory for forward_pallas.1']
    #allocation28 [shape = 'u8[512]{0}', space=vmem, size = 0x400, scoped, tag = 'input window, operand 16, single buffered']
    #allocation29 [shape = 'u8[65536]{0}', space=vmem, size = 0x10000, scoped, tag = 'input window, operand 18, single buffered']
    #allocation30 [shape = 's32[1]{0}', space=sflag, size = 0x4, scoped, tag = 'scoped memory for forward_pallas.1']
    #allocation31 [shape = 'u8[65536]{0}', space=vmem, size = 0x10000, scoped, tag = 'input window, operand 19, single buffered']
    #allocation32 [shape = 'u8[1024]{0}', space=vmem, size = 0x400, scoped, tag = 'input window, operand 20, single buffered']
    #allocation33 [shape = 's32[1]{0}', space=sflag, size = 0x4, scoped, tag = 'scoped memory for forward_pallas.1']
    #allocation34 [shape = 'u8[1024]{0}', space=vmem, size = 0x400, scoped, tag = 'input window, operand 21, single buffered']
    #allocation35 [shape = 'u8[196608]{0}', space=vmem, size = 0x30000, scoped, tag = 'input window, operand 22, single buffered']
    #allocation36 [shape = 's32[1]{0}', space=sflag, size = 0x4, scoped, tag = 'scoped memory for forward_pallas.1']
    #allocation37 [shape = 'u8[512]{0}', space=vmem, size = 0x400, scoped, tag = 'input window, operand 25, single buffered']
    #allocation38 [shape = 'u8[16384]{0}', space=vmem, size = 0x4000, scoped, tag = 'input window, operand 26, single buffered']
    #allocation39 [shape = 's32[1]{0}', space=sflag, size = 0x4, scoped, tag = 'scoped memory for forward_pallas.1']
    #allocation40 [shape = 'u8[32768]{0}', space=vmem, size = 0x8000, scoped, tag = 'input window, operand 28, single buffered']
    #allocation41 [shape = 'u8[1024]{0}', space=vmem, size = 0x400, scoped, tag = 'output window, operand 0']
    %66 = vsyncpa [#allocation3], 0
    %s67 = scalar_lea.sflag [#allocation3], 1
    %68 = vsyncpa %s67, 0
    %69 = vsyncpa [#allocation6], 0
    %70 = vsyncpa [#allocation9], 0
    %71 = vsyncpa [#allocation12], 0
    %72 = vsyncpa [#allocation15], 0
    %73 = vsyncpa [#allocation18], 0
    %74 = vsyncpa [#allocation21], 0
    %75 = vsyncpa [#allocation24], 0
    %76 = vsyncpa [#allocation27], 0
    %77 = vsyncpa [#allocation30], 0
    %78 = vsyncpa [#allocation33], 0
    %79 = vsyncpa [#allocation36], 0
    %80 = vsyncpa [#allocation39], 0
    %81 = vsyncpa [#allocation4], 0
    %s82 = scalar_lea.sflag [#allocation4], 1
    %83 = vsyncpa %s82, 0
    loop: start=0, step=1, limit=4
    $region2: #{forward_pallas.1} parent=1 // loop_pre_header
      _
    $region3: #{forward_pallas.1} parent=1 // loop_header
      %s85 = sphi 0, %s89
      %p86 = scmp.ge.s32.totalorder %s85, 4
      %s95 = sphi 0, %s97
      %s98 = sphi 0, %s95
      %s99 = sphi 0, %s98
      %s115 = sphi 0, %s99
      %s119 = sphi 0, %s119
      %s121 = sphi 0, %s119
      %s122 = sphi 0, %s121
      %s136 = sphi 0, %s122
      %s140 = sphi 0, %s140
      %s142 = sphi 0, %s140
      %s143 = sphi 0, %s142
      %s157 = sphi 0, %s143
      %s161 = sphi 0, %s161
      %s163 = sphi 0, %s161
      %s164 = sphi 0, %s163
      %s178 = sphi 0, %s164
      %s182 = sphi 0, %s182
      %s184 = sphi 0, %s182
      %s185 = sphi 0, %s184
      %s199 = sphi 0, %s185
      %s203 = sphi 0, %s203
      %s205 = sphi 0, %s203
      %s206 = sphi 0, %s205
      %s220 = sphi 0, %s206
      %s224 = sphi 0, %s224
      %s226 = sphi 0, %s224
      %s227 = sphi 0, %s226
      %s241 = sphi 0, %s227
      %s245 = sphi 0, %s245
      %s247 = sphi 0, %s245
      %s248 = sphi 0, %s247
      %s262 = sphi 0, %s248
      %s266 = sphi 0, %s266
      %s268 = sphi 0, %s266
      %s269 = sphi 0, %s268
      %s283 = sphi 0, %s269
      %s287 = sphi 0, %s287
      %s289 = sphi 0, %s287
      %s290 = sphi 0, %s289
      %s304 = sphi 0, %s290
      %s308 = sphi 0, %s308
      %s310 = sphi 0, %s308
      %s311 = sphi 0, %s310
      %s325 = sphi 0, %s311
      %s329 = sphi 0, %s329
      %s331 = sphi 0, %s329
      %s332 = sphi 0, %s331
      %s346 = sphi 0, %s332
      %s350 = sphi 0, %s350
      %s352 = sphi 0, %s350
      %s353 = sphi 0, %s352
      %s367 = sphi 0, %s353
      %s371 = sphi 0, %s371
      %s373 = sphi 0, %s371
      %s374 = sphi 0, %s373
      %s388 = sphi 0, %s374
      %s392 = sphi 0, %s392
      %s394 = sphi 0, %s392
      %s395 = sphi 0, %s394
      %s409 = sphi 0, %s395
      %s413 = sphi 0, %s413
      %s415 = sphi 0, %s413
      %s416 = sphi 0, %s415
      %s430 = sphi 0, %s416
      %s434 = sphi 0, %s434
      %s436 = sphi 0, %s434
      %s437 = sphi 0, %s436
      %s451 = sphi 0, %s437
      %s455 = sphi 0, %s455
      %s457 = sphi 0, %s455
      %s458 = sphi 0, %s457
      %s472 = sphi 0, %s458
      %s476 = sphi 0, %s476
      %s478 = sphi 0, %s476
      %s479 = sphi 0, %s478
      %s493 = sphi 0, %s479
      %s497 = sphi 0, %s497
      %s499 = sphi 0, %s497
      %s500 = sphi 0, %s499
      %s514 = sphi 0, %s500
      %s518 = sphi 0, %s518
      %s520 = sphi 0, %s518
      %s521 = sphi 0, %s520
      %s535 = sphi 0, %s521
      %s539 = sphi 0, %s539
      %s541 = sphi 0, %s539
      %s542 = sphi 0, %s541
      %s556 = sphi 0, %s542
      %s560 = sphi 0, %s560
      %s562 = sphi 0, %s560
      %s563 = sphi 0, %s562
      %s577 = sphi 0, %s563
      %s581 = sphi 0, %s581
      %s583 = sphi 0, %s581
      %s584 = sphi 0, %s583
      %s598 = sphi 0, %s584
      %s602 = sphi 0, %s602
      %s604 = sphi 0, %s602
      %s605 = sphi 0, %s604
      %s619 = sphi 0, %s605
      %s623 = sphi 0, %s623
      %s625 = sphi 0, %s623
      %s626 = sphi 0, %s625
      %s640 = sphi 0, %s626
      %s644 = sphi 0, %s644
      %s646 = sphi 0, %s644
      %s647 = sphi 0, %s646
      %s661 = sphi 0, %s647
      %s665 = sphi 0, %s665
      %s667 = sphi 0, %s665
      %s668 = sphi 0, %s667
      %s682 = sphi 0, %s668
      %s686 = sphi 0, %s686
      %s688 = sphi 0, %s686
      %s689 = sphi 0, %s688
      %s703 = sphi 0, %s689
      %s707 = sphi 0, %s707
      %s709 = sphi 0, %s707
      %s710 = sphi 0, %s709
      %s724 = sphi 0, %s710
      %s730 = sphi 0, %s732
      %s733 = sphi 0, %s730
      %s734 = sphi 0, %s733
      %s750 = sphi 0, %s734
    $region4: #{forward_pallas.1} parent=1 // loop_header_branch
      %88 = sbr.rel (%p86) target = $region8
    $region5: #{forward_pallas.1} parent=1 // loop_body
      %s90 = ssub.s32 %s85, 1
      %s91 = ssub.s32 %s85, 2
      %s92 = sadd.s32 %s85, 1
      %s93 = ssub.s32 %s85, %s92
      %p94 = scmp.eq.s32.totalorder %s93, 0
      %s96 = sadd.s32 %s95, 1
      %s97 = scalar_select %p94, %s95, %s96
      %p100 = pneg %p94
      %p101 = scmp.eq.s32.totalorder %s85, 1
      %p102 = por %p100, %p101
      %p103 = scmp.ne.s32.totalorder %s95, %s98
      %p104 = scmp.eq.s32.totalorder %s85, 0
      %p105 = por %p103, %p104
      %p106 = scmp.ne.s32.totalorder %s95, %s98
      %p107 = scmp.eq.s32.totalorder %s90, 1
      %p108 = por %p106, %p107
      %p109 = scmp.ne.s32.totalorder %s98, %s99
      %p110 = scmp.eq.s32.totalorder %s90, 0
      %p111 = por %p109, %p110
      %p112 = scmp.ne.s32.totalorder %s98, %s99
      %p113 = scmp.eq.s32.totalorder %s91, 1
      %p114 = por %p112, %p113
      %p116 = scmp.ne.s32.totalorder %s99, %s115
      %p117 = scmp.eq.s32.totalorder %s91, 0
      %p118 = por %p116, %p117
      %s120 = sadd.s32 %s119, 1
      %p123 = scmp.eq.s32.totalorder %s85, 1
      %p124 = scmp.ne.s32.totalorder %s119, %s121
      %p125 = scmp.eq.s32.totalorder %s85, 0
      %p126 = por %p124, %p125
      %p127 = scmp.ne.s32.totalorder %s119, %s121
      %p128 = scmp.eq.s32.totalorder %s90, 1
      %p129 = por %p127, %p128
      %p130 = scmp.ne.s32.totalorder %s121, %s122
      %p131 = scmp.eq.s32.totalorder %s90, 0
      %p132 = por %p130, %p131
      %p133 = scmp.ne.s32.totalorder %s121, %s122
      %p134 = scmp.eq.s32.totalorder %s91, 1
      %p135 = por %p133, %p134
      %p137 = scmp.ne.s32.totalorder %s122, %s136
      %p138 = scmp.eq.s32.totalorder %s91, 0
      %p139 = por %p137, %p138
      %s141 = sadd.s32 %s140, 1
      %p144 = scmp.eq.s32.totalorder %s85, 1
      %p145 = scmp.ne.s32.totalorder %s140, %s142
      %p146 = scmp.eq.s32.totalorder %s85, 0
      %p147 = por %p145, %p146
      %p148 = scmp.ne.s32.totalorder %s140, %s142
      %p149 = scmp.eq.s32.totalorder %s90, 1
      %p150 = por %p148, %p149
      %p151 = scmp.ne.s32.totalorder %s142, %s143
      %p152 = scmp.eq.s32.totalorder %s90, 0
      %p153 = por %p151, %p152
      %p154 = scmp.ne.s32.totalorder %s142, %s143
      %p155 = scmp.eq.s32.totalorder %s91, 1
      %p156 = por %p154, %p155
      %p158 = scmp.ne.s32.totalorder %s143, %s157
      %p159 = scmp.eq.s32.totalorder %s91, 0
      %p160 = por %p158, %p159
      %s162 = sadd.s32 %s161, 1
      %p165 = scmp.eq.s32.totalorder %s85, 1
      %p166 = scmp.ne.s32.totalorder %s161, %s163
      %p167 = scmp.eq.s32.totalorder %s85, 0
      %p168 = por %p166, %p167
      %p169 = scmp.ne.s32.totalorder %s161, %s163
      %p170 = scmp.eq.s32.totalorder %s90, 1
      %p171 = por %p169, %p170
      %p172 = scmp.ne.s32.totalorder %s163, %s164
      %p173 = scmp.eq.s32.totalorder %s90, 0
      %p174 = por %p172, %p173
      %p175 = scmp.ne.s32.totalorder %s163, %s164
      %p176 = scmp.eq.s32.totalorder %s91, 1
      %p177 = por %p175, %p176
      %p179 = scmp.ne.s32.totalorder %s164, %s178
      %p180 = scmp.eq.s32.totalorder %s91, 0
      %p181 = por %p179, %p180
      %s183 = sadd.s32 %s182, 1
      %p186 = scmp.eq.s32.totalorder %s85, 1
      %p187 = scmp.ne.s32.totalorder %s182, %s184
      %p188 = scmp.eq.s32.totalorder %s85, 0
      %p189 = por %p187, %p188
      %p190 = scmp.ne.s32.totalorder %s182, %s184
      %p191 = scmp.eq.s32.totalorder %s90, 1
      %p192 = por %p190, %p191
      %p193 = scmp.ne.s32.totalorder %s184, %s185
      %p194 = scmp.eq.s32.totalorder %s90, 0
      %p195 = por %p193, %p194
      %p196 = scmp.ne.s32.totalorder %s184, %s185
      %p197 = scmp.eq.s32.totalorder %s91, 1
      %p198 = por %p196, %p197
      %p200 = scmp.ne.s32.totalorder %s185, %s199
      %p201 = scmp.eq.s32.totalorder %s91, 0
      %p202 = por %p200, %p201
      %s204 = sadd.s32 %s203, 1
      %p207 = scmp.eq.s32.totalorder %s85, 1
      %p208 = scmp.ne.s32.totalorder %s203, %s205
      %p209 = scmp.eq.s32.totalorder %s85, 0
      %p210 = por %p208, %p209
      %p211 = scmp.ne.s32.totalorder %s203, %s205
      %p212 = scmp.eq.s32.totalorder %s90, 1
      %p213 = por %p211, %p212
      %p214 = scmp.ne.s32.totalorder %s205, %s206
      %p215 = scmp.eq.s32.totalorder %s90, 0
      %p216 = por %p214, %p215
      %p217 = scmp.ne.s32.totalorder %s205, %s206
      %p218 = scmp.eq.s32.totalorder %s91, 1
      %p219 = por %p217, %p218
      %p221 = scmp.ne.s32.totalorder %s206, %s220
      %p222 = scmp.eq.s32.totalorder %s91, 0
      %p223 = por %p221, %p222
      %s225 = sadd.s32 %s224, 1
      %p228 = scmp.eq.s32.totalorder %s85, 1
      %p229 = scmp.ne.s32.totalorder %s224, %s226
      %p230 = scmp.eq.s32.totalorder %s85, 0
      %p231 = por %p229, %p230
      %p232 = scmp.ne.s32.totalorder %s224, %s226
      %p233 = scmp.eq.s32.totalorder %s90, 1
      %p234 = por %p232, %p233
      %p235 = scmp.ne.s32.totalorder %s226, %s227
      %p236 = scmp.eq.s32.totalorder %s90, 0
      %p237 = por %p235, %p236
      %p238 = scmp.ne.s32.totalorder %s226, %s227
      %p239 = scmp.eq.s32.totalorder %s91, 1
      %p240 = por %p238, %p239
      %p242 = scmp.ne.s32.totalorder %s227, %s241
      %p243 = scmp.eq.s32.totalorder %s91, 0
      %p244 = por %p242, %p243
      %s246 = sadd.s32 %s245, 1
      %p249 = scmp.eq.s32.totalorder %s85, 1
      %p250 = scmp.ne.s32.totalorder %s245, %s247
      %p251 = scmp.eq.s32.totalorder %s85, 0
      %p252 = por %p250, %p251
      %p253 = scmp.ne.s32.totalorder %s245, %s247
      %p254 = scmp.eq.s32.totalorder %s90, 1
      %p255 = por %p253, %p254
      %p256 = scmp.ne.s32.totalorder %s247, %s248
      %p257 = scmp.eq.s32.totalorder %s90, 0
      %p258 = por %p256, %p257
      %p259 = scmp.ne.s32.totalorder %s247, %s248
      %p260 = scmp.eq.s32.totalorder %s91, 1
      %p261 = por %p259, %p260
      %p263 = scmp.ne.s32.totalorder %s248, %s262
      %p264 = scmp.eq.s32.totalorder %s91, 0
      %p265 = por %p263, %p264
      %s267 = sadd.s32 %s266, 1
      %p270 = scmp.eq.s32.totalorder %s85, 1
      %p271 = scmp.ne.s32.totalorder %s266, %s268
      %p272 = scmp.eq.s32.totalorder %s85, 0
      %p273 = por %p271, %p272
      %p274 = scmp.ne.s32.totalorder %s266, %s268
      %p275 = scmp.eq.s32.totalorder %s90, 1
      %p276 = por %p274, %p275
      %p277 = scmp.ne.s32.totalorder %s268, %s269
      %p278 = scmp.eq.s32.totalorder %s90, 0
      %p279 = por %p277, %p278
      %p280 = scmp.ne.s32.totalorder %s268, %s269
      %p281 = scmp.eq.s32.totalorder %s91, 1
      %p282 = por %p280, %p281
      %p284 = scmp.ne.s32.totalorder %s269, %s283
      %p285 = scmp.eq.s32.totalorder %s91, 0
      %p286 = por %p284, %p285
      %s288 = sadd.s32 %s287, 1
      %p291 = scmp.eq.s32.totalorder %s85, 1
      %p292 = scmp.ne.s32.totalorder %s287, %s289
      %p293 = scmp.eq.s32.totalorder %s85, 0
      %p294 = por %p292, %p293
      %p295 = scmp.ne.s32.totalorder %s287, %s289
      %p296 = scmp.eq.s32.totalorder %s90, 1
      %p297 = por %p295, %p296
      %p298 = scmp.ne.s32.totalorder %s289, %s290
      %p299 = scmp.eq.s32.totalorder %s90, 0
      %p300 = por %p298, %p299
      %p301 = scmp.ne.s32.totalorder %s289, %s290
      %p302 = scmp.eq.s32.totalorder %s91, 1
      %p303 = por %p301, %p302
      %p305 = scmp.ne.s32.totalorder %s290, %s304
      %p306 = scmp.eq.s32.totalorder %s91, 0
      %p307 = por %p305, %p306
      %s309 = sadd.s32 %s308, 1
      %p312 = scmp.eq.s32.totalorder %s85, 1
      %p313 = scmp.ne.s32.totalorder %s308, %s310
      %p314 = scmp.eq.s32.totalorder %s85, 0
      %p315 = por %p313, %p314
      %p316 = scmp.ne.s32.totalorder %s308, %s310
      %p317 = scmp.eq.s32.totalorder %s90, 1
      %p318 = por %p316, %p317
      %p319 = scmp.ne.s32.totalorder %s310, %s311
      %p320 = scmp.eq.s32.totalorder %s90, 0
      %p321 = por %p319, %p320
      %p322 = scmp.ne.s32.totalorder %s310, %s311
      %p323 = scmp.eq.s32.totalorder %s91, 1
      %p324 = por %p322, %p323
      %p326 = scmp.ne.s32.totalorder %s311, %s325
      %p327 = scmp.eq.s32.totalorder %s91, 0
      %p328 = por %p326, %p327
      %s330 = sadd.s32 %s329, 1
      %p333 = scmp.eq.s32.totalorder %s85, 1
      %p334 = scmp.ne.s32.totalorder %s329, %s331
      %p335 = scmp.eq.s32.totalorder %s85, 0
      %p336 = por %p334, %p335
      %p337 = scmp.ne.s32.totalorder %s329, %s331
      %p338 = scmp.eq.s32.totalorder %s90, 1
      %p339 = por %p337, %p338
      %p340 = scmp.ne.s32.totalorder %s331, %s332
      %p341 = scmp.eq.s32.totalorder %s90, 0
      %p342 = por %p340, %p341
      %p343 = scmp.ne.s32.totalorder %s331, %s332
      %p344 = scmp.eq.s32.totalorder %s91, 1
      %p345 = por %p343, %p344
      %p347 = scmp.ne.s32.totalorder %s332, %s346
      %p348 = scmp.eq.s32.totalorder %s91, 0
      %p349 = por %p347, %p348
      %s351 = sadd.s32 %s350, 1
      %p354 = scmp.eq.s32.totalorder %s85, 1
      %p355 = scmp.ne.s32.totalorder %s350, %s352
      %p356 = scmp.eq.s32.totalorder %s85, 0
      %p357 = por %p355, %p356
      %p358 = scmp.ne.s32.totalorder %s350, %s352
      %p359 = scmp.eq.s32.totalorder %s90, 1
      %p360 = por %p358, %p359
      %p361 = scmp.ne.s32.totalorder %s352, %s353
      %p362 = scmp.eq.s32.totalorder %s90, 0
      %p363 = por %p361, %p362
      %p364 = scmp.ne.s32.totalorder %s352, %s353
      %p365 = scmp.eq.s32.totalorder %s91, 1
      %p366 = por %p364, %p365
      %p368 = scmp.ne.s32.totalorder %s353, %s367
      %p369 = scmp.eq.s32.totalorder %s91, 0
      %p370 = por %p368, %p369
      %s372 = sadd.s32 %s371, 1
      %p375 = scmp.eq.s32.totalorder %s85, 1
      %p376 = scmp.ne.s32.totalorder %s371, %s373
      %p377 = scmp.eq.s32.totalorder %s85, 0
      %p378 = por %p376, %p377
      %p379 = scmp.ne.s32.totalorder %s371, %s373
      %p380 = scmp.eq.s32.totalorder %s90, 1
      %p381 = por %p379, %p380
      %p382 = scmp.ne.s32.totalorder %s373, %s374
      %p383 = scmp.eq.s32.totalorder %s90, 0
      %p384 = por %p382, %p383
      %p385 = scmp.ne.s32.totalorder %s373, %s374
      %p386 = scmp.eq.s32.totalorder %s91, 1
      %p387 = por %p385, %p386
      %p389 = scmp.ne.s32.totalorder %s374, %s388
      %p390 = scmp.eq.s32.totalorder %s91, 0
      %p391 = por %p389, %p390
      %s393 = sadd.s32 %s392, 1
      %p396 = scmp.eq.s32.totalorder %s85, 1
      %p397 = scmp.ne.s32.totalorder %s392, %s394
      %p398 = scmp.eq.s32.totalorder %s85, 0
      %p399 = por %p397, %p398
      %p400 = scmp.ne.s32.totalorder %s392, %s394
      %p401 = scmp.eq.s32.totalorder %s90, 1
      %p402 = por %p400, %p401
      %p403 = scmp.ne.s32.totalorder %s394, %s395
      %p404 = scmp.eq.s32.totalorder %s90, 0
      %p405 = por %p403, %p404
      %p406 = scmp.ne.s32.totalorder %s394, %s395
      %p407 = scmp.eq.s32.totalorder %s91, 1
      %p408 = por %p406, %p407
      %p410 = scmp.ne.s32.totalorder %s395, %s409
      %p411 = scmp.eq.s32.totalorder %s91, 0
      %p412 = por %p410, %p411
      %s414 = sadd.s32 %s413, 1
      %p417 = scmp.eq.s32.totalorder %s85, 1
      %p418 = scmp.ne.s32.totalorder %s413, %s415
      %p419 = scmp.eq.s32.totalorder %s85, 0
      %p420 = por %p418, %p419
      %p421 = scmp.ne.s32.totalorder %s413, %s415
      %p422 = scmp.eq.s32.totalorder %s90, 1
      %p423 = por %p421, %p422
      %p424 = scmp.ne.s32.totalorder %s415, %s416
      %p425 = scmp.eq.s32.totalorder %s90, 0
      %p426 = por %p424, %p425
      %p427 = scmp.ne.s32.totalorder %s415, %s416
      %p428 = scmp.eq.s32.totalorder %s91, 1
      %p429 = por %p427, %p428
      %p431 = scmp.ne.s32.totalorder %s416, %s430
      %p432 = scmp.eq.s32.totalorder %s91, 0
      %p433 = por %p431, %p432
      %s435 = sadd.s32 %s434, 1
      %p438 = scmp.eq.s32.totalorder %s85, 1
      %p439 = scmp.ne.s32.totalorder %s434, %s436
      %p440 = scmp.eq.s32.totalorder %s85, 0
      %p441 = por %p439, %p440
      %p442 = scmp.ne.s32.totalorder %s434, %s436
      %p443 = scmp.eq.s32.totalorder %s90, 1
      %p444 = por %p442, %p443
      %p445 = scmp.ne.s32.totalorder %s436, %s437
      %p446 = scmp.eq.s32.totalorder %s90, 0
      %p447 = por %p445, %p446
      %p448 = scmp.ne.s32.totalorder %s436, %s437
      %p449 = scmp.eq.s32.totalorder %s91, 1
      %p450 = por %p448, %p449
      %p452 = scmp.ne.s32.totalorder %s437, %s451
      %p453 = scmp.eq.s32.totalorder %s91, 0
      %p454 = por %p452, %p453
      %s456 = sadd.s32 %s455, 1
      %p459 = scmp.eq.s32.totalorder %s85, 1
      %p460 = scmp.ne.s32.totalorder %s455, %s457
      %p461 = scmp.eq.s32.totalorder %s85, 0
      %p462 = por %p460, %p461
      %p463 = scmp.ne.s32.totalorder %s455, %s457
      %p464 = scmp.eq.s32.totalorder %s90, 1
      %p465 = por %p463, %p464
      %p466 = scmp.ne.s32.totalorder %s457, %s458
      %p467 = scmp.eq.s32.totalorder %s90, 0
      %p468 = por %p466, %p467
      %p469 = scmp.ne.s32.totalorder %s457, %s458
      %p470 = scmp.eq.s32.totalorder %s91, 1
      %p471 = por %p469, %p470
      %p473 = scmp.ne.s32.totalorder %s458, %s472
      %p474 = scmp.eq.s32.totalorder %s91, 0
      %p475 = por %p473, %p474
      %s477 = sadd.s32 %s476, 1
      %p480 = scmp.eq.s32.totalorder %s85, 1
      %p481 = scmp.ne.s32.totalorder %s476, %s478
      %p482 = scmp.eq.s32.totalorder %s85, 0
      %p483 = por %p481, %p482
      %p484 = scmp.ne.s32.totalorder %s476, %s478
      %p485 = scmp.eq.s32.totalorder %s90, 1
      %p486 = por %p484, %p485
      %p487 = scmp.ne.s32.totalorder %s478, %s479
      %p488 = scmp.eq.s32.totalorder %s90, 0
      %p489 = por %p487, %p488
      %p490 = scmp.ne.s32.totalorder %s478, %s479
      %p491 = scmp.eq.s32.totalorder %s91, 1
      %p492 = por %p490, %p491
      %p494 = scmp.ne.s32.totalorder %s479, %s493
      %p495 = scmp.eq.s32.totalorder %s91, 0
      %p496 = por %p494, %p495
      %s498 = sadd.s32 %s497, 1
      %p501 = scmp.eq.s32.totalorder %s85, 1
      %p502 = scmp.ne.s32.totalorder %s497, %s499
      %p503 = scmp.eq.s32.totalorder %s85, 0
      %p504 = por %p502, %p503
      %p505 = scmp.ne.s32.totalorder %s497, %s499
      %p506 = scmp.eq.s32.totalorder %s90, 1
      %p507 = por %p505, %p506
      %p508 = scmp.ne.s32.totalorder %s499, %s500
      %p509 = scmp.eq.s32.totalorder %s90, 0
      %p510 = por %p508, %p509
      %p511 = scmp.ne.s32.totalorder %s499, %s500
      %p512 = scmp.eq.s32.totalorder %s91, 1
      %p513 = por %p511, %p512
      %p515 = scmp.ne.s32.totalorder %s500, %s514
      %p516 = scmp.eq.s32.totalorder %s91, 0
      %p517 = por %p515, %p516
      %s519 = sadd.s32 %s518, 1
      %p522 = scmp.eq.s32.totalorder %s85, 1
      %p523 = scmp.ne.s32.totalorder %s518, %s520
      %p524 = scmp.eq.s32.totalorder %s85, 0
      %p525 = por %p523, %p524
      %p526 = scmp.ne.s32.totalorder %s518, %s520
      %p527 = scmp.eq.s32.totalorder %s90, 1
      %p528 = por %p526, %p527
      %p529 = scmp.ne.s32.totalorder %s520, %s521
      %p530 = scmp.eq.s32.totalorder %s90, 0
      %p531 = por %p529, %p530
      %p532 = scmp.ne.s32.totalorder %s520, %s521
      %p533 = scmp.eq.s32.totalorder %s91, 1
      %p534 = por %p532, %p533
      %p536 = scmp.ne.s32.totalorder %s521, %s535
      %p537 = scmp.eq.s32.totalorder %s91, 0
      %p538 = por %p536, %p537
      %s540 = sadd.s32 %s539, 1
      %p543 = scmp.eq.s32.totalorder %s85, 1
      %p544 = scmp.ne.s32.totalorder %s539, %s541
      %p545 = scmp.eq.s32.totalorder %s85, 0
      %p546 = por %p544, %p545
      %p547 = scmp.ne.s32.totalorder %s539, %s541
      %p548 = scmp.eq.s32.totalorder %s90, 1
      %p549 = por %p547, %p548
      %p550 = scmp.ne.s32.totalorder %s541, %s542
      %p551 = scmp.eq.s32.totalorder %s90, 0
      %p552 = por %p550, %p551
      %p553 = scmp.ne.s32.totalorder %s541, %s542
      %p554 = scmp.eq.s32.totalorder %s91, 1
      %p555 = por %p553, %p554
      %p557 = scmp.ne.s32.totalorder %s542, %s556
      %p558 = scmp.eq.s32.totalorder %s91, 0
      %p559 = por %p557, %p558
      %s561 = sadd.s32 %s560, 1
      %p564 = scmp.eq.s32.totalorder %s85, 1
      %p565 = scmp.ne.s32.totalorder %s560, %s562
      %p566 = scmp.eq.s32.totalorder %s85, 0
      %p567 = por %p565, %p566
      %p568 = scmp.ne.s32.totalorder %s560, %s562
      %p569 = scmp.eq.s32.totalorder %s90, 1
      %p570 = por %p568, %p569
      %p571 = scmp.ne.s32.totalorder %s562, %s563
      %p572 = scmp.eq.s32.totalorder %s90, 0
      %p573 = por %p571, %p572
      %p574 = scmp.ne.s32.totalorder %s562, %s563
      %p575 = scmp.eq.s32.totalorder %s91, 1
      %p576 = por %p574, %p575
      %p578 = scmp.ne.s32.totalorder %s563, %s577
      %p579 = scmp.eq.s32.totalorder %s91, 0
      %p580 = por %p578, %p579
      %s582 = sadd.s32 %s581, 1
      %p585 = scmp.eq.s32.totalorder %s85, 1
      %p586 = scmp.ne.s32.totalorder %s581, %s583
      %p587 = scmp.eq.s32.totalorder %s85, 0
      %p588 = por %p586, %p587
      %p589 = scmp.ne.s32.totalorder %s581, %s583
      %p590 = scmp.eq.s32.totalorder %s90, 1
      %p591 = por %p589, %p590
      %p592 = scmp.ne.s32.totalorder %s583, %s584
      %p593 = scmp.eq.s32.totalorder %s90, 0
      %p594 = por %p592, %p593
      %p595 = scmp.ne.s32.totalorder %s583, %s584
      %p596 = scmp.eq.s32.totalorder %s91, 1
      %p597 = por %p595, %p596
      %p599 = scmp.ne.s32.totalorder %s584, %s598
      %p600 = scmp.eq.s32.totalorder %s91, 0
      %p601 = por %p599, %p600
      %s603 = sadd.s32 %s602, 1
      %p606 = scmp.eq.s32.totalorder %s85, 1
      %p607 = scmp.ne.s32.totalorder %s602, %s604
      %p608 = scmp.eq.s32.totalorder %s85, 0
      %p609 = por %p607, %p608
      %p610 = scmp.ne.s32.totalorder %s602, %s604
      %p611 = scmp.eq.s32.totalorder %s90, 1
      %p612 = por %p610, %p611
      %p613 = scmp.ne.s32.totalorder %s604, %s605
      %p614 = scmp.eq.s32.totalorder %s90, 0
      %p615 = por %p613, %p614
      %p616 = scmp.ne.s32.totalorder %s604, %s605
      %p617 = scmp.eq.s32.totalorder %s91, 1
      %p618 = por %p616, %p617
      %p620 = scmp.ne.s32.totalorder %s605, %s619
      %p621 = scmp.eq.s32.totalorder %s91, 0
      %p622 = por %p620, %p621
      %s624 = sadd.s32 %s623, 1
      %p627 = scmp.eq.s32.totalorder %s85, 1
      %p628 = scmp.ne.s32.totalorder %s623, %s625
      %p629 = scmp.eq.s32.totalorder %s85, 0
      %p630 = por %p628, %p629
      %p631 = scmp.ne.s32.totalorder %s623, %s625
      %p632 = scmp.eq.s32.totalorder %s90, 1
      %p633 = por %p631, %p632
      %p634 = scmp.ne.s32.totalorder %s625, %s626
      %p635 = scmp.eq.s32.totalorder %s90, 0
      %p636 = por %p634, %p635
      %p637 = scmp.ne.s32.totalorder %s625, %s626
      %p638 = scmp.eq.s32.totalorder %s91, 1
      %p639 = por %p637, %p638
      %p641 = scmp.ne.s32.totalorder %s626, %s640
      %p642 = scmp.eq.s32.totalorder %s91, 0
      %p643 = por %p641, %p642
      %s645 = sadd.s32 %s644, 1
      %p648 = scmp.eq.s32.totalorder %s85, 1
      %p649 = scmp.ne.s32.totalorder %s644, %s646
      %p650 = scmp.eq.s32.totalorder %s85, 0
      %p651 = por %p649, %p650
      %p652 = scmp.ne.s32.totalorder %s644, %s646
      %p653 = scmp.eq.s32.totalorder %s90, 1
      %p654 = por %p652, %p653
      %p655 = scmp.ne.s32.totalorder %s646, %s647
      %p656 = scmp.eq.s32.totalorder %s90, 0
      %p657 = por %p655, %p656
      %p658 = scmp.ne.s32.totalorder %s646, %s647
      %p659 = scmp.eq.s32.totalorder %s91, 1
      %p660 = por %p658, %p659
      %p662 = scmp.ne.s32.totalorder %s647, %s661
      %p663 = scmp.eq.s32.totalorder %s91, 0
      %p664 = por %p662, %p663
      %s666 = sadd.s32 %s665, 1
      %p669 = scmp.eq.s32.totalorder %s85, 1
      %p670 = scmp.ne.s32.totalorder %s665, %s667
      %p671 = scmp.eq.s32.totalorder %s85, 0
      %p672 = por %p670, %p671
      %p673 = scmp.ne.s32.totalorder %s665, %s667
      %p674 = scmp.eq.s32.totalorder %s90, 1
      %p675 = por %p673, %p674
      %p676 = scmp.ne.s32.totalorder %s667, %s668
      %p677 = scmp.eq.s32.totalorder %s90, 0
      %p678 = por %p676, %p677
      %p679 = scmp.ne.s32.totalorder %s667, %s668
      %p680 = scmp.eq.s32.totalorder %s91, 1
      %p681 = por %p679, %p680
      %p683 = scmp.ne.s32.totalorder %s668, %s682
      %p684 = scmp.eq.s32.totalorder %s91, 0
      %p685 = por %p683, %p684
      %s687 = sadd.s32 %s686, 1
      %p690 = scmp.eq.s32.totalorder %s85, 1
      %p691 = scmp.ne.s32.totalorder %s686, %s688
      %p692 = scmp.eq.s32.totalorder %s85, 0
      %p693 = por %p691, %p692
      %p694 = scmp.ne.s32.totalorder %s686, %s688
      %p695 = scmp.eq.s32.totalorder %s90, 1
      %p696 = por %p694, %p695
      %p697 = scmp.ne.s32.totalorder %s688, %s689
      %p698 = scmp.eq.s32.totalorder %s90, 0
      %p699 = por %p697, %p698
      %p700 = scmp.ne.s32.totalorder %s688, %s689
      %p701 = scmp.eq.s32.totalorder %s91, 1
      %p702 = por %p700, %p701
      %p704 = scmp.ne.s32.totalorder %s689, %s703
      %p705 = scmp.eq.s32.totalorder %s91, 0
      %p706 = por %p704, %p705
      %s708 = sadd.s32 %s707, 1
      %p711 = scmp.eq.s32.totalorder %s85, 1
      %p712 = scmp.ne.s32.totalorder %s707, %s709
      %p713 = scmp.eq.s32.totalorder %s85, 0
      %p714 = por %p712, %p713
      %p715 = scmp.ne.s32.totalorder %s707, %s709
      %p716 = scmp.eq.s32.totalorder %s90, 1
      %p717 = por %p715, %p716
      %p718 = scmp.ne.s32.totalorder %s709, %s710
      %p719 = scmp.eq.s32.totalorder %s90, 0
      %p720 = por %p718, %p719
      %p721 = scmp.ne.s32.totalorder %s709, %s710
      %p722 = scmp.eq.s32.totalorder %s91, 1
      %p723 = por %p721, %p722
      %p725 = scmp.ne.s32.totalorder %s710, %s724
      %p726 = scmp.eq.s32.totalorder %s91, 0
      %p727 = por %p725, %p726
      %s728 = ssub.s32 %s85, %s92
      %p729 = scmp.eq.s32.totalorder %s728, 0
      %s731 = sadd.s32 %s730, 1
      %s732 = scalar_select %p729, %s730, %s731
      %p735 = pneg %p729
      %p736 = scmp.eq.s32.totalorder %s85, 1
      %p737 = por %p735, %p736
      %p738 = scmp.ne.s32.totalorder %s730, %s733
      %p739 = scmp.eq.s32.totalorder %s85, 0
      %p740 = por %p738, %p739
      %p741 = scmp.ne.s32.totalorder %s730, %s733
      %p742 = scmp.eq.s32.totalorder %s90, 1
      %p743 = por %p741, %p742
      %p744 = scmp.ne.s32.totalorder %s733, %s734
      %p745 = scmp.eq.s32.totalorder %s90, 0
      %p746 = por %p744, %p745
      %p747 = scmp.ne.s32.totalorder %s733, %s734
      %p748 = scmp.eq.s32.totalorder %s91, 1
      %p749 = por %p747, %p748
      %p751 = scmp.ne.s32.totalorder %s734, %s750
      %p752 = scmp.eq.s32.totalorder %s91, 0
      %p753 = por %p751, %p752
      %p754 = scmp.le.s32.totalorder 1, %s85
      %p755 = scmp.lt.s32.totalorder %s85, 3
      %p756 = pnand %p754, %p755
      %p757 = pneg %p756
      // Predicated region
      $region9: #{forward_pallas.1} parent=5 // pred_check
        _
      $region10: #{forward_pallas.1} parent=5 // pred_check_branch
        %759 = sbr.rel (%p756) target = $region12
      $region11: #{forward_pallas.1} parent=5 // pred_region
        %s760 = ssub.s32 %s85, 1
        // Predicated region
        $region13: #{forward_pallas.1} parent=11 // pred_check
          %p761 = pneg %p132
        $region14: #{forward_pallas.1} parent=11 // pred_check_branch
          %763 = sbr.rel (%p761) target = $region16
        $region15: #{forward_pallas.1} parent=11 // pred_region
          %765 = vsyncadd [#allocation6], 0
          %s766 = sshll.u32 %s3, 4
          %s767 = int_to_ptr.hbm [resolvable:$true] %s766
          %s768 = sshll.u32 [#allocation5], 4
          %s769 = int_to_ptr.vmem [resolvable:$true] %s768
          %774 = dma.hbm_to_vmem [thread:$0]  %s767, 1280, %s769, [#allocation6], 128, 128, 8
        $region16: #{forward_pallas.1} parent=11 // pred_fallthru
          _
        // Predicated region
        $region17: #{forward_pallas.1} parent=11 // pred_check
          %p775 = pneg %p153
        $region18: #{forward_pallas.1} parent=11 // pred_check_branch
          %777 = sbr.rel (%p775) target = $region20
        $region19: #{forward_pallas.1} parent=11 // pred_region
          %779 = vsyncadd [#allocation6], 0
          %s781 = sshll.u32 %s5, 4
          %s782 = int_to_ptr.hbm [resolvable:$true] %s781
          %s783 = sshll.u32 [#allocation7], 4
          %s784 = int_to_ptr.vmem [resolvable:$true] %s783
          %786 = dma.hbm_to_vmem [thread:$0]  %s782, 16, %s784, [#allocation6]
        $region20: #{forward_pallas.1} parent=11 // pred_fallthru
          _
        // Predicated region
        $region21: #{forward_pallas.1} parent=11 // pred_check
          %p787 = pneg %p174
        $region22: #{forward_pallas.1} parent=11 // pred_check_branch
          %789 = sbr.rel (%p787) target = $region24
        $region23: #{forward_pallas.1} parent=11 // pred_region
          %791 = vsyncadd [#allocation9], 0
          %s792 = sshll.u32 %s7, 4
          %s793 = int_to_ptr.hbm [resolvable:$true] %s792
          %s794 = sshll.u32 [#allocation8], 4
          %s795 = int_to_ptr.vmem [resolvable:$true] %s794
          %800 = dma.hbm_to_vmem [thread:$0]  %s793, 1280, %s795, [#allocation9], 128, 128, 8
        $region24: #{forward_pallas.1} parent=11 // pred_fallthru
          _
        // Predicated region
        $region25: #{forward_pallas.1} parent=11 // pred_check
          %p801 = pneg %p195
        $region26: #{forward_pallas.1} parent=11 // pred_check_branch
          %803 = sbr.rel (%p801) target = $region28
        $region27: #{forward_pallas.1} parent=11 // pred_region
          %805 = vsyncadd [#allocation9], 0
          %s806 = sshll.u32 %s9, 4
          %s807 = int_to_ptr.hbm [resolvable:$true] %s806
          %s808 = sshll.u32 [#allocation10], 4
          %s809 = int_to_ptr.vmem [resolvable:$true] %s808
          %814 = dma.hbm_to_vmem [thread:$0]  %s807, 2048, %s809, [#allocation9], 128, 128, 8
        $region28: #{forward_pallas.1} parent=11 // pred_fallthru
          _
        // Predicated region
        $region29: #{forward_pallas.1} parent=11 // pred_check
          %p815 = pneg %p216
        $region30: #{forward_pallas.1} parent=11 // pred_check_branch
          %817 = sbr.rel (%p815) target = $region32
        $region31: #{forward_pallas.1} parent=11 // pred_region
          %819 = vsyncadd [#allocation12], 0
          %s820 = sshll.u32 %s11, 4
          %s821 = int_to_ptr.hbm [resolvable:$true] %s820
          %s822 = sshll.u32 [#allocation11], 4
          %s823 = int_to_ptr.vmem [resolvable:$true] %s822
          %828 = dma.hbm_to_vmem [thread:$0]  %s821, 2048, %s823, [#allocation12], 128, 128, 8
        $region32: #{forward_pallas.1} parent=11 // pred_fallthru
          _
        // Predicated region
        $region33: #{forward_pallas.1} parent=11 // pred_check
          %p829 = pneg %p237
        $region34: #{forward_pallas.1} parent=11 // pred_check_branch
          %831 = sbr.rel (%p829) target = $region36
        $region35: #{forward_pallas.1} parent=11 // pred_region
          %833 = vsyncadd [#allocation12], 0
          %s835 = sshll.u32 %s13, 4
          %s836 = int_to_ptr.hbm [resolvable:$true] %s835
          %s837 = sshll.u32 [#allocation13], 4
          %s838 = int_to_ptr.vmem [resolvable:$true] %s837
          %840 = dma.hbm_to_vmem [thread:$0]  %s836, 128, %s838, [#allocation12]
        $region36: #{forward_pallas.1} parent=11 // pred_fallthru
          _
        // Predicated region
        $region37: #{forward_pallas.1} parent=11 // pred_check
          %p841 = pneg %p258
        $region38: #{forward_pallas.1} parent=11 // pred_check_branch
          %843 = sbr.rel (%p841) target = $region40
        $region39: #{forward_pallas.1} parent=11 // pred_region
          %845 = vsyncadd [#allocation15], 0
          %s847 = sshll.u32 %s15, 4
          %s848 = int_to_ptr.hbm [resolvable:$true] %s847
          %s849 = sshll.u32 [#allocation14], 4
          %s850 = int_to_ptr.vmem [resolvable:$true] %s849
          %852 = dma.hbm_to_vmem [thread:$0]  %s848, 128, %s850, [#allocation15]
        $region40: #{forward_pallas.1} parent=11 // pred_fallthru
          _
        // Predicated region
        $region41: #{forward_pallas.1} parent=11 // pred_check
          %p853 = pneg %p279
        $region42: #{forward_pallas.1} parent=11 // pred_check_branch
          %855 = sbr.rel (%p853) target = $region44
        $region43: #{forward_pallas.1} parent=11 // pred_region
          %857 = vsyncadd [#allocation15], 0
          %s858 = sshll.u32 %s17, 4
          %s859 = int_to_ptr.hbm [resolvable:$true] %s858
          %s860 = sshll.u32 [#allocation16], 4
          %s861 = int_to_ptr.vmem [resolvable:$true] %s860
          %866 = dma.hbm_to_vmem [thread:$0]  %s859, 5120, %s861, [#allocation15], 128, 128, 8
        $region44: #{forward_pallas.1} parent=11 // pred_fallthru
          _
        // Predicated region
        $region45: #{forward_pallas.1} parent=11 // pred_check
          %p867 = pneg %p300
        $region46: #{forward_pallas.1} parent=11 // pred_check_branch
          %869 = sbr.rel (%p867) target = $region48
        $region47: #{forward_pallas.1} parent=11 // pred_region
          %871 = vsyncadd [#allocation18], 0
          %s873 = sshll.u32 %s19, 4
          %s874 = int_to_ptr.hbm [resolvable:$true] %s873
          %s875 = sshll.u32 [#allocation17], 4
          %s876 = int_to_ptr.vmem [resolvable:$true] %s875
          %878 = dma.hbm_to_vmem [thread:$0]  %s874, 16, %s876, [#allocation18]
        $region48: #{forward_pallas.1} parent=11 // pred_fallthru
          _
        // Predicated region
        $region49: #{forward_pallas.1} parent=11 // pred_check
          %p879 = pneg %p321
        $region50: #{forward_pallas.1} parent=11 // pred_check_branch
          %881 = sbr.rel (%p879) target = $region52
        $region51: #{forward_pallas.1} parent=11 // pred_region
          %883 = vsyncadd [#allocation18], 0
          %s884 = sshll.u32 %s21, 4
          %s885 = int_to_ptr.hbm [resolvable:$true] %s884
          %s886 = sshll.u32 [#allocation19], 4
          %s887 = int_to_ptr.vmem [resolvable:$true] %s886
          %892 = dma.hbm_to_vmem [thread:$0]  %s885, 640, %s887, [#allocation18], 128, 128, 8
        $region52: #{forward_pallas.1} parent=11 // pred_fallthru
          _
        // Predicated region
        $region53: #{forward_pallas.1} parent=11 // pred_check
          %p893 = pneg %p342
        $region54: #{forward_pallas.1} parent=11 // pred_check_branch
          %895 = sbr.rel (%p893) target = $region56
        $region55: #{forward_pallas.1} parent=11 // pred_region
          %897 = vsyncadd [#allocation21], 0
          %s898 = sshll.u32 %s23, 4
          %s899 = int_to_ptr.hbm [resolvable:$true] %s898
          %s900 = sshll.u32 [#allocation20], 4
          %s901 = int_to_ptr.vmem [resolvable:$true] %s900
          %906 = dma.hbm_to_vmem [thread:$0]  %s899, 2048, %s901, [#allocation21], 128, 128, 8
        $region56: #{forward_pallas.1} parent=11 // pred_fallthru
          _
        // Predicated region
        $region57: #{forward_pallas.1} parent=11 // pred_check
          %p907 = pneg %p363
        $region58: #{forward_pallas.1} parent=11 // pred_check_branch
          %909 = sbr.rel (%p907) target = $region60
        $region59: #{forward_pallas.1} parent=11 // pred_region
          %911 = vsyncadd [#allocation21], 0
          %s912 = sshll.u32 %s25, 4
          %s913 = int_to_ptr.hbm [resolvable:$true] %s912
          %s914 = sshll.u32 [#allocation22], 4
          %s915 = int_to_ptr.vmem [resolvable:$true] %s914
          %920 = dma.hbm_to_vmem [thread:$0]  %s913, 2048, %s915, [#allocation21], 128, 128, 8
        $region60: #{forward_pallas.1} parent=11 // pred_fallthru
          _
        // Predicated region
        $region61: #{forward_pallas.1} parent=11 // pred_check
          %p921 = pneg %p384
        $region62: #{forward_pallas.1} parent=11 // pred_check_branch
          %923 = sbr.rel (%p921) target = $region64
        $region63: #{forward_pallas.1} parent=11 // pred_region
          %925 = vsyncadd [#allocation24], 0
          %s927 = sshll.u32 %s27, 4
          %s928 = int_to_ptr.hbm [resolvable:$true] %s927
          %s929 = sshll.u32 [#allocation23], 4
          %s930 = int_to_ptr.vmem [resolvable:$true] %s929
          %932 = dma.hbm_to_vmem [thread:$0]  %s928, 64, %s930, [#allocation24]
        $region64: #{forward_pallas.1} parent=11 // pred_fallthru
          _
        // Predicated region
        $region65: #{forward_pallas.1} parent=11 // pred_check
          %p933 = pneg %p405
        $region66: #{forward_pallas.1} parent=11 // pred_check_branch
          %935 = sbr.rel (%p933) target = $region68
        $region67: #{forward_pallas.1} parent=11 // pred_region
          %937 = vsyncadd [#allocation24], 0
          %s939 = sshll.u32 %s29, 4
          %s940 = int_to_ptr.hbm [resolvable:$true] %s939
          %s941 = sshll.u32 [#allocation25], 4
          %s942 = int_to_ptr.vmem [resolvable:$true] %s941
          %944 = dma.hbm_to_vmem [thread:$0]  %s940, 64, %s942, [#allocation24]
        $region68: #{forward_pallas.1} parent=11 // pred_fallthru
          _
        // Predicated region
        $region69: #{forward_pallas.1} parent=11 // pred_check
          %p945 = pneg %p426
        $region70: #{forward_pallas.1} parent=11 // pred_check_branch
          %947 = sbr.rel (%p945) target = $region72
        $region71: #{forward_pallas.1} parent=11 // pred_region
          %949 = vsyncadd [#allocation27], 0
          %s950 = sshll.u32 %s31, 4
          %s951 = int_to_ptr.hbm [resolvable:$true] %s950
          %s952 = sshll.u32 [#allocation26], 4
          %s953 = int_to_ptr.vmem [resolvable:$true] %s952
          %958 = dma.hbm_to_vmem [thread:$0]  %s951, 3072, %s953, [#allocation27], 128, 128, 8
        $region72: #{forward_pallas.1} parent=11 // pred_fallthru
          _
        // Predicated region
        $region73: #{forward_pallas.1} parent=11 // pred_check
          %p959 = pneg %p447
        $region74: #{forward_pallas.1} parent=11 // pred_check_branch
          %961 = sbr.rel (%p959) target = $region76
        $region75: #{forward_pallas.1} parent=11 // pred_region
          %963 = vsyncadd [#allocation27], 0
          %s965 = sshll.u32 %s33, 4
          %s966 = int_to_ptr.hbm [resolvable:$true] %s965
          %s967 = sshll.u32 [#allocation28], 4
          %s968 = int_to_ptr.vmem [resolvable:$true] %s967
          %970 = dma.hbm_to_vmem [thread:$0]  %s966, 16, %s968, [#allocation27]
        $region76: #{forward_pallas.1} parent=11 // pred_fallthru
          _
        // Predicated region
        $region77: #{forward_pallas.1} parent=11 // pred_check
          %p971 = pneg %p468
        $region78: #{forward_pallas.1} parent=11 // pred_check_branch
          %973 = sbr.rel (%p971) target = $region80
        $region79: #{forward_pallas.1} parent=11 // pred_region
          _
        $region80: #{forward_pallas.1} parent=11 // pred_fallthru
          _
        // Predicated region
        $region81: #{forward_pallas.1} parent=11 // pred_check
          %p974 = pneg %p489
        $region82: #{forward_pallas.1} parent=11 // pred_check_branch
          %976 = sbr.rel (%p974) target = $region84
        $region83: #{forward_pallas.1} parent=11 // pred_region
          %978 = vsyncadd [#allocation30], 0
          %s979 = sshll.u32 %s37, 4
          %s980 = int_to_ptr.hbm [resolvable:$true] %s979
          %s981 = sshll.u32 [#allocation29], 4
          %s982 = int_to_ptr.vmem [resolvable:$true] %s981
          %987 = dma.hbm_to_vmem [thread:$0]  %s980, 2048, %s982, [#allocation30], 128, 128, 8
        $region84: #{forward_pallas.1} parent=11 // pred_fallthru
          _
        // Predicated region
        $region85: #{forward_pallas.1} parent=11 // pred_check
          %p988 = pneg %p510
        $region86: #{forward_pallas.1} parent=11 // pred_check_branch
          %990 = sbr.rel (%p988) target = $region88
        $region87: #{forward_pallas.1} parent=11 // pred_region
          %992 = vsyncadd [#allocation30], 0
          %s993 = sshll.u32 %s39, 4
          %s994 = int_to_ptr.hbm [resolvable:$true] %s993
          %s995 = sshll.u32 [#allocation31], 4
          %s996 = int_to_ptr.vmem [resolvable:$true] %s995
          %1001 = dma.hbm_to_vmem [thread:$0]  %s994, 2048, %s996, [#allocation30], 128, 128, 8
        $region88: #{forward_pallas.1} parent=11 // pred_fallthru
          _
        // Predicated region
        $region89: #{forward_pallas.1} parent=11 // pred_check
          %p1002 = pneg %p531
        $region90: #{forward_pallas.1} parent=11 // pred_check_branch
          %1004 = sbr.rel (%p1002) target = $region92
        $region91: #{forward_pallas.1} parent=11 // pred_region
          %1006 = vsyncadd [#allocation33], 0
          %s1008 = sshll.u32 %s41, 4
          %s1009 = int_to_ptr.hbm [resolvable:$true] %s1008
          %s1010 = sshll.u32 [#allocation32], 4
          %s1011 = int_to_ptr.vmem [resolvable:$true] %s1010
          %1013 = dma.hbm_to_vmem [thread:$0]  %s1009, 32, %s1011, [#allocation33]
        $region92: #{forward_pallas.1} parent=11 // pred_fallthru
          _
        // Predicated region
        $region93: #{forward_pallas.1} parent=11 // pred_check
          %p1014 = pneg %p552
        $region94: #{forward_pallas.1} parent=11 // pred_check_branch
          %1016 = sbr.rel (%p1014) target = $region96
        $region95: #{forward_pallas.1} parent=11 // pred_region
          %1018 = vsyncadd [#allocation33], 0
          %s1020 = sshll.u32 %s43, 4
          %s1021 = int_to_ptr.hbm [resolvable:$true] %s1020
          %s1022 = sshll.u32 [#allocation34], 4
          %s1023 = int_to_ptr.vmem [resolvable:$true] %s1022
          %1025 = dma.hbm_to_vmem [thread:$0]  %s1021, 32, %s1023, [#allocation33]
        $region96: #{forward_pallas.1} parent=11 // pred_fallthru
          _
        // Predicated region
        $region97: #{forward_pallas.1} parent=11 // pred_check
          %p1026 = pneg %p573
        $region98: #{forward_pallas.1} parent=11 // pred_check_branch
          %1028 = sbr.rel (%p1026) target = $region100
        $region99: #{forward_pallas.1} parent=11 // pred_region
          %1030 = vsyncadd [#allocation36], 0
          %s1031 = sshll.u32 %s45, 4
          %s1032 = int_to_ptr.hbm [resolvable:$true] %s1031
          %s1033 = sshll.u32 [#allocation35], 4
          %s1034 = int_to_ptr.vmem [resolvable:$true] %s1033
          %1039 = dma.hbm_to_vmem [thread:$0]  %s1032, 6144, %s1034, [#allocation36], 128, 128, 8
        $region100: #{forward_pallas.1} parent=11 // pred_fallthru
          _
        // Predicated region
        $region101: #{forward_pallas.1} parent=11 // pred_check
          %p1040 = pneg %p594
        $region102: #{forward_pallas.1} parent=11 // pred_check_branch
          %1042 = sbr.rel (%p1040) target = $region104
        $region103: #{forward_pallas.1} parent=11 // pred_region
          _
        $region104: #{forward_pallas.1} parent=11 // pred_fallthru
          _
        // Predicated region
        $region105: #{forward_pallas.1} parent=11 // pred_check
          %p1043 = pneg %p615
        $region106: #{forward_pallas.1} parent=11 // pred_check_branch
          %1045 = sbr.rel (%p1043) target = $region108
        $region107: #{forward_pallas.1} parent=11 // pred_region
          _
        $region108: #{forward_pallas.1} parent=11 // pred_fallthru
          _
        // Predicated region
        $region109: #{forward_pallas.1} parent=11 // pred_check
          %p1046 = pneg %p636
        $region110: #{forward_pallas.1} parent=11 // pred_check_branch
          %1048 = sbr.rel (%p1046) target = $region112
        $region111: #{forward_pallas.1} parent=11 // pred_region
          %1050 = vsyncadd [#allocation36], 0
          %s1052 = sshll.u32 %s51, 4
          %s1053 = int_to_ptr.hbm [resolvable:$true] %s1052
          %s1054 = sshll.u32 [#allocation37], 4
          %s1055 = int_to_ptr.vmem [resolvable:$true] %s1054
          %1057 = dma.hbm_to_vmem [thread:$0]  %s1053, 16, %s1055, [#allocation36]
        $region112: #{forward_pallas.1} parent=11 // pred_fallthru
          _
        // Predicated region
        $region113: #{forward_pallas.1} parent=11 // pred_check
          %p1058 = pneg %p657
        $region114: #{forward_pallas.1} parent=11 // pred_check_branch
          %1060 = sbr.rel (%p1058) target = $region116
        $region115: #{forward_pallas.1} parent=11 // pred_region
          %1062 = vsyncadd [#allocation39], 0
          %s1063 = sshll.u32 %s53, 4
          %s1064 = int_to_ptr.hbm [resolvable:$true] %s1063
          %s1065 = sshll.u32 [#allocation38], 4
          %s1066 = int_to_ptr.vmem [resolvable:$true] %s1065
          %1071 = dma.hbm_to_vmem [thread:$0]  %s1064, 512, %s1066, [#allocation39], 128, 128, 8
        $region116: #{forward_pallas.1} parent=11 // pred_fallthru
          _
        // Predicated region
        $region117: #{forward_pallas.1} parent=11 // pred_check
          %p1072 = pneg %p678
        $region118: #{forward_pallas.1} parent=11 // pred_check_branch
          %1074 = sbr.rel (%p1072) target = $region120
        $region119: #{forward_pallas.1} parent=11 // pred_region
          _
        $region120: #{forward_pallas.1} parent=11 // pred_fallthru
          _
        // Predicated region
        $region121: #{forward_pallas.1} parent=11 // pred_check
          %p1075 = pneg %p699
        $region122: #{forward_pallas.1} parent=11 // pred_check_branch
          %1077 = sbr.rel (%p1075) target = $region124
        $region123: #{forward_pallas.1} parent=11 // pred_region
          %1079 = vsyncadd [#allocation39], 0
          %s1080 = sshll.u32 %s57, 4
          %s1081 = int_to_ptr.hbm [resolvable:$true] %s1080
          %s1082 = sshll.u32 [#allocation40], 4
          %s1083 = int_to_ptr.vmem [resolvable:$true] %s1082
          %1088 = dma.hbm_to_vmem [thread:$0]  %s1081, 1024, %s1083, [#allocation39], 128, 128, 8
        $region124: #{forward_pallas.1} parent=11 // pred_fallthru
          _
        // Predicated region
        $region125: #{forward_pallas.1} parent=11 // pred_check
          %p1089 = pneg %p720
        $region126: #{forward_pallas.1} parent=11 // pred_check_branch
          %1091 = sbr.rel (%p1089) target = $region128
        $region127: #{forward_pallas.1} parent=11 // pred_region
          _
        $region128: #{forward_pallas.1} parent=11 // pred_fallthru
          _
      $region12: #{forward_pallas.1} parent=5 // pred_fallthru
        _
      %p1092 = scmp.lt.s32.totalorder %s85, 2
      // Predicated region
      $region129: #{forward_pallas.1} parent=5 // pred_check
        %p1093 = pneg %p1092
      $region130: #{forward_pallas.1} parent=5 // pred_check_branch
        %1095 = sbr.rel (%p1093) target = $region132
      $region131: #{forward_pallas.1} parent=5 // pred_region
        // Predicated region
        $region133: #{forward_pallas.1} parent=131 // pred_check
          %p1096 = pneg %p105
        $region134: #{forward_pallas.1} parent=131 // pred_check_branch
          %1098 = sbr.rel (%p1096) target = $region136
        $region135: #{forward_pallas.1} parent=131 // pred_region
          %s1099 = sand.u32 %s95, 1
          %s1100 = scalar_lea.sflag [#allocation3], %s1099
          %s1101 = sand.u32 %s95, 1
          %s1102 = smul.addr %s1101, 16
          %s1103 = scalar_lea.vmem [#allocation2], %s1102
          %1105 = vsyncadd %s1100, 0
          %s1106 = smul.addr %s85, 2
          %s1107 = smul.addr %s1106, 8
          %s1108 = scalar_lea.hbm %s1, %s1107
          %s1109 = sshll.u32 %s1108, 4
          %s1110 = int_to_ptr.hbm [resolvable:$true] %s1109
          %s1111 = sshll.u32 %s1103, 4
          %s1112 = int_to_ptr.vmem [resolvable:$true] %s1111
          %1117 = dma.hbm_to_vmem [thread:$0]  %s1110, 256, %s1112, %s1100, 128, 128, 8
        $region136: #{forward_pallas.1} parent=131 // pred_fallthru
          _
      $region132: #{forward_pallas.1} parent=5 // pred_fallthru
        _
      %p1118 = scmp.le.s32.totalorder 1, %s85
      %p1119 = scmp.lt.s32.totalorder %s85, 3
      %p1120 = pnand %p1118, %p1119
      %p1121 = pneg %p1120
      // Predicated region
      $region137: #{forward_pallas.1} parent=5 // pred_check
        _
      $region138: #{forward_pallas.1} parent=5 // pred_check_branch
        %1123 = sbr.rel (%p1120) target = $region140
      $region139: #{forward_pallas.1} parent=5 // pred_region
        %s1124 = ssub.s32 %s85, 1
        %s1125 = sand.u32 %s98, 1
        %s1126 = scalar_lea.sflag [#allocation3], %s1125
        %s1127 = sand.u32 %s98, 1
        %s1128 = smul.addr %s1127, 16
        %s1129 = scalar_lea.vmem [#allocation2], %s1128
        // Predicated region
        $region141: #{forward_pallas.1} parent=139 // pred_check
          %p1130 = pneg %p111
        $region142: #{forward_pallas.1} parent=139 // pred_check_branch
          %1132 = sbr.rel (%p1130) target = $region144
        $region143: #{forward_pallas.1} parent=139 // pred_region
          %1134 = dma.done %s1126, 256
        $region144: #{forward_pallas.1} parent=139 // pred_fallthru
          _
        // Predicated region
        $region145: #{forward_pallas.1} parent=139 // pred_check
          %p1135 = pneg %p132
        $region146: #{forward_pallas.1} parent=139 // pred_check_branch
          %1137 = sbr.rel (%p1135) target = $region148
        $region147: #{forward_pallas.1} parent=139 // pred_region
          %1139 = dma.done [#allocation6], 1280
        $region148: #{forward_pallas.1} parent=139 // pred_fallthru
          _
        // Predicated region
        $region149: #{forward_pallas.1} parent=139 // pred_check
          %p1140 = pneg %p153
        $region150: #{forward_pallas.1} parent=139 // pred_check_branch
          %1142 = sbr.rel (%p1140) target = $region152
        $region151: #{forward_pallas.1} parent=139 // pred_region
          %1144 = dma.done [#allocation6], 16
        $region152: #{forward_pallas.1} parent=139 // pred_fallthru
          _
        // Predicated region
        $region153: #{forward_pallas.1} parent=139 // pred_check
          %p1145 = pneg %p174
        $region154: #{forward_pallas.1} parent=139 // pred_check_branch
          %1147 = sbr.rel (%p1145) target = $region156
        $region155: #{forward_pallas.1} parent=139 // pred_region
          %1149 = dma.done [#allocation9], 1280
        $region156: #{forward_pallas.1} parent=139 // pred_fallthru
          _
        // Predicated region
        $region157: #{forward_pallas.1} parent=139 // pred_check
          %p1150 = pneg %p195
        $region158: #{forward_pallas.1} parent=139 // pred_check_branch
          %1152 = sbr.rel (%p1150) target = $region160
        $region159: #{forward_pallas.1} parent=139 // pred_region
          %1154 = dma.done [#allocation9], 2048
        $region160: #{forward_pallas.1} parent=139 // pred_fallthru
          _
        // Predicated region
        $region161: #{forward_pallas.1} parent=139 // pred_check
          %p1155 = pneg %p216
        $region162: #{forward_pallas.1} parent=139 // pred_check_branch
          %1157 = sbr.rel (%p1155) target = $region164
        $region163: #{forward_pallas.1} parent=139 // pred_region
          %1159 = dma.done [#allocation12], 2048
        $region164: #{forward_pallas.1} parent=139 // pred_fallthru
          _
        // Predicated region
        $region165: #{forward_pallas.1} parent=139 // pred_check
          %p1160 = pneg %p237
        $region166: #{forward_pallas.1} parent=139 // pred_check_branch
          %1162 = sbr.rel (%p1160) target = $region168
        $region167: #{forward_pallas.1} parent=139 // pred_region
          %1164 = dma.done [#allocation12], 128
        $region168: #{forward_pallas.1} parent=139 // pred_fallthru
          _
        // Predicated region
        $region169: #{forward_pallas.1} parent=139 // pred_check
          %p1165 = pneg %p258
        $region170: #{forward_pallas.1} parent=139 // pred_check_branch
          %1167 = sbr.rel (%p1165) target = $region172
        $region171: #{forward_pallas.1} parent=139 // pred_region
          %1169 = dma.done [#allocation15], 128
        $region172: #{forward_pallas.1} parent=139 // pred_fallthru
          _
        // Predicated region
        $region173: #{forward_pallas.1} parent=139 // pred_check
          %p1170 = pneg %p279
        $region174: #{forward_pallas.1} parent=139 // pred_check_branch
          %1172 = sbr.rel (%p1170) target = $region176
        $region175: #{forward_pallas.1} parent=139 // pred_region
          %1174 = dma.done [#allocation15], 5120
        $region176: #{forward_pallas.1} parent=139 // pred_fallthru
          _
        // Predicated region
        $region177: #{forward_pallas.1} parent=139 // pred_check
          %p1175 = pneg %p300
        $region178: #{forward_pallas.1} parent=139 // pred_check_branch
          %1177 = sbr.rel (%p1175) target = $region180
        $region179: #{forward_pallas.1} parent=139 // pred_region
          %1179 = dma.done [#allocation18], 16
        $region180: #{forward_pallas.1} parent=139 // pred_fallthru
          _
        // Predicated region
        $region181: #{forward_pallas.1} parent=139 // pred_check
          %p1180 = pneg %p321
        $region182: #{forward_pallas.1} parent=139 // pred_check_branch
          %1182 = sbr.rel (%p1180) target = $region184
        $region183: #{forward_pallas.1} parent=139 // pred_region
          %1184 = dma.done [#allocation18], 640
        $region184: #{forward_pallas.1} parent=139 // pred_fallthru
          _
        // Predicated region
        $region185: #{forward_pallas.1} parent=139 // pred_check
          %p1185 = pneg %p342
        $region186: #{forward_pallas.1} parent=139 // pred_check_branch
          %1187 = sbr.rel (%p1185) target = $region188
        $region187: #{forward_pallas.1} parent=139 // pred_region
          %1189 = dma.done [#allocation21], 2048
        $region188: #{forward_pallas.1} parent=139 // pred_fallthru
          _
        // Predicated region
        $region189: #{forward_pallas.1} parent=139 // pred_check
          %p1190 = pneg %p363
        $region190: #{forward_pallas.1} parent=139 // pred_check_branch
          %1192 = sbr.rel (%p1190) target = $region192
        $region191: #{forward_pallas.1} parent=139 // pred_region
          %1194 = dma.done [#allocation21], 2048
        $region192: #{forward_pallas.1} parent=139 // pred_fallthru
          _
        // Predicated region
        $region193: #{forward_pallas.1} parent=139 // pred_check
          %p1195 = pneg %p384
        $region194: #{forward_pallas.1} parent=139 // pred_check_branch
          %1197 = sbr.rel (%p1195) target = $region196
        $region195: #{forward_pallas.1} parent=139 // pred_region
          %1199 = dma.done [#allocation24], 64
        $region196: #{forward_pallas.1} parent=139 // pred_fallthru
          _
        // Predicated region
        $region197: #{forward_pallas.1} parent=139 // pred_check
          %p1200 = pneg %p405
        $region198: #{forward_pallas.1} parent=139 // pred_check_branch
          %1202 = sbr.rel (%p1200) target = $region200
        $region199: #{forward_pallas.1} parent=139 // pred_region
          %1204 = dma.done [#allocation24], 64
        $region200: #{forward_pallas.1} parent=139 // pred_fallthru
          _
        // Predicated region
        $region201: #{forward_pallas.1} parent=139 // pred_check
          %p1205 = pneg %p426
        $region202: #{forward_pallas.1} parent=139 // pred_check_branch
          %1207 = sbr.rel (%p1205) target = $region204
        $region203: #{forward_pallas.1} parent=139 // pred_region
          %1209 = dma.done [#allocation27], 3072
        $region204: #{forward_pallas.1} parent=139 // pred_fallthru
          _
        // Predicated region
        $region205: #{forward_pallas.1} parent=139 // pred_check
          %p1210 = pneg %p447
        $region206: #{forward_pallas.1} parent=139 // pred_check_branch
          %1212 = sbr.rel (%p1210) target = $region208
        $region207: #{forward_pallas.1} parent=139 // pred_region
          %1214 = dma.done [#allocation27], 16
        $region208: #{forward_pallas.1} parent=139 // pred_fallthru
          _
        // Predicated region
        $region209: #{forward_pallas.1} parent=139 // pred_check
          %p1215 = pneg %p489
        $region210: #{forward_pallas.1} parent=139 // pred_check_branch
          %1217 = sbr.rel (%p1215) target = $region212
        $region211: #{forward_pallas.1} parent=139 // pred_region
          %1219 = dma.done [#allocation30], 2048
        $region212: #{forward_pallas.1} parent=139 // pred_fallthru
          _
        // Predicated region
        $region213: #{forward_pallas.1} parent=139 // pred_check
          %p1220 = pneg %p510
        $region214: #{forward_pallas.1} parent=139 // pred_check_branch
          %1222 = sbr.rel (%p1220) target = $region216
        $region215: #{forward_pallas.1} parent=139 // pred_region
          %1224 = dma.done [#allocation30], 2048
        $region216: #{forward_pallas.1} parent=139 // pred_fallthru
          _
        // Predicated region
        $region217: #{forward_pallas.1} parent=139 // pred_check
          %p1225 = pneg %p531
        $region218: #{forward_pallas.1} parent=139 // pred_check_branch
          %1227 = sbr.rel (%p1225) target = $region220
        $region219: #{forward_pallas.1} parent=139 // pred_region
          %1229 = dma.done [#allocation33], 32
        $region220: #{forward_pallas.1} parent=139 // pred_fallthru
          _
        // Predicated region
        $region221: #{forward_pallas.1} parent=139 // pred_check
          %p1230 = pneg %p552
        $region222: #{forward_pallas.1} parent=139 // pred_check_branch
          %1232 = sbr.rel (%p1230) target = $region224
        $region223: #{forward_pallas.1} parent=139 // pred_region
          %1234 = dma.done [#allocation33], 32
        $region224: #{forward_pallas.1} parent=139 // pred_fallthru
          _
        // Predicated region
        $region225: #{forward_pallas.1} parent=139 // pred_check
          %p1235 = pneg %p573
        $region226: #{forward_pallas.1} parent=139 // pred_check_branch
          %1237 = sbr.rel (%p1235) target = $region228
        $region227: #{forward_pallas.1} parent=139 // pred_region
          %1239 = dma.done [#allocation36], 6144
        $region228: #{forward_pallas.1} parent=139 // pred_fallthru
          _
        // Predicated region
        $region229: #{forward_pallas.1} parent=139 // pred_check
          %p1240 = pneg %p636
        $region230: #{forward_pallas.1} parent=139 // pred_check_branch
          %1242 = sbr.rel (%p1240) target = $region232
        $region231: #{forward_pallas.1} parent=139 // pred_region
          %1244 = dma.done [#allocation36], 16
        $region232: #{forward_pallas.1} parent=139 // pred_fallthru
          _
        // Predicated region
        $region233: #{forward_pallas.1} parent=139 // pred_check
          %p1245 = pneg %p657
        $region234: #{forward_pallas.1} parent=139 // pred_check_branch
          %1247 = sbr.rel (%p1245) target = $region236
        $region235: #{forward_pallas.1} parent=139 // pred_region
          %1249 = dma.done [#allocation39], 512
        $region236: #{forward_pallas.1} parent=139 // pred_fallthru
          _
        // Predicated region
        $region237: #{forward_pallas.1} parent=139 // pred_check
          %p1250 = pneg %p699
        $region238: #{forward_pallas.1} parent=139 // pred_check_branch
          %1252 = sbr.rel (%p1250) target = $region240
        $region239: #{forward_pallas.1} parent=139 // pred_region
          %1254 = dma.done [#allocation39], 1024
        $region240: #{forward_pallas.1} parent=139 // pred_fallthru
          _
        %s1255 = sand.u32 %s98, 1
        %s1256 = scalar_lea.sflag [#allocation3], %s1255
        %s1257 = sand.u32 %s98, 1
        %s1258 = smul.addr %s1257, 16
        %s1259 = scalar_lea.vmem [#allocation2], %s1258
        %p1260 = pneg %p111
        %p1261 = pneg %p108
        %p1262 = pneg %p132
        %p1263 = pneg %p129
        %p1264 = pneg %p153
        %p1265 = pneg %p150
        %p1266 = pneg %p174
        %p1267 = pneg %p171
        %p1268 = pneg %p195
        %p1269 = pneg %p192
        %p1270 = pneg %p216
        %p1271 = pneg %p213
        %p1272 = pneg %p237
        %p1273 = pneg %p234
        %p1274 = pneg %p258
        %p1275 = pneg %p255
        %p1276 = pneg %p279
        %p1277 = pneg %p276
        %p1278 = pneg %p300
        %p1279 = pneg %p297
        %p1280 = pneg %p321
        %p1281 = pneg %p318
        %p1282 = pneg %p342
        %p1283 = pneg %p339
        %p1284 = pneg %p363
        %p1285 = pneg %p360
        %p1286 = pneg %p384
        %p1287 = pneg %p381
        %p1288 = pneg %p405
        %p1289 = pneg %p402
        %p1290 = pneg %p426
        %p1291 = pneg %p423
        %p1292 = pneg %p447
        %p1293 = pneg %p444
        %p1294 = pneg %p468
        %p1295 = pneg %p465
        %p1296 = pneg %p489
        %p1297 = pneg %p486
        %p1298 = pneg %p510
        %p1299 = pneg %p507
        %p1300 = pneg %p531
        %p1301 = pneg %p528
        %p1302 = pneg %p552
        %p1303 = pneg %p549
        %p1304 = pneg %p573
        %p1305 = pneg %p570
        %p1306 = pneg %p594
        %p1307 = pneg %p591
        %p1308 = pneg %p615
        %p1309 = pneg %p612
        %p1310 = pneg %p636
        %p1311 = pneg %p633
        %p1312 = pneg %p657
        %p1313 = pneg %p654
        %p1314 = pneg %p678
        %p1315 = pneg %p675
        %p1316 = pneg %p699
        %p1317 = pneg %p696
        %p1318 = pneg %p720
        %p1319 = pneg %p717
        %p1320 = pneg %p746
        %p1321 = pneg %p743
        %s1322 = sand.u32 %s733, 1
        %s1323 = scalar_lea.sflag [#allocation4], %s1322
        %s1324 = sand.u32 %s733, 1
        %s1325 = scalar_lea.vmem [#allocation41], %s1324
        %v1326 = vld [vmem:[%s1129] sm:$0xff]
        %v1327 = vld [vmem:[%s1129 + $0x8] sm:$0xff]
        %v1328 = vld [vmem:[#allocation5] sm:$0xff]
        %v1329 = vld [vmem:[#allocation5 + $0x8] sm:$0xff]
        %vm1330 = vcmask 130048
        %v1332 = vsel %vm1330, %v1326, 0
        %v1335 = vsel %vm1330, %v1327, 0
        %1337 = vmatpush.msra.mxu0 0.0
        %1338 = vmatpush.msra.mxu0 0.0
        %1339 = vmatpush.msra.mxu0 0.0
        %1340 = vmatpush.msra.mxu0 0.0
        %1341 = vmatpush.msra.mxu0 0.0
        %1342 = vmatpush.msra.mxu0 0.0
        %1343 = vmatpush.msra.mxu0 0.0
        %1344 = vmatpush.msra.mxu0 0.0
        %1345 = vmatpush.msra.mxu0 0.0
        %1346 = vmatpush.msra.mxu0 0.0
        %1347 = vmatpush.msra.mxu0 0.0
        %1348 = vmatpush.msra.mxu0 0.0
        %1349 = vmatpush.msra.mxu0 0.0
        %1350 = vmatpush.msra.mxu0 0.0
        %1351 = vmatpush.msra.mxu0 %v1329
        %1352 = vmatpush.msra.mxu0 %v1328
        %1353 = vmatmul.f32.gmra.mxu0 %v1332
        %v1354 = vpop.f32.mrf.mxu0
        %v1355 = vadd.f32 0.0, %v1354
        %1356 = vmatmul.f32.gmra.mxu0 %v1335
        %v1357 = vpop.f32.mrf.mxu0
        %v1358 = vadd.f32 0.0, %v1357
        %1359 = vdwg.mxu0
        %v1360 = vld [vmem:[#allocation8] sm:$0xff]
        %v1361 = vld [vmem:[#allocation8 + $0x8] sm:$0xff]
        %s1362 = scalar_lea.vmem [#allocation5], 16
        %v1363 = vld [vmem:[%s1362] sm:$0xff]
        %v1364 = vld [vmem:[%s1362 + $0x8] sm:$0xff]
        %1365 = vmatpush.msra.mxu0 0.0
        %1366 = vmatpush.msra.mxu0 0.0
        %1367 = vmatpush.msra.mxu0 0.0
        %1368 = vmatpush.msra.mxu0 0.0
        %1369 = vmatpush.msra.mxu0 0.0
        %1370 = vmatpush.msra.mxu0 0.0
        %1371 = vmatpush.msra.mxu0 0.0
        %1372 = vmatpush.msra.mxu0 0.0
        %1373 = vmatpush.msra.mxu0 0.0
        %1374 = vmatpush.msra.mxu0 0.0
        %1375 = vmatpush.msra.mxu0 0.0
        %1376 = vmatpush.msra.mxu0 0.0
        %1377 = vmatpush.msra.mxu0 0.0
        %1378 = vmatpush.msra.mxu0 0.0
        %1379 = vmatpush.msra.mxu0 %v1364
        %1380 = vmatpush.msra.mxu0 %v1363
        %1381 = vmatmul.f32.gmra.mxu0 %v1332
        %v1382 = vpop.f32.mrf.mxu0
        %v1383 = vadd.f32 0.0, %v1382
        %1384 = vmatmul.f32.gmra.mxu0 %v1335
        %v1385 = vpop.f32.mrf.mxu0
        %v1386 = vadd.f32 0.0, %v1385
        %1387 = vdwg.mxu0
        %s1388 = scalar_lea.vmem [#allocation8], 16
        %v1389 = vld [vmem:[%s1388] sm:$0xff]
        %v1390 = vld [vmem:[%s1388 + $0x8] sm:$0xff]
        %v1392 = vsel %vm1330, %v1389, 0
        %v1395 = vsel %vm1330, %v1390, 0
        %1397 = vmatpush.msra.mxu0 0.0
        %1398 = vmatpush.msra.mxu0 0.0
        %1399 = vmatpush.msra.mxu0 0.0
        %1400 = vmatpush.msra.mxu0 0.0
        %1401 = vmatpush.msra.mxu0 0.0
        %1402 = vmatpush.msra.mxu0 0.0
        %1403 = vmatpush.msra.mxu0 0.0
        %1404 = vmatpush.msra.mxu0 0.0
        %1405 = vmatpush.msra.mxu0 0.0
        %1406 = vmatpush.msra.mxu0 0.0
        %1407 = vmatpush.msra.mxu0 0.0
        %1408 = vmatpush.msra.mxu0 0.0
        %1409 = vmatpush.msra.mxu0 0.0
        %1410 = vmatpush.msra.mxu0 0.0
        %1411 = vmatpush.msra.mxu0 %v1386
        %1412 = vmatpush.msra.mxu0 %v1383
        %1413 = vmatmul.f32.gmra.mxu0 %v1392
        %v1414 = vpop.f32.mrf.mxu0
        %v1415 = vadd.f32 0.0, %v1414
        %1416 = vmatmul.f32.gmra.mxu0 %v1395
        %v1417 = vpop.f32.mrf.mxu0
        %v1418 = vadd.f32 0.0, %v1417
        %1419 = vdwg.mxu0
        %v1421 = vsel %vm1330, %v1360, 0
        %v1424 = vsel %vm1330, %v1361, 0
        %1426 = vmatpush.msra.mxu0 0.0
        %1427 = vmatpush.msra.mxu0 0.0
        %1428 = vmatpush.msra.mxu0 0.0
        %1429 = vmatpush.msra.mxu0 0.0
        %1430 = vmatpush.msra.mxu0 0.0
        %1431 = vmatpush.msra.mxu0 0.0
        %1432 = vmatpush.msra.mxu0 0.0
        %1433 = vmatpush.msra.mxu0 0.0
        %1434 = vmatpush.msra.mxu0 0.0
        %1435 = vmatpush.msra.mxu0 0.0
        %1436 = vmatpush.msra.mxu0 0.0
        %1437 = vmatpush.msra.mxu0 0.0
        %1438 = vmatpush.msra.mxu0 0.0
        %1439 = vmatpush.msra.mxu0 0.0
        %1440 = vmatpush.msra.mxu0 %v1358
        %1441 = vmatpush.msra.mxu0 %v1355
        %1442 = vmatmul.f32.gmra.mxu0 %v1421
        %v1443 = vpop.f32.mrf.mxu0
        %v1444 = vadd.f32 %v1415, %v1443
        %1445 = vmatmul.f32.gmra.mxu0 %v1424
        %v1446 = vpop.f32.mrf.mxu0
        %v1447 = vadd.f32 %v1418, %v1446
        %1448 = vdwg.mxu0
        %s1449 = scalar_lea.vmem [#allocation5], 32
        %v1450 = vld [vmem:[%s1449] sm:$0xff]
        %v1451 = vld [vmem:[%s1449 + $0x8] sm:$0xff]
        %1452 = vmatpush.msra.mxu0 0.0
        %1453 = vmatpush.msra.mxu0 0.0
        %1454 = vmatpush.msra.mxu0 0.0
        %1455 = vmatpush.msra.mxu0 0.0
        %1456 = vmatpush.msra.mxu0 0.0
        %1457 = vmatpush.msra.mxu0 0.0
        %1458 = vmatpush.msra.mxu0 0.0
        %1459 = vmatpush.msra.mxu0 0.0
        %1460 = vmatpush.msra.mxu0 0.0
        %1461 = vmatpush.msra.mxu0 0.0
        %1462 = vmatpush.msra.mxu0 0.0
        %1463 = vmatpush.msra.mxu0 0.0
        %1464 = vmatpush.msra.mxu0 0.0
        %1465 = vmatpush.msra.mxu0 0.0
        %1466 = vmatpush.msra.mxu0 %v1451
        %1467 = vmatpush.msra.mxu0 %v1450
        %1468 = vmatmul.f32.gmra.mxu0 %v1332
        %v1469 = vpop.f32.mrf.mxu0
        %v1470 = vadd.f32 0.0, %v1469
        %1471 = vmatmul.f32.gmra.mxu0 %v1335
        %v1472 = vpop.f32.mrf.mxu0
        %v1473 = vadd.f32 0.0, %v1472
        %1474 = vdwg.mxu0
        %s1475 = scalar_lea.vmem [#allocation8], 32
        %v1476 = vld [vmem:[%s1475] sm:$0xff]
        %v1477 = vld [vmem:[%s1475 + $0x8] sm:$0xff]
        %v1479 = vsel %vm1330, %v1476, 0
        %v1482 = vsel %vm1330, %v1477, 0
        %1484 = vmatpush.msra.mxu0 0.0
        %1485 = vmatpush.msra.mxu0 0.0
        %1486 = vmatpush.msra.mxu0 0.0
        %1487 = vmatpush.msra.mxu0 0.0
        %1488 = vmatpush.msra.mxu0 0.0
        %1489 = vmatpush.msra.mxu0 0.0
        %1490 = vmatpush.msra.mxu0 0.0
        %1491 = vmatpush.msra.mxu0 0.0
        %1492 = vmatpush.msra.mxu0 0.0
        %1493 = vmatpush.msra.mxu0 0.0
        %1494 = vmatpush.msra.mxu0 0.0
        %1495 = vmatpush.msra.mxu0 0.0
        %1496 = vmatpush.msra.mxu0 0.0
        %1497 = vmatpush.msra.mxu0 0.0
        %1498 = vmatpush.msra.mxu0 %v1473
        %1499 = vmatpush.msra.mxu0 %v1470
        %1500 = vmatmul.f32.gmra.mxu0 %v1479
        %v1501 = vpop.f32.mrf.mxu0
        %v1502 = vadd.f32 0.0, %v1501
        %1503 = vmatmul.f32.gmra.mxu0 %v1482
        %v1504 = vpop.f32.mrf.mxu0
        %v1505 = vadd.f32 0.0, %v1504
        %1506 = vdwg.mxu0
        %v1507 = vadd.f32 %v1444, %v1502
        %v1508 = vadd.f32 %v1447, %v1505
        %s1509 = scalar_lea.vmem [#allocation5], 48
        %v1510 = vld [vmem:[%s1509] sm:$0xff]
        %v1511 = vld [vmem:[%s1509 + $0x8] sm:$0xff]
        %1512 = vmatpush.msra.mxu0 0.0
        %1513 = vmatpush.msra.mxu0 0.0
        %1514 = vmatpush.msra.mxu0 0.0
        %1515 = vmatpush.msra.mxu0 0.0
        %1516 = vmatpush.msra.mxu0 0.0
        %1517 = vmatpush.msra.mxu0 0.0
        %1518 = vmatpush.msra.mxu0 0.0
        %1519 = vmatpush.msra.mxu0 0.0
        %1520 = vmatpush.msra.mxu0 0.0
        %1521 = vmatpush.msra.mxu0 0.0
        %1522 = vmatpush.msra.mxu0 0.0
        %1523 = vmatpush.msra.mxu0 0.0
        %1524 = vmatpush.msra.mxu0 0.0
        %1525 = vmatpush.msra.mxu0 0.0
        %1526 = vmatpush.msra.mxu0 %v1511
        %1527 = vmatpush.msra.mxu0 %v1510
        %1528 = vmatmul.f32.gmra.mxu0 %v1332
        %v1529 = vpop.f32.mrf.mxu0
        %v1530 = vadd.f32 0.0, %v1529
        %1531 = vmatmul.f32.gmra.mxu0 %v1335
        %v1532 = vpop.f32.mrf.mxu0
        %v1533 = vadd.f32 0.0, %v1532
        %1534 = vdwg.mxu0
        %s1535 = scalar_lea.vmem [#allocation8], 48
        %v1536 = vld [vmem:[%s1535] sm:$0xff]
        %v1537 = vld [vmem:[%s1535 + $0x8] sm:$0xff]
        %v1539 = vsel %vm1330, %v1536, 0
        %v1542 = vsel %vm1330, %v1537, 0
        %1544 = vmatpush.msra.mxu0 0.0
        %1545 = vmatpush.msra.mxu0 0.0
        %1546 = vmatpush.msra.mxu0 0.0
        %1547 = vmatpush.msra.mxu0 0.0
        %1548 = vmatpush.msra.mxu0 0.0
        %1549 = vmatpush.msra.mxu0 0.0
        %1550 = vmatpush.msra.mxu0 0.0
        %1551 = vmatpush.msra.mxu0 0.0
        %1552 = vmatpush.msra.mxu0 0.0
        %1553 = vmatpush.msra.mxu0 0.0
        %1554 = vmatpush.msra.mxu0 0.0
        %1555 = vmatpush.msra.mxu0 0.0
        %1556 = vmatpush.msra.mxu0 0.0
        %1557 = vmatpush.msra.mxu0 0.0
        %1558 = vmatpush.msra.mxu0 %v1533
        %1559 = vmatpush.msra.mxu0 %v1530
        %1560 = vmatmul.f32.gmra.mxu0 %v1539
        %v1561 = vpop.f32.mrf.mxu0
        %v1562 = vadd.f32 0.0, %v1561
        %1563 = vmatmul.f32.gmra.mxu0 %v1542
        %v1564 = vpop.f32.mrf.mxu0
        %v1565 = vadd.f32 0.0, %v1564
        %1566 = vdwg.mxu0
        %v1567 = vadd.f32 %v1507, %v1562
        %v1568 = vadd.f32 %v1508, %v1565
        %s1569 = scalar_lea.vmem [#allocation5], 64
        %v1570 = vld [vmem:[%s1569] sm:$0xff]
        %v1571 = vld [vmem:[%s1569 + $0x8] sm:$0xff]
        %1572 = vmatpush.msra.mxu0 0.0
        %1573 = vmatpush.msra.mxu0 0.0
        %1574 = vmatpush.msra.mxu0 0.0
        %1575 = vmatpush.msra.mxu0 0.0
        %1576 = vmatpush.msra.mxu0 0.0
        %1577 = vmatpush.msra.mxu0 0.0
        %1578 = vmatpush.msra.mxu0 0.0
        %1579 = vmatpush.msra.mxu0 0.0
        %1580 = vmatpush.msra.mxu0 0.0
        %1581 = vmatpush.msra.mxu0 0.0
        %1582 = vmatpush.msra.mxu0 0.0
        %1583 = vmatpush.msra.mxu0 0.0
        %1584 = vmatpush.msra.mxu0 0.0
        %1585 = vmatpush.msra.mxu0 0.0
        %1586 = vmatpush.msra.mxu0 %v1571
        %1587 = vmatpush.msra.mxu0 %v1570
        %1588 = vmatmul.f32.gmra.mxu0 %v1332
        %v1589 = vpop.f32.mrf.mxu0
        %v1590 = vadd.f32 0.0, %v1589
        %1591 = vmatmul.f32.gmra.mxu0 %v1335
        %v1592 = vpop.f32.mrf.mxu0
        %v1593 = vadd.f32 0.0, %v1592
        %1594 = vdwg.mxu0
        %s1595 = scalar_lea.vmem [#allocation8], 64
        %v1596 = vld [vmem:[%s1595] sm:$0xff]
        %v1597 = vld [vmem:[%s1595 + $0x8] sm:$0xff]
        %v1599 = vsel %vm1330, %v1596, 0
        %v1602 = vsel %vm1330, %v1597, 0
        %1604 = vmatpush.msra.mxu0 0.0
        %1605 = vmatpush.msra.mxu0 0.0
        %1606 = vmatpush.msra.mxu0 0.0
        %1607 = vmatpush.msra.mxu0 0.0
        %1608 = vmatpush.msra.mxu0 0.0
        %1609 = vmatpush.msra.mxu0 0.0
        %1610 = vmatpush.msra.mxu0 0.0
        %1611 = vmatpush.msra.mxu0 0.0
        %1612 = vmatpush.msra.mxu0 0.0
        %1613 = vmatpush.msra.mxu0 0.0
        %1614 = vmatpush.msra.mxu0 0.0
        %1615 = vmatpush.msra.mxu0 0.0
        %1616 = vmatpush.msra.mxu0 0.0
        %1617 = vmatpush.msra.mxu0 0.0
        %1618 = vmatpush.msra.mxu0 %v1593
        %1619 = vmatpush.msra.mxu0 %v1590
        %1620 = vmatmul.f32.gmra.mxu0 %v1599
        %v1621 = vpop.f32.mrf.mxu0
        %v1622 = vadd.f32 0.0, %v1621
        %1623 = vmatmul.f32.gmra.mxu0 %v1602
        %v1624 = vpop.f32.mrf.mxu0
        %v1625 = vadd.f32 0.0, %v1624
        %1626 = vdwg.mxu0
        %v1627 = vadd.f32 %v1567, %v1622
        %v1628 = vadd.f32 %v1568, %v1625
        %v1629 = vld [vmem:[#allocation7] sm:$0x1]
        %v1631 = vperm.slane %v1629, 0
        %v1633 = vadd.f32 %v1627, %v1631
        %v1634 = vadd.f32 %v1628, %v1631
        %v1635 = vmax.f32 %v1633, 0.0
        %v1636 = vmax.f32 %v1634, 0.0
        %v1637 = vld [vmem:[#allocation10] sm:$0xff]
        %v1638 = vld [vmem:[#allocation10 + $0x8] sm:$0xff]
        %v1639 = vld [vmem:[#allocation10 + $0x10] sm:$0xff]
        %v1640 = vld [vmem:[#allocation10 + $0x18] sm:$0xff]
        %v1641 = vld [vmem:[#allocation10 + $0x20] sm:$0xff]
        %v1642 = vld [vmem:[#allocation10 + $0x28] sm:$0xff]
        %v1643 = vld [vmem:[#allocation10 + $0x30] sm:$0xff]
        %v1644 = vld [vmem:[#allocation10 + $0x38] sm:$0xff]
        %v1645 = vld [vmem:[#allocation10 + $0x40] sm:$0xff]
        %v1646 = vld [vmem:[#allocation10 + $0x48] sm:$0xff]
        %v1647 = vld [vmem:[#allocation10 + $0x50] sm:$0xff]
        %v1648 = vld [vmem:[#allocation10 + $0x58] sm:$0xff]
        %v1649 = vld [vmem:[#allocation10 + $0x60] sm:$0xff]
        %v1650 = vld [vmem:[#allocation10 + $0x68] sm:$0xff]
        %v1651 = vld [vmem:[#allocation10 + $0x70] sm:$0xff]
        %v1652 = vld [vmem:[#allocation10 + $0x78] sm:$0xff]
        %1653 = vmatpush.msra.mxu0 %v1652
        %1654 = vmatpush.msra.mxu0 %v1651
        %1655 = vmatpush.msra.mxu0 %v1650
        %1656 = vmatpush.msra.mxu0 %v1649
        %1657 = vmatpush.msra.mxu0 %v1648
        %1658 = vmatpush.msra.mxu0 %v1647
        %1659 = vmatpush.msra.mxu0 %v1646
        %1660 = vmatpush.msra.mxu0 %v1645
        %1661 = vmatpush.msra.mxu0 %v1644
        %1662 = vmatpush.msra.mxu0 %v1643
        %1663 = vmatpush.msra.mxu0 %v1642
        %1664 = vmatpush.msra.mxu0 %v1641
        %1665 = vmatpush.msra.mxu0 %v1640
        %1666 = vmatpush.msra.mxu0 %v1639
        %1667 = vmatpush.msra.mxu0 %v1638
        %1668 = vmatpush.msra.mxu0 %v1637
        %1669 = vmatmul.f32.gmra.mxu0 %v1635
        %v1670 = vpop.f32.mrf.mxu0
        %v1671 = vadd.f32 0.0, %v1670
        %1672 = vmatmul.f32.gmra.mxu0 %v1636
        %v1673 = vpop.f32.mrf.mxu0
        %v1674 = vadd.f32 0.0, %v1673
        %1675 = vdwg.mxu0
        %v1676 = vld [vmem:[#allocation11] sm:$0xff]
        %v1677 = vld [vmem:[#allocation11 + $0x8] sm:$0xff]
        %v1678 = vld [vmem:[#allocation11 + $0x10] sm:$0xff]
        %v1679 = vld [vmem:[#allocation11 + $0x18] sm:$0xff]
        %v1680 = vld [vmem:[#allocation11 + $0x20] sm:$0xff]
        %v1681 = vld [vmem:[#allocation11 + $0x28] sm:$0xff]
        %v1682 = vld [vmem:[#allocation11 + $0x30] sm:$0xff]
        %v1683 = vld [vmem:[#allocation11 + $0x38] sm:$0xff]
        %v1684 = vld [vmem:[#allocation11 + $0x40] sm:$0xff]
        %v1685 = vld [vmem:[#allocation11 + $0x48] sm:$0xff]
        %v1686 = vld [vmem:[#allocation11 + $0x50] sm:$0xff]
        %v1687 = vld [vmem:[#allocation11 + $0x58] sm:$0xff]
        %v1688 = vld [vmem:[#allocation11 + $0x60] sm:$0xff]
        %v1689 = vld [vmem:[#allocation11 + $0x68] sm:$0xff]
        %v1690 = vld [vmem:[#allocation11 + $0x70] sm:$0xff]
        %v1691 = vld [vmem:[#allocation11 + $0x78] sm:$0xff]
        %1692 = vmatpush.msra.mxu0 %v1691
        %1693 = vmatpush.msra.mxu0 %v1690
        %1694 = vmatpush.msra.mxu0 %v1689
        %1695 = vmatpush.msra.mxu0 %v1688
        %1696 = vmatpush.msra.mxu0 %v1687
        %1697 = vmatpush.msra.mxu0 %v1686
        %1698 = vmatpush.msra.mxu0 %v1685
        %1699 = vmatpush.msra.mxu0 %v1684
        %1700 = vmatpush.msra.mxu0 %v1683
        %1701 = vmatpush.msra.mxu0 %v1682
        %1702 = vmatpush.msra.mxu0 %v1681
        %1703 = vmatpush.msra.mxu0 %v1680
        %1704 = vmatpush.msra.mxu0 %v1679
        %1705 = vmatpush.msra.mxu0 %v1678
        %1706 = vmatpush.msra.mxu0 %v1677
        %1707 = vmatpush.msra.mxu0 %v1676
        %1708 = vmatmul.f32.gmra.mxu0 %v1635
        %v1709 = vpop.f32.mrf.mxu0
        %v1710 = vadd.f32 0.0, %v1709
        %1711 = vmatmul.f32.gmra.mxu0 %v1636
        %v1712 = vpop.f32.mrf.mxu0
        %v1713 = vadd.f32 0.0, %v1712
        %1714 = vdwg.mxu0
        %v1715 = vmax.f32 %v1671, %v1710
        %v1716 = vmax.f32 %v1674, %v1713
        %v1717 = vld [vmem:[#allocation13] sm:$0xff]
        %v1719 = vsel %vm1330, %v1717, 0
        %1721 = vmatpush.msra.mxu0 0.0
        %1722 = vmatpush.msra.mxu0 0.0
        %1723 = vmatpush.msra.mxu0 0.0
        %1724 = vmatpush.msra.mxu0 0.0
        %1725 = vmatpush.msra.mxu0 0.0
        %1726 = vmatpush.msra.mxu0 0.0
        %1727 = vmatpush.msra.mxu0 0.0
        %1728 = vmatpush.msra.mxu0 0.0
        %1729 = vmatpush.msra.mxu0 0.0
        %1730 = vmatpush.msra.mxu0 0.0
        %1731 = vmatpush.msra.mxu0 0.0
        %1732 = vmatpush.msra.mxu0 0.0
        %1733 = vmatpush.msra.mxu0 0.0
        %1734 = vmatpush.msra.mxu0 0.0
        %1735 = vmatpush.msra.mxu0 %v1716
        %1736 = vmatpush.msra.mxu0 %v1715
        %1737 = vmatmul.f32.gmra.mxu0 %v1719
        %v1738 = vpop.f32.mrf.mxu0
        %v1739 = vadd.f32 0.0, %v1738
        %1740 = vdwg.mxu0
        %v1741 = vld [vmem:[#allocation14] sm:$0xff]
        %v1743 = vsel %vm1330, %v1741, 0
        %1745 = vmatpush.msra.mxu0 0.0
        %1746 = vmatpush.msra.mxu0 0.0
        %1747 = vmatpush.msra.mxu0 0.0
        %1748 = vmatpush.msra.mxu0 0.0
        %1749 = vmatpush.msra.mxu0 0.0
        %1750 = vmatpush.msra.mxu0 0.0
        %1751 = vmatpush.msra.mxu0 0.0
        %1752 = vmatpush.msra.mxu0 0.0
        %1753 = vmatpush.msra.mxu0 0.0
        %1754 = vmatpush.msra.mxu0 0.0
        %1755 = vmatpush.msra.mxu0 0.0
        %1756 = vmatpush.msra.mxu0 0.0
        %1757 = vmatpush.msra.mxu0 0.0
        %1758 = vmatpush.msra.mxu0 0.0
        %1759 = vmatpush.msra.mxu0 %v1716
        %1760 = vmatpush.msra.mxu0 %v1715
        %1761 = vmatmul.f32.gmra.mxu0 %v1743
        %v1762 = vpop.f32.mrf.mxu0
        %v1763 = vadd.f32 0.0, %v1762
        %1764 = vdwg.mxu0
        %v1765 = vmax.f32 %v1739, %v1763
        %v1766 = vld [vmem:[#allocation16] sm:$0xff]
        %v1767 = vld [vmem:[#allocation16 + $0x8] sm:$0xff]
        %v1768 = vld [vmem:[#allocation16 + $0x10] sm:$0xff]
        %v1769 = vld [vmem:[#allocation16 + $0x18] sm:$0xff]
        %v1770 = vld [vmem:[#allocation16 + $0x20] sm:$0xff]
        %v1771 = vld [vmem:[#allocation16 + $0x28] sm:$0xff]
        %v1772 = vld [vmem:[#allocation16 + $0x30] sm:$0xff]
        %v1773 = vld [vmem:[#allocation16 + $0x38] sm:$0xff]
        %vm1774 = vcmask 523264
        %v1776 = vsel %vm1774, %v1765, 0
        %1778 = vmatpush.msra.mxu0 0.0
        %1779 = vmatpush.msra.mxu0 0.0
        %1780 = vmatpush.msra.mxu0 0.0
        %1781 = vmatpush.msra.mxu0 0.0
        %1782 = vmatpush.msra.mxu0 0.0
        %1783 = vmatpush.msra.mxu0 0.0
        %1784 = vmatpush.msra.mxu0 0.0
        %1785 = vmatpush.msra.mxu0 0.0
        %1786 = vmatpush.msra.mxu0 %v1773
        %1787 = vmatpush.msra.mxu0 %v1772
        %1788 = vmatpush.msra.mxu0 %v1771
        %1789 = vmatpush.msra.mxu0 %v1770
        %1790 = vmatpush.msra.mxu0 %v1769
        %1791 = vmatpush.msra.mxu0 %v1768
        %1792 = vmatpush.msra.mxu0 %v1767
        %1793 = vmatpush.msra.mxu0 %v1766
        %1794 = vmatmul.f32.gmra.mxu0 %v1776
        %v1795 = vpop.f32.mrf.mxu0
        %v1796 = vadd.f32 0.0, %v1795
        %1797 = vdwg.mxu0
        %v1798 = vld [vmem:[#allocation19] sm:$0xff]
        %s1799 = scalar_lea.vmem [#allocation16], 64
        %v1800 = vld [vmem:[%s1799] sm:$0xff]
        %v1801 = vld [vmem:[%s1799 + $0x8] sm:$0xff]
        %v1802 = vld [vmem:[%s1799 + $0x10] sm:$0xff]
        %v1803 = vld [vmem:[%s1799 + $0x18] sm:$0xff]
        %v1804 = vld [vmem:[%s1799 + $0x20] sm:$0xff]
        %v1805 = vld [vmem:[%s1799 + $0x28] sm:$0xff]
        %v1806 = vld [vmem:[%s1799 + $0x30] sm:$0xff]
        %v1807 = vld [vmem:[%s1799 + $0x38] sm:$0xff]
        %1808 = vmatpush.msra.mxu0 0.0
        %1809 = vmatpush.msra.mxu0 0.0
        %1810 = vmatpush.msra.mxu0 0.0
        %1811 = vmatpush.msra.mxu0 0.0
        %1812 = vmatpush.msra.mxu0 0.0
        %1813 = vmatpush.msra.mxu0 0.0
        %1814 = vmatpush.msra.mxu0 0.0
        %1815 = vmatpush.msra.mxu0 0.0
        %1816 = vmatpush.msra.mxu0 %v1807
        %1817 = vmatpush.msra.mxu0 %v1806
        %1818 = vmatpush.msra.mxu0 %v1805
        %1819 = vmatpush.msra.mxu0 %v1804
        %1820 = vmatpush.msra.mxu0 %v1803
        %1821 = vmatpush.msra.mxu0 %v1802
        %1822 = vmatpush.msra.mxu0 %v1801
        %1823 = vmatpush.msra.mxu0 %v1800
        %1824 = vmatmul.f32.gmra.mxu0 %v1776
        %v1825 = vpop.f32.mrf.mxu0
        %v1826 = vadd.f32 0.0, %v1825
        %1827 = vdwg.mxu0
        %s1828 = scalar_lea.vmem [#allocation19], 8
        %v1829 = vld [vmem:[%s1828] sm:$0xff]
        %vm1830 = vcmask 64512
        %v1832 = vsel %vm1830, %v1829, 0
        %1834 = vmatpush.msra.mxu0 0.0
        %1835 = vmatpush.msra.mxu0 0.0
        %1836 = vmatpush.msra.mxu0 0.0
        %1837 = vmatpush.msra.mxu0 0.0
        %1838 = vmatpush.msra.mxu0 0.0
        %1839 = vmatpush.msra.mxu0 0.0
        %1840 = vmatpush.msra.mxu0 0.0
        %1841 = vmatpush.msra.mxu0 0.0
        %1842 = vmatpush.msra.mxu0 0.0
        %1843 = vmatpush.msra.mxu0 0.0
        %1844 = vmatpush.msra.mxu0 0.0
        %1845 = vmatpush.msra.mxu0 0.0
        %1846 = vmatpush.msra.mxu0 0.0
        %1847 = vmatpush.msra.mxu0 0.0
        %1848 = vmatpush.msra.mxu0 0.0
        %1849 = vmatpush.msra.mxu0 %v1826
        %1850 = vmatmul.f32.gmra.mxu0 %v1832
        %v1851 = vpop.f32.mrf.mxu0
        %v1852 = vadd.f32 0.0, %v1851
        %1853 = vdwg.mxu0
        %v1855 = vsel %vm1830, %v1798, 0
        %1857 = vmatpush.msra.mxu0 0.0
        %1858 = vmatpush.msra.mxu0 0.0
        %1859 = vmatpush.msra.mxu0 0.0
        %1860 = vmatpush.msra.mxu0 0.0
        %1861 = vmatpush.msra.mxu0 0.0
        %1862 = vmatpush.msra.mxu0 0.0
        %1863 = vmatpush.msra.mxu0 0.0
        %1864 = vmatpush.msra.mxu0 0.0
        %1865 = vmatpush.msra.mxu0 0.0
        %1866 = vmatpush.msra.mxu0 0.0
        %1867 = vmatpush.msra.mxu0 0.0
        %1868 = vmatpush.msra.mxu0 0.0
        %1869 = vmatpush.msra.mxu0 0.0
        %1870 = vmatpush.msra.mxu0 0.0
        %1871 = vmatpush.msra.mxu0 0.0
        %1872 = vmatpush.msra.mxu0 %v1796
        %1873 = vmatmul.f32.gmra.mxu0 %v1855
        %v1874 = vpop.f32.mrf.mxu0
        %v1875 = vadd.f32 %v1852, %v1874
        %1876 = vdwg.mxu0
        %s1877 = scalar_lea.vmem [#allocation16], 128
        %v1878 = vld [vmem:[%s1877] sm:$0xff]
        %v1879 = vld [vmem:[%s1877 + $0x8] sm:$0xff]
        %v1880 = vld [vmem:[%s1877 + $0x10] sm:$0xff]
        %v1881 = vld [vmem:[%s1877 + $0x18] sm:$0xff]
        %v1882 = vld [vmem:[%s1877 + $0x20] sm:$0xff]
        %v1883 = vld [vmem:[%s1877 + $0x28] sm:$0xff]
        %v1884 = vld [vmem:[%s1877 + $0x30] sm:$0xff]
        %v1885 = vld [vmem:[%s1877 + $0x38] sm:$0xff]
        %1886 = vmatpush.msra.mxu0 0.0
        %1887 = vmatpush.msra.mxu0 0.0
        %1888 = vmatpush.msra.mxu0 0.0
        %1889 = vmatpush.msra.mxu0 0.0
        %1890 = vmatpush.msra.mxu0 0.0
        %1891 = vmatpush.msra.mxu0 0.0
        %1892 = vmatpush.msra.mxu0 0.0
        %1893 = vmatpush.msra.mxu0 0.0
        %1894 = vmatpush.msra.mxu0 %v1885
        %1895 = vmatpush.msra.mxu0 %v1884
        %1896 = vmatpush.msra.mxu0 %v1883
        %1897 = vmatpush.msra.mxu0 %v1882
        %1898 = vmatpush.msra.mxu0 %v1881
        %1899 = vmatpush.msra.mxu0 %v1880
        %1900 = vmatpush.msra.mxu0 %v1879
        %1901 = vmatpush.msra.mxu0 %v1878
        %1902 = vmatmul.f32.gmra.mxu0 %v1776
        %v1903 = vpop.f32.mrf.mxu0
        %v1904 = vadd.f32 0.0, %v1903
        %1905 = vdwg.mxu0
        %s1906 = scalar_lea.vmem [#allocation19], 16
        %v1907 = vld [vmem:[%s1906] sm:$0xff]
        %v1909 = vsel %vm1830, %v1907, 0
        %1911 = vmatpush.msra.mxu0 0.0
        %1912 = vmatpush.msra.mxu0 0.0
        %1913 = vmatpush.msra.mxu0 0.0
        %1914 = vmatpush.msra.mxu0 0.0
        %1915 = vmatpush.msra.mxu0 0.0
        %1916 = vmatpush.msra.mxu0 0.0
        %1917 = vmatpush.msra.mxu0 0.0
        %1918 = vmatpush.msra.mxu0 0.0
        %1919 = vmatpush.msra.mxu0 0.0
        %1920 = vmatpush.msra.mxu0 0.0
        %1921 = vmatpush.msra.mxu0 0.0
        %1922 = vmatpush.msra.mxu0 0.0
        %1923 = vmatpush.msra.mxu0 0.0
        %1924 = vmatpush.msra.mxu0 0.0
        %1925 = vmatpush.msra.mxu0 0.0
        %1926 = vmatpush.msra.mxu0 %v1904
        %1927 = vmatmul.f32.gmra.mxu0 %v1909
        %v1928 = vpop.f32.mrf.mxu0
        %v1929 = vadd.f32 0.0, %v1928
        %1930 = vdwg.mxu0
        %v1931 = vadd.f32 %v1875, %v1929
        %s1932 = scalar_lea.vmem [#allocation16], 192
        %v1933 = vld [vmem:[%s1932] sm:$0xff]
        %v1934 = vld [vmem:[%s1932 + $0x8] sm:$0xff]
        %v1935 = vld [vmem:[%s1932 + $0x10] sm:$0xff]
        %v1936 = vld [vmem:[%s1932 + $0x18] sm:$0xff]
        %v1937 = vld [vmem:[%s1932 + $0x20] sm:$0xff]
        %v1938 = vld [vmem:[%s1932 + $0x28] sm:$0xff]
        %v1939 = vld [vmem:[%s1932 + $0x30] sm:$0xff]
        %v1940 = vld [vmem:[%s1932 + $0x38] sm:$0xff]
        %1941 = vmatpush.msra.mxu0 0.0
        %1942 = vmatpush.msra.mxu0 0.0
        %1943 = vmatpush.msra.mxu0 0.0
        %1944 = vmatpush.msra.mxu0 0.0
        %1945 = vmatpush.msra.mxu0 0.0
        %1946 = vmatpush.msra.mxu0 0.0
        %1947 = vmatpush.msra.mxu0 0.0
        %1948 = vmatpush.msra.mxu0 0.0
        %1949 = vmatpush.msra.mxu0 %v1940
        %1950 = vmatpush.msra.mxu0 %v1939
        %1951 = vmatpush.msra.mxu0 %v1938
        %1952 = vmatpush.msra.mxu0 %v1937
        %1953 = vmatpush.msra.mxu0 %v1936
        %1954 = vmatpush.msra.mxu0 %v1935
        %1955 = vmatpush.msra.mxu0 %v1934
        %1956 = vmatpush.msra.mxu0 %v1933
        %1957 = vmatmul.f32.gmra.mxu0 %v1776
        %v1958 = vpop.f32.mrf.mxu0
        %v1959 = vadd.f32 0.0, %v1958
        %1960 = vdwg.mxu0
        %s1961 = scalar_lea.vmem [#allocation19], 24
        %v1962 = vld [vmem:[%s1961] sm:$0xff]
        %v1964 = vsel %vm1830, %v1962, 0
        %1966 = vmatpush.msra.mxu0 0.0
        %1967 = vmatpush.msra.mxu0 0.0
        %1968 = vmatpush.msra.mxu0 0.0
        %1969 = vmatpush.msra.mxu0 0.0
        %1970 = vmatpush.msra.mxu0 0.0
        %1971 = vmatpush.msra.mxu0 0.0
        %1972 = vmatpush.msra.mxu0 0.0
        %1973 = vmatpush.msra.mxu0 0.0
        %1974 = vmatpush.msra.mxu0 0.0
        %1975 = vmatpush.msra.mxu0 0.0
        %1976 = vmatpush.msra.mxu0 0.0
        %1977 = vmatpush.msra.mxu0 0.0
        %1978 = vmatpush.msra.mxu0 0.0
        %1979 = vmatpush.msra.mxu0 0.0
        %1980 = vmatpush.msra.mxu0 0.0
        %1981 = vmatpush.msra.mxu0 %v1959
        %1982 = vmatmul.f32.gmra.mxu0 %v1964
        %v1983 = vpop.f32.mrf.mxu0
        %v1984 = vadd.f32 0.0, %v1983
        %1985 = vdwg.mxu0
        %v1986 = vadd.f32 %v1931, %v1984
        %s1987 = scalar_lea.vmem [#allocation16], 256
        %v1988 = vld [vmem:[%s1987] sm:$0xff]
        %v1989 = vld [vmem:[%s1987 + $0x8] sm:$0xff]
        %v1990 = vld [vmem:[%s1987 + $0x10] sm:$0xff]
        %v1991 = vld [vmem:[%s1987 + $0x18] sm:$0xff]
        %v1992 = vld [vmem:[%s1987 + $0x20] sm:$0xff]
        %v1993 = vld [vmem:[%s1987 + $0x28] sm:$0xff]
        %v1994 = vld [vmem:[%s1987 + $0x30] sm:$0xff]
        %v1995 = vld [vmem:[%s1987 + $0x38] sm:$0xff]
        %1996 = vmatpush.msra.mxu0 0.0
        %1997 = vmatpush.msra.mxu0 0.0
        %1998 = vmatpush.msra.mxu0 0.0
        %1999 = vmatpush.msra.mxu0 0.0
        %2000 = vmatpush.msra.mxu0 0.0
        %2001 = vmatpush.msra.mxu0 0.0
        %2002 = vmatpush.msra.mxu0 0.0
        %2003 = vmatpush.msra.mxu0 0.0
        %2004 = vmatpush.msra.mxu0 %v1995
        %2005 = vmatpush.msra.mxu0 %v1994
        %2006 = vmatpush.msra.mxu0 %v1993
        %2007 = vmatpush.msra.mxu0 %v1992
        %2008 = vmatpush.msra.mxu0 %v1991
        %2009 = vmatpush.msra.mxu0 %v1990
        %2010 = vmatpush.msra.mxu0 %v1989
        %2011 = vmatpush.msra.mxu0 %v1988
        %2012 = vmatmul.f32.gmra.mxu0 %v1776
        %v2013 = vpop.f32.mrf.mxu0
        %v2014 = vadd.f32 0.0, %v2013
        %2015 = vdwg.mxu0
        %s2016 = scalar_lea.vmem [#allocation19], 32
        %v2017 = vld [vmem:[%s2016] sm:$0xff]
        %v2019 = vsel %vm1830, %v2017, 0
        %2021 = vmatpush.msra.mxu0 0.0
        %2022 = vmatpush.msra.mxu0 0.0
        %2023 = vmatpush.msra.mxu0 0.0
        %2024 = vmatpush.msra.mxu0 0.0
        %2025 = vmatpush.msra.mxu0 0.0
        %2026 = vmatpush.msra.mxu0 0.0
        %2027 = vmatpush.msra.mxu0 0.0
        %2028 = vmatpush.msra.mxu0 0.0
        %2029 = vmatpush.msra.mxu0 0.0
        %2030 = vmatpush.msra.mxu0 0.0
        %2031 = vmatpush.msra.mxu0 0.0
        %2032 = vmatpush.msra.mxu0 0.0
        %2033 = vmatpush.msra.mxu0 0.0
        %2034 = vmatpush.msra.mxu0 0.0
        %2035 = vmatpush.msra.mxu0 0.0
        %2036 = vmatpush.msra.mxu0 %v2014
        %2037 = vmatmul.f32.gmra.mxu0 %v2019
        %v2038 = vpop.f32.mrf.mxu0
        %v2039 = vadd.f32 0.0, %v2038
        %2040 = vdwg.mxu0
        %v2041 = vadd.f32 %v1986, %v2039
        %v2042 = vld [vmem:[#allocation17] sm:$0x1]
        %v2044 = vperm.slane %v2042, 0
        %v2046 = vadd.f32 %v2041, %v2044
        %v2047 = vmax.f32 %v2046, 0.0
        %v2048 = vld [vmem:[#allocation20] sm:$0xff]
        %v2049 = vld [vmem:[#allocation20 + $0x8] sm:$0xff]
        %v2050 = vld [vmem:[#allocation20 + $0x10] sm:$0xff]
        %v2051 = vld [vmem:[#allocation20 + $0x18] sm:$0xff]
        %v2052 = vld [vmem:[#allocation20 + $0x20] sm:$0xff]
        %v2053 = vld [vmem:[#allocation20 + $0x28] sm:$0xff]
        %v2054 = vld [vmem:[#allocation20 + $0x30] sm:$0xff]
        %v2055 = vld [vmem:[#allocation20 + $0x38] sm:$0xff]
        %v2056 = vld [vmem:[#allocation20 + $0x40] sm:$0xff]
        %v2057 = vld [vmem:[#allocation20 + $0x48] sm:$0xff]
        %v2058 = vld [vmem:[#allocation20 + $0x50] sm:$0xff]
        %v2059 = vld [vmem:[#allocation20 + $0x58] sm:$0xff]
        %v2060 = vld [vmem:[#allocation20 + $0x60] sm:$0xff]
        %v2061 = vld [vmem:[#allocation20 + $0x68] sm:$0xff]
        %v2062 = vld [vmem:[#allocation20 + $0x70] sm:$0xff]
        %v2063 = vld [vmem:[#allocation20 + $0x78] sm:$0xff]
        %2064 = vmatpush.msra.mxu0 %v2063
        %2065 = vmatpush.msra.mxu0 %v2062
        %2066 = vmatpush.msra.mxu0 %v2061
        %2067 = vmatpush.msra.mxu0 %v2060
        %2068 = vmatpush.msra.mxu0 %v2059
        %2069 = vmatpush.msra.mxu0 %v2058
        %2070 = vmatpush.msra.mxu0 %v2057
        %2071 = vmatpush.msra.mxu0 %v2056
        %2072 = vmatpush.msra.mxu0 %v2055
        %2073 = vmatpush.msra.mxu0 %v2054
        %2074 = vmatpush.msra.mxu0 %v2053
        %2075 = vmatpush.msra.mxu0 %v2052
        %2076 = vmatpush.msra.mxu0 %v2051
        %2077 = vmatpush.msra.mxu0 %v2050
        %2078 = vmatpush.msra.mxu0 %v2049
        %2079 = vmatpush.msra.mxu0 %v2048
        %2080 = vmatmul.f32.gmra.mxu0 %v2047
        %v2081 = vpop.f32.mrf.mxu0
        %v2082 = vadd.f32 0.0, %v2081
        %2083 = vdwg.mxu0
        %v2084 = vld [vmem:[#allocation22] sm:$0xff]
        %v2085 = vld [vmem:[#allocation22 + $0x8] sm:$0xff]
        %v2086 = vld [vmem:[#allocation22 + $0x10] sm:$0xff]
        %v2087 = vld [vmem:[#allocation22 + $0x18] sm:$0xff]
        %v2088 = vld [vmem:[#allocation22 + $0x20] sm:$0xff]
        %v2089 = vld [vmem:[#allocation22 + $0x28] sm:$0xff]
        %v2090 = vld [vmem:[#allocation22 + $0x30] sm:$0xff]
        %v2091 = vld [vmem:[#allocation22 + $0x38] sm:$0xff]
        %v2092 = vld [vmem:[#allocation22 + $0x40] sm:$0xff]
        %v2093 = vld [vmem:[#allocation22 + $0x48] sm:$0xff]
        %v2094 = vld [vmem:[#allocation22 + $0x50] sm:$0xff]
        %v2095 = vld [vmem:[#allocation22 + $0x58] sm:$0xff]
        %v2096 = vld [vmem:[#allocation22 + $0x60] sm:$0xff]
        %v2097 = vld [vmem:[#allocation22 + $0x68] sm:$0xff]
        %v2098 = vld [vmem:[#allocation22 + $0x70] sm:$0xff]
        %v2099 = vld [vmem:[#allocation22 + $0x78] sm:$0xff]
        %2100 = vmatpush.msra.mxu0 %v2099
        %2101 = vmatpush.msra.mxu0 %v2098
        %2102 = vmatpush.msra.mxu0 %v2097
        %2103 = vmatpush.msra.mxu0 %v2096
        %2104 = vmatpush.msra.mxu0 %v2095
        %2105 = vmatpush.msra.mxu0 %v2094
        %2106 = vmatpush.msra.mxu0 %v2093
        %2107 = vmatpush.msra.mxu0 %v2092
        %2108 = vmatpush.msra.mxu0 %v2091
        %2109 = vmatpush.msra.mxu0 %v2090
        %2110 = vmatpush.msra.mxu0 %v2089
        %2111 = vmatpush.msra.mxu0 %v2088
        %2112 = vmatpush.msra.mxu0 %v2087
        %2113 = vmatpush.msra.mxu0 %v2086
        %2114 = vmatpush.msra.mxu0 %v2085
        %2115 = vmatpush.msra.mxu0 %v2084
        %2116 = vmatmul.f32.gmra.mxu0 %v2047
        %v2117 = vpop.f32.mrf.mxu0
        %v2118 = vadd.f32 0.0, %v2117
        %2119 = vdwg.mxu0
        %v2120 = vmax.f32 %v2082, %v2118
        %v2121 = vld [vmem:[#allocation23] sm:$0xf]
        %v2123 = vsel %vm1830, %v2121, 0
        %2125 = vmatpush.msra.mxu0 0.0
        %2126 = vmatpush.msra.mxu0 0.0
        %2127 = vmatpush.msra.mxu0 0.0
        %2128 = vmatpush.msra.mxu0 0.0
        %2129 = vmatpush.msra.mxu0 0.0
        %2130 = vmatpush.msra.mxu0 0.0
        %2131 = vmatpush.msra.mxu0 0.0
        %2132 = vmatpush.msra.mxu0 0.0
        %2133 = vmatpush.msra.mxu0 0.0
        %2134 = vmatpush.msra.mxu0 0.0
        %2135 = vmatpush.msra.mxu0 0.0
        %2136 = vmatpush.msra.mxu0 0.0
        %2137 = vmatpush.msra.mxu0 0.0
        %2138 = vmatpush.msra.mxu0 0.0
        %2139 = vmatpush.msra.mxu0 0.0
        %2140 = vmatpush.msra.mxu0 %v2120
        %2141 = vmatmul.f32.gmra.mxu0 %v2123
        %v2142 = vpop.f32.mrf.mxu0
        %v2143 = vadd.f32 0.0, %v2142
        %2144 = vdwg.mxu0
        %v2145 = vld [vmem:[#allocation25] sm:$0xf]
        %v2147 = vsel %vm1830, %v2145, 0
        %2149 = vmatpush.msra.mxu0 0.0
        %2150 = vmatpush.msra.mxu0 0.0
        %2151 = vmatpush.msra.mxu0 0.0
        %2152 = vmatpush.msra.mxu0 0.0
        %2153 = vmatpush.msra.mxu0 0.0
        %2154 = vmatpush.msra.mxu0 0.0
        %2155 = vmatpush.msra.mxu0 0.0
        %2156 = vmatpush.msra.mxu0 0.0
        %2157 = vmatpush.msra.mxu0 0.0
        %2158 = vmatpush.msra.mxu0 0.0
        %2159 = vmatpush.msra.mxu0 0.0
        %2160 = vmatpush.msra.mxu0 0.0
        %2161 = vmatpush.msra.mxu0 0.0
        %2162 = vmatpush.msra.mxu0 0.0
        %2163 = vmatpush.msra.mxu0 0.0
        %2164 = vmatpush.msra.mxu0 %v2120
        %2165 = vmatmul.f32.gmra.mxu0 %v2147
        %v2166 = vpop.f32.mrf.mxu0
        %v2167 = vadd.f32 0.0, %v2166
        %2168 = vdwg.mxu0
        %v2169 = vmax.f32 %v2143, %v2167
        %v2170 = vld [vmem:[#allocation26] sm:$0xff]
        %v2171 = vld [vmem:[#allocation26 + $0x8] sm:$0xff]
        %v2172 = vld [vmem:[#allocation26 + $0x10] sm:$0xff]
        %v2173 = vld [vmem:[#allocation26 + $0x18] sm:$0xff]
        %v2174 = vld [vmem:[#allocation26 + $0x20] sm:$0xff]
        %v2175 = vld [vmem:[#allocation26 + $0x28] sm:$0xff]
        %v2176 = vld [vmem:[#allocation26 + $0x30] sm:$0xff]
        %v2177 = vld [vmem:[#allocation26 + $0x38] sm:$0xff]
        %v2179 = vsel %vm1774, %v2169, 0
        %2181 = vmatpush.msra.mxu0 0.0
        %2182 = vmatpush.msra.mxu0 0.0
        %2183 = vmatpush.msra.mxu0 0.0
        %2184 = vmatpush.msra.mxu0 0.0
        %2185 = vmatpush.msra.mxu0 0.0
        %2186 = vmatpush.msra.mxu0 0.0
        %2187 = vmatpush.msra.mxu0 0.0
        %2188 = vmatpush.msra.mxu0 0.0
        %2189 = vmatpush.msra.mxu0 %v2177
        %2190 = vmatpush.msra.mxu0 %v2176
        %2191 = vmatpush.msra.mxu0 %v2175
        %2192 = vmatpush.msra.mxu0 %v2174
        %2193 = vmatpush.msra.mxu0 %v2173
        %2194 = vmatpush.msra.mxu0 %v2172
        %2195 = vmatpush.msra.mxu0 %v2171
        %2196 = vmatpush.msra.mxu0 %v2170
        %2197 = vmatmul.f32.gmra.mxu0 %v2179
        %v2198 = vpop.f32.mrf.mxu0
        %v2199 = vadd.f32 0.0, %v2198
        %2200 = vdwg.mxu0
        %v2201 = vld [vmem:[%s35] sm:$0xf]
        %s2202 = scalar_lea.vmem [#allocation26], 64
        %v2203 = vld [vmem:[%s2202] sm:$0xff]
        %v2204 = vld [vmem:[%s2202 + $0x8] sm:$0xff]
        %v2205 = vld [vmem:[%s2202 + $0x10] sm:$0xff]
        %v2206 = vld [vmem:[%s2202 + $0x18] sm:$0xff]
        %v2207 = vld [vmem:[%s2202 + $0x20] sm:$0xff]
        %v2208 = vld [vmem:[%s2202 + $0x28] sm:$0xff]
        %v2209 = vld [vmem:[%s2202 + $0x30] sm:$0xff]
        %v2210 = vld [vmem:[%s2202 + $0x38] sm:$0xff]
        %2211 = vmatpush.msra.mxu0 0.0
        %2212 = vmatpush.msra.mxu0 0.0
        %2213 = vmatpush.msra.mxu0 0.0
        %2214 = vmatpush.msra.mxu0 0.0
        %2215 = vmatpush.msra.mxu0 0.0
        %2216 = vmatpush.msra.mxu0 0.0
        %2217 = vmatpush.msra.mxu0 0.0
        %2218 = vmatpush.msra.mxu0 0.0
        %2219 = vmatpush.msra.mxu0 %v2210
        %2220 = vmatpush.msra.mxu0 %v2209
        %2221 = vmatpush.msra.mxu0 %v2208
        %2222 = vmatpush.msra.mxu0 %v2207
        %2223 = vmatpush.msra.mxu0 %v2206
        %2224 = vmatpush.msra.mxu0 %v2205
        %2225 = vmatpush.msra.mxu0 %v2204
        %2226 = vmatpush.msra.mxu0 %v2203
        %2227 = vmatmul.f32.gmra.mxu0 %v2179
        %v2228 = vpop.f32.mrf.mxu0
        %v2229 = vadd.f32 0.0, %v2228
        %2230 = vdwg.mxu0
        %s2231 = scalar_lea.vmem %s35, 4
        %v2232 = vld [vmem:[%s2231] sm:$0xf]
        %vm2233 = vcmask 31744
        %v2235 = vsel %vm2233, %v2232, 0
        %vm2237 = vcmask 1043456
        %v2239 = vsel %vm2237, %v2229, 0
        %2241 = vmatpush.msra.mxu0 0.0
        %2242 = vmatpush.msra.mxu0 0.0
        %2243 = vmatpush.msra.mxu0 0.0
        %2244 = vmatpush.msra.mxu0 0.0
        %2245 = vmatpush.msra.mxu0 0.0
        %2246 = vmatpush.msra.mxu0 0.0
        %2247 = vmatpush.msra.mxu0 0.0
        %2248 = vmatpush.msra.mxu0 0.0
        %2249 = vmatpush.msra.mxu0 0.0
        %2250 = vmatpush.msra.mxu0 0.0
        %2251 = vmatpush.msra.mxu0 0.0
        %2252 = vmatpush.msra.mxu0 0.0
        %2253 = vmatpush.msra.mxu0 0.0
        %2254 = vmatpush.msra.mxu0 0.0
        %2255 = vmatpush.msra.mxu0 0.0
        %2256 = vmatpush.msra.mxu0 %v2239
        %2257 = vmatmul.f32.gmra.mxu0 %v2235
        %v2258 = vpop.f32.mrf.mxu0
        %v2259 = vadd.f32 0.0, %v2258
        %2260 = vdwg.mxu0
        %v2262 = vsel %vm2233, %v2201, 0
        %v2265 = vsel %vm2237, %v2199, 0
        %2267 = vmatpush.msra.mxu0 0.0
        %2268 = vmatpush.msra.mxu0 0.0
        %2269 = vmatpush.msra.mxu0 0.0
        %2270 = vmatpush.msra.mxu0 0.0
        %2271 = vmatpush.msra.mxu0 0.0
        %2272 = vmatpush.msra.mxu0 0.0
        %2273 = vmatpush.msra.mxu0 0.0
        %2274 = vmatpush.msra.mxu0 0.0
        %2275 = vmatpush.msra.mxu0 0.0
        %2276 = vmatpush.msra.mxu0 0.0
        %2277 = vmatpush.msra.mxu0 0.0
        %2278 = vmatpush.msra.mxu0 0.0
        %2279 = vmatpush.msra.mxu0 0.0
        %2280 = vmatpush.msra.mxu0 0.0
        %2281 = vmatpush.msra.mxu0 0.0
        %2282 = vmatpush.msra.mxu0 %v2265
        %2283 = vmatmul.f32.gmra.mxu0 %v2262
        %v2284 = vpop.f32.mrf.mxu0
        %v2285 = vadd.f32 %v2259, %v2284
        %2286 = vdwg.mxu0
        %s2287 = scalar_lea.vmem [#allocation26], 128
        %v2288 = vld [vmem:[%s2287] sm:$0xff]
        %v2289 = vld [vmem:[%s2287 + $0x8] sm:$0xff]
        %v2290 = vld [vmem:[%s2287 + $0x10] sm:$0xff]
        %v2291 = vld [vmem:[%s2287 + $0x18] sm:$0xff]
        %v2292 = vld [vmem:[%s2287 + $0x20] sm:$0xff]
        %v2293 = vld [vmem:[%s2287 + $0x28] sm:$0xff]
        %v2294 = vld [vmem:[%s2287 + $0x30] sm:$0xff]
        %v2295 = vld [vmem:[%s2287 + $0x38] sm:$0xff]
        %2296 = vmatpush.msra.mxu0 0.0
        %2297 = vmatpush.msra.mxu0 0.0
        %2298 = vmatpush.msra.mxu0 0.0
        %2299 = vmatpush.msra.mxu0 0.0
        %2300 = vmatpush.msra.mxu0 0.0
        %2301 = vmatpush.msra.mxu0 0.0
        %2302 = vmatpush.msra.mxu0 0.0
        %2303 = vmatpush.msra.mxu0 0.0
        %2304 = vmatpush.msra.mxu0 %v2295
        %2305 = vmatpush.msra.mxu0 %v2294
        %2306 = vmatpush.msra.mxu0 %v2293
        %2307 = vmatpush.msra.mxu0 %v2292
        %2308 = vmatpush.msra.mxu0 %v2291
        %2309 = vmatpush.msra.mxu0 %v2290
        %2310 = vmatpush.msra.mxu0 %v2289
        %2311 = vmatpush.msra.mxu0 %v2288
        %2312 = vmatmul.f32.gmra.mxu0 %v2179
        %v2313 = vpop.f32.mrf.mxu0
        %v2314 = vadd.f32 0.0, %v2313
        %2315 = vdwg.mxu0
        %s2316 = scalar_lea.vmem %s35, 8
        %v2317 = vld [vmem:[%s2316] sm:$0xf]
        %v2319 = vsel %vm2233, %v2317, 0
        %v2322 = vsel %vm2237, %v2314, 0
        %2324 = vmatpush.msra.mxu0 0.0
        %2325 = vmatpush.msra.mxu0 0.0
        %2326 = vmatpush.msra.mxu0 0.0
        %2327 = vmatpush.msra.mxu0 0.0
        %2328 = vmatpush.msra.mxu0 0.0
        %2329 = vmatpush.msra.mxu0 0.0
        %2330 = vmatpush.msra.mxu0 0.0
        %2331 = vmatpush.msra.mxu0 0.0
        %2332 = vmatpush.msra.mxu0 0.0
        %2333 = vmatpush.msra.mxu0 0.0
        %2334 = vmatpush.msra.mxu0 0.0
        %2335 = vmatpush.msra.mxu0 0.0
        %2336 = vmatpush.msra.mxu0 0.0
        %2337 = vmatpush.msra.mxu0 0.0
        %2338 = vmatpush.msra.mxu0 0.0
        %2339 = vmatpush.msra.mxu0 %v2322
        %2340 = vmatmul.f32.gmra.mxu0 %v2319
        %v2341 = vpop.f32.mrf.mxu0
        %v2342 = vadd.f32 0.0, %v2341
        %2343 = vdwg.mxu0
        %v2344 = vadd.f32 %v2285, %v2342
        %v2345 = vld [vmem:[#allocation28] sm:$0x1]
        %v2347 = vperm.slane %v2345, 0
        %v2349 = vadd.f32 %v2344, %v2347
        %v2350 = vmax.f32 %v2349, 0.0
        %v2351 = vld [vmem:[#allocation29] sm:$0xff]
        %v2352 = vld [vmem:[#allocation29 + $0x8] sm:$0xff]
        %v2353 = vld [vmem:[#allocation29 + $0x10] sm:$0xff]
        %v2354 = vld [vmem:[#allocation29 + $0x18] sm:$0xff]
        %v2355 = vld [vmem:[#allocation29 + $0x20] sm:$0xff]
        %v2356 = vld [vmem:[#allocation29 + $0x28] sm:$0xff]
        %v2357 = vld [vmem:[#allocation29 + $0x30] sm:$0xff]
        %v2358 = vld [vmem:[#allocation29 + $0x38] sm:$0xff]
        %v2359 = vld [vmem:[#allocation29 + $0x40] sm:$0xff]
        %v2360 = vld [vmem:[#allocation29 + $0x48] sm:$0xff]
        %v2361 = vld [vmem:[#allocation29 + $0x50] sm:$0xff]
        %v2362 = vld [vmem:[#allocation29 + $0x58] sm:$0xff]
        %v2363 = vld [vmem:[#allocation29 + $0x60] sm:$0xff]
        %v2364 = vld [vmem:[#allocation29 + $0x68] sm:$0xff]
        %v2365 = vld [vmem:[#allocation29 + $0x70] sm:$0xff]
        %v2366 = vld [vmem:[#allocation29 + $0x78] sm:$0xff]
        %2367 = vmatpush.msra.mxu0 %v2366
        %2368 = vmatpush.msra.mxu0 %v2365
        %2369 = vmatpush.msra.mxu0 %v2364
        %2370 = vmatpush.msra.mxu0 %v2363
        %2371 = vmatpush.msra.mxu0 %v2362
        %2372 = vmatpush.msra.mxu0 %v2361
        %2373 = vmatpush.msra.mxu0 %v2360
        %2374 = vmatpush.msra.mxu0 %v2359
        %2375 = vmatpush.msra.mxu0 %v2358
        %2376 = vmatpush.msra.mxu0 %v2357
        %2377 = vmatpush.msra.mxu0 %v2356
        %2378 = vmatpush.msra.mxu0 %v2355
        %2379 = vmatpush.msra.mxu0 %v2354
        %2380 = vmatpush.msra.mxu0 %v2353
        %2381 = vmatpush.msra.mxu0 %v2352
        %2382 = vmatpush.msra.mxu0 %v2351
        %2383 = vmatmul.f32.gmra.mxu0 %v2350
        %v2384 = vpop.f32.mrf.mxu0
        %v2385 = vadd.f32 0.0, %v2384
        %2386 = vdwg.mxu0
        %v2387 = vld [vmem:[#allocation31] sm:$0xff]
        %v2388 = vld [vmem:[#allocation31 + $0x8] sm:$0xff]
        %v2389 = vld [vmem:[#allocation31 + $0x10] sm:$0xff]
        %v2390 = vld [vmem:[#allocation31 + $0x18] sm:$0xff]
        %v2391 = vld [vmem:[#allocation31 + $0x20] sm:$0xff]
        %v2392 = vld [vmem:[#allocation31 + $0x28] sm:$0xff]
        %v2393 = vld [vmem:[#allocation31 + $0x30] sm:$0xff]
        %v2394 = vld [vmem:[#allocation31 + $0x38] sm:$0xff]
        %v2395 = vld [vmem:[#allocation31 + $0x40] sm:$0xff]
        %v2396 = vld [vmem:[#allocation31 + $0x48] sm:$0xff]
        %v2397 = vld [vmem:[#allocation31 + $0x50] sm:$0xff]
        %v2398 = vld [vmem:[#allocation31 + $0x58] sm:$0xff]
        %v2399 = vld [vmem:[#allocation31 + $0x60] sm:$0xff]
        %v2400 = vld [vmem:[#allocation31 + $0x68] sm:$0xff]
        %v2401 = vld [vmem:[#allocation31 + $0x70] sm:$0xff]
        %v2402 = vld [vmem:[#allocation31 + $0x78] sm:$0xff]
        %2403 = vmatpush.msra.mxu0 %v2402
        %2404 = vmatpush.msra.mxu0 %v2401
        %2405 = vmatpush.msra.mxu0 %v2400
        %2406 = vmatpush.msra.mxu0 %v2399
        %2407 = vmatpush.msra.mxu0 %v2398
        %2408 = vmatpush.msra.mxu0 %v2397
        %2409 = vmatpush.msra.mxu0 %v2396
        %2410 = vmatpush.msra.mxu0 %v2395
        %2411 = vmatpush.msra.mxu0 %v2394
        %2412 = vmatpush.msra.mxu0 %v2393
        %2413 = vmatpush.msra.mxu0 %v2392
        %2414 = vmatpush.msra.mxu0 %v2391
        %2415 = vmatpush.msra.mxu0 %v2390
        %2416 = vmatpush.msra.mxu0 %v2389
        %2417 = vmatpush.msra.mxu0 %v2388
        %2418 = vmatpush.msra.mxu0 %v2387
        %2419 = vmatmul.f32.gmra.mxu0 %v2350
        %v2420 = vpop.f32.mrf.mxu0
        %v2421 = vadd.f32 0.0, %v2420
        %2422 = vdwg.mxu0
        %v2423 = vmax.f32 %v2385, %v2421
        %v2424 = vld [vmem:[#allocation32] sm:$0x3]
        %v2426 = vsel %vm2233, %v2424, 0
        %v2429 = vsel %vm2237, %v2423, 0
        %2431 = vmatpush.msra.mxu0 0.0
        %2432 = vmatpush.msra.mxu0 0.0
        %2433 = vmatpush.msra.mxu0 0.0
        %2434 = vmatpush.msra.mxu0 0.0
        %2435 = vmatpush.msra.mxu0 0.0
        %2436 = vmatpush.msra.mxu0 0.0
        %2437 = vmatpush.msra.mxu0 0.0
        %2438 = vmatpush.msra.mxu0 0.0
        %2439 = vmatpush.msra.mxu0 0.0
        %2440 = vmatpush.msra.mxu0 0.0
        %2441 = vmatpush.msra.mxu0 0.0
        %2442 = vmatpush.msra.mxu0 0.0
        %2443 = vmatpush.msra.mxu0 0.0
        %2444 = vmatpush.msra.mxu0 0.0
        %2445 = vmatpush.msra.mxu0 0.0
        %2446 = vmatpush.msra.mxu0 %v2429
        %2447 = vmatmul.f32.gmra.mxu0 %v2426
        %v2448 = vpop.f32.mrf.mxu0
        %v2449 = vadd.f32 0.0, %v2448
        %2450 = vdwg.mxu0
        %v2451 = vld [vmem:[#allocation34] sm:$0x3]
        %v2453 = vsel %vm2233, %v2451, 0
        %2455 = vmatpush.msra.mxu0 0.0
        %2456 = vmatpush.msra.mxu0 0.0
        %2457 = vmatpush.msra.mxu0 0.0
        %2458 = vmatpush.msra.mxu0 0.0
        %2459 = vmatpush.msra.mxu0 0.0
        %2460 = vmatpush.msra.mxu0 0.0
        %2461 = vmatpush.msra.mxu0 0.0
        %2462 = vmatpush.msra.mxu0 0.0
        %2463 = vmatpush.msra.mxu0 0.0
        %2464 = vmatpush.msra.mxu0 0.0
        %2465 = vmatpush.msra.mxu0 0.0
        %2466 = vmatpush.msra.mxu0 0.0
        %2467 = vmatpush.msra.mxu0 0.0
        %2468 = vmatpush.msra.mxu0 0.0
        %2469 = vmatpush.msra.mxu0 0.0
        %2470 = vmatpush.msra.mxu0 %v2429
        %2471 = vmatmul.f32.gmra.mxu0 %v2453
        %v2472 = vpop.f32.mrf.mxu0
        %v2473 = vadd.f32 0.0, %v2472
        %2474 = vdwg.mxu0
        %v2475 = vmax.f32 %v2449, %v2473
        %v2476 = vld [vmem:[%s47] sm:$0x3]
        %vm2477 = vcmask 15360
        %v2479 = vsel %vm2477, %v2476, 0
        %vm2481 = vcmask 1041408
        %v2483 = vsel %vm2481, %v2475, 0
        %2485 = vmatpush.msra.mxu0 0.0
        %2486 = vmatpush.msra.mxu0 0.0
        %2487 = vmatpush.msra.mxu0 0.0
        %2488 = vmatpush.msra.mxu0 0.0
        %2489 = vmatpush.msra.mxu0 0.0
        %2490 = vmatpush.msra.mxu0 0.0
        %2491 = vmatpush.msra.mxu0 0.0
        %2492 = vmatpush.msra.mxu0 0.0
        %2493 = vmatpush.msra.mxu0 0.0
        %2494 = vmatpush.msra.mxu0 0.0
        %2495 = vmatpush.msra.mxu0 0.0
        %2496 = vmatpush.msra.mxu0 0.0
        %2497 = vmatpush.msra.mxu0 0.0
        %2498 = vmatpush.msra.mxu0 0.0
        %2499 = vmatpush.msra.mxu0 0.0
        %2500 = vmatpush.msra.mxu0 %v2483
        %2501 = vmatmul.f32.gmra.mxu0 %v2479
        %v2502 = vpop.f32.mrf.mxu0
        %v2503 = vadd.f32 0.0, %v2502
        %2504 = vdwg.mxu0
        %s2505 = scalar_lea.vmem %s47, 2
        %v2506 = vld [vmem:[%s2505] sm:$0x3]
        %v2508 = vsel %vm2477, %v2506, 0
        %2510 = vmatpush.msra.mxu0 0.0
        %2511 = vmatpush.msra.mxu0 0.0
        %2512 = vmatpush.msra.mxu0 0.0
        %2513 = vmatpush.msra.mxu0 0.0
        %2514 = vmatpush.msra.mxu0 0.0
        %2515 = vmatpush.msra.mxu0 0.0
        %2516 = vmatpush.msra.mxu0 0.0
        %2517 = vmatpush.msra.mxu0 0.0
        %2518 = vmatpush.msra.mxu0 0.0
        %2519 = vmatpush.msra.mxu0 0.0
        %2520 = vmatpush.msra.mxu0 0.0
        %2521 = vmatpush.msra.mxu0 0.0
        %2522 = vmatpush.msra.mxu0 0.0
        %2523 = vmatpush.msra.mxu0 0.0
        %2524 = vmatpush.msra.mxu0 0.0
        %2525 = vmatpush.msra.mxu0 %v2483
        %2526 = vmatmul.f32.gmra.mxu0 %v2508
        %v2527 = vpop.f32.mrf.mxu0
        %v2528 = vadd.f32 0.0, %v2527
        %2529 = vdwg.mxu0
        %s2530 = scalar_lea.vmem %s47, 4
        %v2531 = vld [vmem:[%s2530] sm:$0x3]
        %v2533 = vsel %vm2477, %v2531, 0
        %2535 = vmatpush.msra.mxu0 0.0
        %2536 = vmatpush.msra.mxu0 0.0
        %2537 = vmatpush.msra.mxu0 0.0
        %2538 = vmatpush.msra.mxu0 0.0
        %2539 = vmatpush.msra.mxu0 0.0
        %2540 = vmatpush.msra.mxu0 0.0
        %2541 = vmatpush.msra.mxu0 0.0
        %2542 = vmatpush.msra.mxu0 0.0
        %2543 = vmatpush.msra.mxu0 0.0
        %2544 = vmatpush.msra.mxu0 0.0
        %2545 = vmatpush.msra.mxu0 0.0
        %2546 = vmatpush.msra.mxu0 0.0
        %2547 = vmatpush.msra.mxu0 0.0
        %2548 = vmatpush.msra.mxu0 0.0
        %2549 = vmatpush.msra.mxu0 0.0
        %2550 = vmatpush.msra.mxu0 %v2483
        %2551 = vmatmul.f32.gmra.mxu0 %v2533
        %v2552 = vpop.f32.mrf.mxu0
        %v2553 = vadd.f32 0.0, %v2552
        %2554 = vdwg.mxu0
        %v2555 = vld [vmem:[#allocation35] sm:$0xff]
        %v2556 = vld [vmem:[#allocation35 + $0x8] sm:$0xff]
        %v2557 = vld [vmem:[#allocation35 + $0x10] sm:$0xff]
        %v2558 = vld [vmem:[#allocation35 + $0x18] sm:$0xff]
        %v2559 = vld [vmem:[#allocation35 + $0x20] sm:$0xff]
        %v2560 = vld [vmem:[#allocation35 + $0x28] sm:$0xff]
        %v2561 = vld [vmem:[#allocation35 + $0x30] sm:$0xff]
        %v2562 = vld [vmem:[#allocation35 + $0x38] sm:$0xff]
        %s2563 = scalar_lea.vmem [#allocation35], 64
        %v2564 = vld [vmem:[%s2563] sm:$0xff]
        %v2565 = vld [vmem:[%s2563 + $0x8] sm:$0xff]
        %v2566 = vld [vmem:[%s2563 + $0x10] sm:$0xff]
        %v2567 = vld [vmem:[%s2563 + $0x18] sm:$0xff]
        %v2568 = vld [vmem:[%s2563 + $0x20] sm:$0xff]
        %v2569 = vld [vmem:[%s2563 + $0x28] sm:$0xff]
        %v2570 = vld [vmem:[%s2563 + $0x30] sm:$0xff]
        %v2571 = vld [vmem:[%s2563 + $0x38] sm:$0xff]
        %v2573 = vsel %vm1774, %v2528, 0
        %2575 = vmatpush.msra.mxu0 0.0
        %2576 = vmatpush.msra.mxu0 0.0
        %2577 = vmatpush.msra.mxu0 0.0
        %2578 = vmatpush.msra.mxu0 0.0
        %2579 = vmatpush.msra.mxu0 0.0
        %2580 = vmatpush.msra.mxu0 0.0
        %2581 = vmatpush.msra.mxu0 0.0
        %2582 = vmatpush.msra.mxu0 0.0
        %2583 = vmatpush.msra.mxu0 %v2571
        %2584 = vmatpush.msra.mxu0 %v2570
        %2585 = vmatpush.msra.mxu0 %v2569
        %2586 = vmatpush.msra.mxu0 %v2568
        %2587 = vmatpush.msra.mxu0 %v2567
        %2588 = vmatpush.msra.mxu0 %v2566
        %2589 = vmatpush.msra.mxu0 %v2565
        %2590 = vmatpush.msra.mxu0 %v2564
        %2591 = vmatmul.f32.gmra.mxu0 %v2573
        %v2592 = vpop.f32.mrf.mxu0
        %v2593 = vadd.f32 0.0, %v2592
        %2594 = vdwg.mxu0
        %v2596 = vsel %vm1774, %v2503, 0
        %2598 = vmatpush.msra.mxu0 0.0
        %2599 = vmatpush.msra.mxu0 0.0
        %2600 = vmatpush.msra.mxu0 0.0
        %2601 = vmatpush.msra.mxu0 0.0
        %2602 = vmatpush.msra.mxu0 0.0
        %2603 = vmatpush.msra.mxu0 0.0
        %2604 = vmatpush.msra.mxu0 0.0
        %2605 = vmatpush.msra.mxu0 0.0
        %2606 = vmatpush.msra.mxu0 %v2562
        %2607 = vmatpush.msra.mxu0 %v2561
        %2608 = vmatpush.msra.mxu0 %v2560
        %2609 = vmatpush.msra.mxu0 %v2559
        %2610 = vmatpush.msra.mxu0 %v2558
        %2611 = vmatpush.msra.mxu0 %v2557
        %2612 = vmatpush.msra.mxu0 %v2556
        %2613 = vmatpush.msra.mxu0 %v2555
        %2614 = vmatmul.f32.gmra.mxu0 %v2596
        %v2615 = vpop.f32.mrf.mxu0
        %v2616 = vadd.f32 %v2593, %v2615
        %2617 = vdwg.mxu0
        %s2618 = scalar_lea.vmem [#allocation35], 128
        %v2619 = vld [vmem:[%s2618] sm:$0xff]
        %v2620 = vld [vmem:[%s2618 + $0x8] sm:$0xff]
        %v2621 = vld [vmem:[%s2618 + $0x10] sm:$0xff]
        %v2622 = vld [vmem:[%s2618 + $0x18] sm:$0xff]
        %v2623 = vld [vmem:[%s2618 + $0x20] sm:$0xff]
        %v2624 = vld [vmem:[%s2618 + $0x28] sm:$0xff]
        %v2625 = vld [vmem:[%s2618 + $0x30] sm:$0xff]
        %v2626 = vld [vmem:[%s2618 + $0x38] sm:$0xff]
        %v2628 = vsel %vm1774, %v2553, 0
        %2630 = vmatpush.msra.mxu0 0.0
        %2631 = vmatpush.msra.mxu0 0.0
        %2632 = vmatpush.msra.mxu0 0.0
        %2633 = vmatpush.msra.mxu0 0.0
        %2634 = vmatpush.msra.mxu0 0.0
        %2635 = vmatpush.msra.mxu0 0.0
        %2636 = vmatpush.msra.mxu0 0.0
        %2637 = vmatpush.msra.mxu0 0.0
        %2638 = vmatpush.msra.mxu0 %v2626
        %2639 = vmatpush.msra.mxu0 %v2625
        %2640 = vmatpush.msra.mxu0 %v2624
        %2641 = vmatpush.msra.mxu0 %v2623
        %2642 = vmatpush.msra.mxu0 %v2622
        %2643 = vmatpush.msra.mxu0 %v2621
        %2644 = vmatpush.msra.mxu0 %v2620
        %2645 = vmatpush.msra.mxu0 %v2619
        %2646 = vmatmul.f32.gmra.mxu0 %v2628
        %v2647 = vpop.f32.mrf.mxu0
        %v2648 = vadd.f32 0.0, %v2647
        %2649 = vdwg.mxu0
        %v2650 = vadd.f32 %v2616, %v2648
        %v2651 = vld [vmem:[%s49] sm:$0x3]
        %v2652 = vmul.f32 %v2651, %v2650
        %v2653 = vadd.f32 %v2652, 0.0
        %s2654 = scalar_lea.vmem [#allocation35], 192
        %v2655 = vld [vmem:[%s2654] sm:$0xff]
        %v2656 = vld [vmem:[%s2654 + $0x8] sm:$0xff]
        %v2657 = vld [vmem:[%s2654 + $0x10] sm:$0xff]
        %v2658 = vld [vmem:[%s2654 + $0x18] sm:$0xff]
        %v2659 = vld [vmem:[%s2654 + $0x20] sm:$0xff]
        %v2660 = vld [vmem:[%s2654 + $0x28] sm:$0xff]
        %v2661 = vld [vmem:[%s2654 + $0x30] sm:$0xff]
        %v2662 = vld [vmem:[%s2654 + $0x38] sm:$0xff]
        %s2663 = scalar_lea.vmem [#allocation35], 256
        %v2664 = vld [vmem:[%s2663] sm:$0xff]
        %v2665 = vld [vmem:[%s2663 + $0x8] sm:$0xff]
        %v2666 = vld [vmem:[%s2663 + $0x10] sm:$0xff]
        %v2667 = vld [vmem:[%s2663 + $0x18] sm:$0xff]
        %v2668 = vld [vmem:[%s2663 + $0x20] sm:$0xff]
        %v2669 = vld [vmem:[%s2663 + $0x28] sm:$0xff]
        %v2670 = vld [vmem:[%s2663 + $0x30] sm:$0xff]
        %v2671 = vld [vmem:[%s2663 + $0x38] sm:$0xff]
        %2672 = vmatpush.msra.mxu0 0.0
        %2673 = vmatpush.msra.mxu0 0.0
        %2674 = vmatpush.msra.mxu0 0.0
        %2675 = vmatpush.msra.mxu0 0.0
        %2676 = vmatpush.msra.mxu0 0.0
        %2677 = vmatpush.msra.mxu0 0.0
        %2678 = vmatpush.msra.mxu0 0.0
        %2679 = vmatpush.msra.mxu0 0.0
        %2680 = vmatpush.msra.mxu0 %v2671
        %2681 = vmatpush.msra.mxu0 %v2670
        %2682 = vmatpush.msra.mxu0 %v2669
        %2683 = vmatpush.msra.mxu0 %v2668
        %2684 = vmatpush.msra.mxu0 %v2667
        %2685 = vmatpush.msra.mxu0 %v2666
        %2686 = vmatpush.msra.mxu0 %v2665
        %2687 = vmatpush.msra.mxu0 %v2664
        %2688 = vmatmul.f32.gmra.mxu0 %v2573
        %v2689 = vpop.f32.mrf.mxu0
        %v2690 = vadd.f32 0.0, %v2689
        %2691 = vdwg.mxu0
        %2692 = vmatpush.msra.mxu0 0.0
        %2693 = vmatpush.msra.mxu0 0.0
        %2694 = vmatpush.msra.mxu0 0.0
        %2695 = vmatpush.msra.mxu0 0.0
        %2696 = vmatpush.msra.mxu0 0.0
        %2697 = vmatpush.msra.mxu0 0.0
        %2698 = vmatpush.msra.mxu0 0.0
        %2699 = vmatpush.msra.mxu0 0.0
        %2700 = vmatpush.msra.mxu0 %v2662
        %2701 = vmatpush.msra.mxu0 %v2661
        %2702 = vmatpush.msra.mxu0 %v2660
        %2703 = vmatpush.msra.mxu0 %v2659
        %2704 = vmatpush.msra.mxu0 %v2658
        %2705 = vmatpush.msra.mxu0 %v2657
        %2706 = vmatpush.msra.mxu0 %v2656
        %2707 = vmatpush.msra.mxu0 %v2655
        %2708 = vmatmul.f32.gmra.mxu0 %v2596
        %v2709 = vpop.f32.mrf.mxu0
        %v2710 = vadd.f32 %v2690, %v2709
        %2711 = vdwg.mxu0
        %s2712 = scalar_lea.vmem [#allocation35], 320
        %v2713 = vld [vmem:[%s2712] sm:$0xff]
        %v2714 = vld [vmem:[%s2712 + $0x8] sm:$0xff]
        %v2715 = vld [vmem:[%s2712 + $0x10] sm:$0xff]
        %v2716 = vld [vmem:[%s2712 + $0x18] sm:$0xff]
        %v2717 = vld [vmem:[%s2712 + $0x20] sm:$0xff]
        %v2718 = vld [vmem:[%s2712 + $0x28] sm:$0xff]
        %v2719 = vld [vmem:[%s2712 + $0x30] sm:$0xff]
        %v2720 = vld [vmem:[%s2712 + $0x38] sm:$0xff]
        %2721 = vmatpush.msra.mxu0 0.0
        %2722 = vmatpush.msra.mxu0 0.0
        %2723 = vmatpush.msra.mxu0 0.0
        %2724 = vmatpush.msra.mxu0 0.0
        %2725 = vmatpush.msra.mxu0 0.0
        %2726 = vmatpush.msra.mxu0 0.0
        %2727 = vmatpush.msra.mxu0 0.0
        %2728 = vmatpush.msra.mxu0 0.0
        %2729 = vmatpush.msra.mxu0 %v2720
        %2730 = vmatpush.msra.mxu0 %v2719
        %2731 = vmatpush.msra.mxu0 %v2718
        %2732 = vmatpush.msra.mxu0 %v2717
        %2733 = vmatpush.msra.mxu0 %v2716
        %2734 = vmatpush.msra.mxu0 %v2715
        %2735 = vmatpush.msra.mxu0 %v2714
        %2736 = vmatpush.msra.mxu0 %v2713
        %2737 = vmatmul.f32.gmra.mxu0 %v2628
        %v2738 = vpop.f32.mrf.mxu0
        %v2739 = vadd.f32 0.0, %v2738
        %2740 = vdwg.mxu0
        %v2741 = vadd.f32 %v2710, %v2739
        %s2742 = scalar_lea.vmem %s49, 2
        %v2743 = vld [vmem:[%s2742] sm:$0x3]
        %v2744 = vmul.f32 %v2743, %v2741
        %v2745 = vadd.f32 %v2653, %v2744
        %v2746 = vld [vmem:[#allocation37] sm:$0x1]
        %v2748 = vperm.slane %v2746, 0
        %v2750 = vadd.f32 %v2745, %v2748
        %v2751 = vmax.f32 %v2750, 0.0
        %v2752 = vld [vmem:[%s55] sm:$0x1]
        %v2753 = vld [vmem:[#allocation38] sm:$0xff]
        %v2754 = vld [vmem:[#allocation38 + $0x8] sm:$0xff]
        %v2756 = vsel %vm1330, %v2751, 0
        %2758 = vmatpush.msra.mxu0 0.0
        %2759 = vmatpush.msra.mxu0 0.0
        %2760 = vmatpush.msra.mxu0 0.0
        %2761 = vmatpush.msra.mxu0 0.0
        %2762 = vmatpush.msra.mxu0 0.0
        %2763 = vmatpush.msra.mxu0 0.0
        %2764 = vmatpush.msra.mxu0 0.0
        %2765 = vmatpush.msra.mxu0 0.0
        %2766 = vmatpush.msra.mxu0 0.0
        %2767 = vmatpush.msra.mxu0 0.0
        %2768 = vmatpush.msra.mxu0 0.0
        %2769 = vmatpush.msra.mxu0 0.0
        %2770 = vmatpush.msra.mxu0 0.0
        %2771 = vmatpush.msra.mxu0 0.0
        %2772 = vmatpush.msra.mxu0 %v2754
        %2773 = vmatpush.msra.mxu0 %v2753
        %2774 = vmatmul.f32.gmra.mxu0 %v2756
        %v2775 = vpop.f32.mrf.mxu0
        %v2776 = vadd.f32 0.0, %v2775
        %2777 = vdwg.mxu0
        %v2778 = vadd.f32 %v2752, %v2776
        %s2779 = scalar_lea.vmem [#allocation38], 16
        %v2780 = vld [vmem:[%s2779] sm:$0xff]
        %v2781 = vld [vmem:[%s2779 + $0x8] sm:$0xff]
        %v2782 = vrot.slane %v2751, 1
        %v2783 = vsel %vm1330, %v2782, 0
        %2785 = vmatpush.msra.mxu0 0.0
        %2786 = vmatpush.msra.mxu0 0.0
        %2787 = vmatpush.msra.mxu0 0.0
        %2788 = vmatpush.msra.mxu0 0.0
        %2789 = vmatpush.msra.mxu0 0.0
        %2790 = vmatpush.msra.mxu0 0.0
        %2791 = vmatpush.msra.mxu0 0.0
        %2792 = vmatpush.msra.mxu0 0.0
        %2793 = vmatpush.msra.mxu0 0.0
        %2794 = vmatpush.msra.mxu0 0.0
        %2795 = vmatpush.msra.mxu0 0.0
        %2796 = vmatpush.msra.mxu0 0.0
        %2797 = vmatpush.msra.mxu0 0.0
        %2798 = vmatpush.msra.mxu0 0.0
        %2799 = vmatpush.msra.mxu0 %v2781
        %2800 = vmatpush.msra.mxu0 %v2780
        %2801 = vmatmul.f32.gmra.mxu0 %v2783
        %v2802 = vpop.f32.mrf.mxu0
        %v2803 = vadd.f32 0.0, %v2802
        %2804 = vdwg.mxu0
        %v2805 = vadd.f32 %v2778, %v2803
        %v2806 = vmax.f32 %v2805, 0.0
        %v2807 = vld [vmem:[#allocation40] sm:$0xff]
        %v2808 = vld [vmem:[#allocation40 + $0x8] sm:$0xff]
        %v2809 = vld [vmem:[#allocation40 + $0x10] sm:$0xff]
        %v2810 = vld [vmem:[#allocation40 + $0x18] sm:$0xff]
        %v2811 = vld [vmem:[#allocation40 + $0x20] sm:$0xff]
        %v2812 = vld [vmem:[#allocation40 + $0x28] sm:$0xff]
        %v2813 = vld [vmem:[#allocation40 + $0x30] sm:$0xff]
        %v2814 = vld [vmem:[#allocation40 + $0x38] sm:$0xff]
        %v2815 = vld [vmem:[%s59] sm:$0x1]
        %v2817 = vsel %vm1774, %v2806, 0
        %2819 = vmatpush.msra.mxu0 0.0
        %2820 = vmatpush.msra.mxu0 0.0
        %2821 = vmatpush.msra.mxu0 0.0
        %2822 = vmatpush.msra.mxu0 0.0
        %2823 = vmatpush.msra.mxu0 0.0
        %2824 = vmatpush.msra.mxu0 0.0
        %2825 = vmatpush.msra.mxu0 0.0
        %2826 = vmatpush.msra.mxu0 0.0
        %2827 = vmatpush.msra.mxu0 %v2814
        %2828 = vmatpush.msra.mxu0 %v2813
        %2829 = vmatpush.msra.mxu0 %v2812
        %2830 = vmatpush.msra.mxu0 %v2811
        %2831 = vmatpush.msra.mxu0 %v2810
        %2832 = vmatpush.msra.mxu0 %v2809
        %2833 = vmatpush.msra.mxu0 %v2808
        %2834 = vmatpush.msra.mxu0 %v2807
        %2835 = vmatmul.f32.gmra.mxu0 %v2817
        %v2836 = vpop.f32.mrf.mxu0
        %v2837 = vadd.f32 %v2815, %v2836
        %2838 = vdwg.mxu0
        %vm2839 = vcmask 24576
        %2840 = vst.msk [vmem:[%s1325] sm:$0x1] %vm2839, %v2837
        %s2841 = sand.u32 %s733, 1
        %s2842 = scalar_lea.sflag [#allocation4], %s2841
        %s2843 = sand.u32 %s733, 1
        %s2844 = scalar_lea.vmem [#allocation41], %s2843
        // Predicated region
        $region241: #{forward_pallas.1} parent=139 // pred_check
          %p2845 = pneg %p743
        $region242: #{forward_pallas.1} parent=139 // pred_check_branch
          %2847 = sbr.rel (%p2845) target = $region244
        $region243: #{forward_pallas.1} parent=139 // pred_region
          %2849 = vsyncadd %s2842, 0
          %s2850 = scalar_lea.hbm %s61, %s90
          %s2852 = sshll.u32 %s2844, 4
          %s2853 = int_to_ptr.vmem [resolvable:$true] %s2852
          %s2854 = sshll.u32 %s2850, 4
          %s2855 = int_to_ptr.hbm [resolvable:$true] %s2854
          %2857 = dma.vmem_to_hbm [thread:$0]  %s2853, 16, %s2855, %s2842
        $region244: #{forward_pallas.1} parent=139 // pred_fallthru
          _
      $region140: #{forward_pallas.1} parent=5 // pred_fallthru
        _
      %p2858 = scmp.le.s32.totalorder 2, %s85
      // Predicated region
      $region245: #{forward_pallas.1} parent=5 // pred_check
        %p2859 = pneg %p2858
      $region246: #{forward_pallas.1} parent=5 // pred_check_branch
        %2861 = sbr.rel (%p2859) target = $region248
      $region247: #{forward_pallas.1} parent=5 // pred_region
        %s2862 = ssub.s32 %s85, 2
        // Predicated region
        $region249: #{forward_pallas.1} parent=247 // pred_check
          %p2863 = pneg %p749
        $region250: #{forward_pallas.1} parent=247 // pred_check_branch
          %2865 = sbr.rel (%p2863) target = $region252
        $region251: #{forward_pallas.1} parent=247 // pred_region
          %s2866 = sand.u32 %s734, 1
          %s2867 = scalar_lea.sflag [#allocation4], %s2866
          %s2868 = sand.u32 %s734, 1
          %s2869 = scalar_lea.vmem [#allocation41], %s2868
          %2871 = dma.done %s2867, 16
        $region252: #{forward_pallas.1} parent=247 // pred_fallthru
          _
      $region248: #{forward_pallas.1} parent=5 // pred_fallthru
        _
    $region6: #{forward_pallas.1} parent=1 // loop_footer
      %s89 = sadd.s32 1, %s85
    $region7: #{forward_pallas.1} parent=1 // loop_footer_branch
      %84 = sbr.rel target = $region3
    $region8: #{forward_pallas.1} parent=1 // loop_exit
      _
    %2872 = vsyncpa [#allocation3], 1
    %s2873 = scalar_lea.sflag [#allocation3], 1
    %2874 = vsyncpa %s2873, 1
    %2875 = vsyncpa [#allocation6], 1
    %2876 = vsyncpa [#allocation9], 1
    %2877 = vsyncpa [#allocation12], 1
    %2878 = vsyncpa [#allocation15], 1
    %2879 = vsyncpa [#allocation18], 1
    %2880 = vsyncpa [#allocation21], 1
    %2881 = vsyncpa [#allocation24], 1
    %2882 = vsyncpa [#allocation27], 1
    %2883 = vsyncpa [#allocation30], 1
    %2884 = vsyncpa [#allocation33], 1
    %2885 = vsyncpa [#allocation36], 1
    %2886 = vsyncpa [#allocation39], 1
    %2887 = vsyncpa [#allocation4], 1
    %s2888 = scalar_lea.sflag [#allocation4], 1
    %2889 = vsyncpa %s2888, 1

</llo_original>
